<compile_context>
chip_gen: v7x
topology: tpu7x:2x2x1
jax: 0.10.0
libtpu: 0.0.40
codegen_flags: <defaults>
</compile_context>

<pallas_src>
import math

import jax
import jax.numpy as jnp
from jax.experimental import pallas as pl
from jax.experimental.pallas import tpu as pltpu

# ----------------------- model hyper-parameters (small) ----------------------
VOCAB_SIZE = 50
D_MODEL = 32
NUM_LAYERS = 2
NUM_HEADS = 4
D_FF = 64
MAX_SEQ_LEN = 16
BATCH = 2
SEQ = 8
D_K = D_MODEL // NUM_HEADS
LN_EPS = 1e-5
VOCAB_PAD = ((VOCAB_SIZE + 7) // 8) * 8          # pad vocab rows to a multiple of 8


def _layer_norm(x, gamma, beta):
    # normalize over the last dim (matches nn.LayerNorm(d_model), biased var)
    mean = jnp.mean(x, axis=-1, keepdims=True)
    var = jnp.mean((x - mean) ** 2, axis=-1, keepdims=True)
    inv = jax.lax.rsqrt(var + LN_EPS)
    return (x - mean) * inv * gamma + beta


# ------------------------------ fused kernel ---------------------------------
def encoder_fused_kernel(ids_ref, emb_ref, pe_ref, bias_ref,
                         w_in_ref, w_out_ref, smalls_ref, o_ref):
    T, d_model = pe_ref.shape
    vocab = emb_ref.shape[0]
    num_layers = w_in_ref.shape[0]
    scale = 1.0 / math.sqrt(D_K)

    # --- embedding lookup as a one-hot matmul (keeps the gather on the MXU) ---
    ids = ids_ref[...]                                               # (T, 1) int32
    vocab_iota = jax.lax.broadcasted_iota(jnp.int32, (T, vocab), 1)  # (T, V)
    one_hot = (ids == vocab_iota).astype(jnp.float32)                # (T, V)
    x = jnp.dot(one_hot, emb_ref[...], preferred_element_type=jnp.float32)
    x = x * math.sqrt(d_model) + pe_ref[...]                         # (T, D)

    bias = bias_ref[...]                                             # (H*T, H*T)

    def fold_heads(m2d):        # (T, H*dk) -> (H*T, dk): heads into sublanes
        return jnp.concatenate(
            [m2d[:, h * D_K:(h + 1) * D_K] for h in range(NUM_HEADS)], axis=0)

    for l in range(num_layers):       # static unroll; weights resident in VMEM
        w_in = w_in_ref[l]            # (D, 3D + D_FF) = (32, 160)
        w_out = w_out_ref[l]          # (D + D_FF, D)  = (96, 32)
        sm = smalls_ref[l]            # (8, 96)

        wqkv = w_in[:, 0:3 * d_model]                 # (32, 96)
        wff1 = w_in[:, 3 * d_model:]                  # (32, 64)
        wo = w_out[0:d_model, :]                      # (32, 32)
        wff2 = w_out[d_model:, :]                     # (64, 32)
        b_qkv = sm[0:1, :]                            # (1, 96)
        b_o = sm[1:2, 0:d_model]                      # (1, 32)
        b_f1 = sm[2:3, 0:D_FF]                        # (1, 64)
        b_f2 = sm[3:4, 0:d_model]                     # (1, 32)
        g1, be1 = sm[4:5, 0:d_model], sm[5:6, 0:d_model]
        g2, be2 = sm[6:7, 0:d_model], sm[7:8, 0:d_model]

        # ---- multi-head self-attention: one QKV matmul, heads in sublanes ----
        qkv = jnp.dot(x, wqkv, preferred_element_type=jnp.float32) + b_qkv  # (16,96)
        q_f = fold_heads(qkv[:, 0:d_model])                  # (64, 8)
        k_f = fold_heads(qkv[:, d_model:2 * d_model])        # (64, 8)
        v_f = fold_heads(qkv[:, 2 * d_model:])               # (64, 8)

        s = jnp.einsum('ik,jk->ij', q_f, k_f,
                       preferred_element_type=jnp.float32)   # (64, 64)
        s = s * scale + bias          # additive mask (cross-head/batch -> -1e9)
        s = s - jnp.max(s, axis=-1, keepdims=True)
        e = jnp.exp(s)
        p = e / jnp.sum(e, axis=-1, keepdims=True)            # exact divide

        ctx_f = jnp.dot(p, v_f, preferred_element_type=jnp.float32)   # (64, 8)
        ctx = jnp.concatenate(
            [ctx_f[h * T:(h + 1) * T, :] for h in range(NUM_HEADS)], axis=1)  # (16,32)
        attn = jnp.dot(ctx, wo, preferred_element_type=jnp.float32) + b_o

        # residual + norm1 (dropout = identity)
        x1 = _layer_norm(x + attn, g1, be1)

        # ---- position-wise feed forward ----
        h1 = jnp.dot(x1, wff1, preferred_element_type=jnp.float32) + b_f1
        h1 = jnp.maximum(h1, 0.0)                                    # ReLU
        ff = jnp.dot(h1, wff2, preferred_element_type=jnp.float32) + b_f2

        # residual + norm2
        x = _layer_norm(x1 + ff, g2, be2)

    # ---- final LayerNorm ----
    fin = smalls_ref[num_layers]                  # (8, 96), rows 0/1 used
    x = _layer_norm(x, fin[0:1, 0:d_model], fin[1:2, 0:d_model])
    o_ref[...] = x.astype(o_ref.dtype)


# ------------------------------ wrapper ---------------------------------------
def _full_spec(shape):
    nd = len(shape)
    return pl.BlockSpec(shape, lambda i, _nd=nd: (0,) * _nd)


def _attention_bias(B, S, src_mask):
    """(H*T, H*T) additive bias: 0 where attention is allowed, -1e9 elsewhere."""
    T = B * S
    tok = jnp.arange(T, dtype=jnp.int32)
    batch_ids = tok // S
    valid = batch_ids[:, None] == batch_ids[None, :]                 # (T, T)
    if src_mask is not None:
        um = jnp.broadcast_to(jnp.asarray(src_mask) != 0, (B, S, S))
        pos = tok % S
        valid = valid & um[batch_ids[:, None], pos[:, None], pos[None, :]]
    HT = NUM_HEADS * T
    hid = jnp.arange(HT, dtype=jnp.int32) // T
    same_head = hid[:, None] == hid[None, :]                         # (HT, HT)
    full = same_head & jnp.tile(valid, (NUM_HEADS, NUM_HEADS))
    return jnp.where(full, 0.0, -1e9).astype(jnp.float32)


def encoder_forward(src, packed, src_mask=None):
    """src: (B, S) int32 token ids; src_mask: optional, broadcastable to (B, S, S)."""
    B, S = src.shape
    T = B * S
    D = D_MODEL

    ids = src.reshape(T, 1).astype(jnp.int32)
    pe_flat = jnp.tile(packed["pe"][:S], (B, 1))                     # (T, D)
    bias = _attention_bias(B, S, src_mask)                           # (H*T, H*T)

    args = (ids, packed["embedding"], pe_flat, bias,
            packed["w_in"], packed["w_out"], packed["smalls"])

    out = pl.pallas_call(
        encoder_fused_kernel,
        out_shape=jax.ShapeDtypeStruct((T, D), jnp.float32),
        grid_spec=pltpu.PrefetchScalarGridSpec(
            num_scalar_prefetch=0,
            grid=(1,),
            in_specs=[_full_spec(a.shape) for a in args],
            out_specs=_full_spec((T, D)),
        ),
        compiler_params=pltpu.CompilerParams(
            dimension_semantics=("arbitrary",),
        ),
    )(*args)
    return out.reshape(B, S, D)


# ----------------------------- parameter init ---------------------------------
def init_params(key):
    """Raw (per-layer) parameters, x @ W convention for all Linears."""
    keys = jax.random.split(key, 1 + NUM_LAYERS)
    emb = jax.random.normal(keys[0], (VOCAB_SIZE, D_MODEL), jnp.float32)

    # sinusoidal positional encoding (same formula as the PyTorch buffer)
    position = jnp.arange(MAX_SEQ_LEN, dtype=jnp.float32)[:, None]
    div_term = jnp.exp(jnp.arange(0, D_MODEL, 2, dtype=jnp.float32)
                       * (-math.log(10000.0) / D_MODEL))
    pe = jnp.zeros((MAX_SEQ_LEN, D_MODEL), jnp.float32)
    pe = pe.at[:, 0::2].set(jnp.sin(position * div_term))
    pe = pe.at[:, 1::2].set(jnp.cos(position * div_term))

    def linear(k, fan_in, fan_out):
        k1, k2 = jax.random.split(k)
        bound = 1.0 / math.sqrt(fan_in)
        w = jax.random.uniform(k1, (fan_in, fan_out), jnp.float32, -bound, bound)
        b = jax.random.uniform(k2, (fan_out,), jnp.float32, -bound, bound)
        return w, b

    layers = []
    for li in range(NUM_LAYERS):
        lk = jax.random.split(keys[1 + li], 6)
        wq, bq = linear(lk[0], D_MODEL, D_MODEL)
        wk, bk = linear(lk[1], D_MODEL, D_MODEL)
        wv, bv = linear(lk[2], D_MODEL, D_MODEL)
        wo, bo = linear(lk[3], D_MODEL, D_MODEL)
        w1, bf1 = linear(lk[4], D_MODEL, D_FF)
        w2, bf2 = linear(lk[5], D_FF, D_MODEL)
        layers.append(dict(
            wq=wq, bq=bq, wk=wk, bk=bk, wv=wv, bv=bv, wo=wo, bo=bo,
            w1=w1, bf1=bf1, w2=w2, bf2=bf2,
            g1=jnp.ones(D_MODEL, jnp.float32), beta1=jnp.zeros(D_MODEL, jnp.float32),
            g2=jnp.ones(D_MODEL, jnp.float32), beta2=jnp.zeros(D_MODEL, jnp.float32)))
    return dict(embedding=emb, pe=pe, layers=layers,
                g_final=jnp.ones(D_MODEL, jnp.float32),
                b_final=jnp.zeros(D_MODEL, jnp.float32))


def pack_params(raw):
    """Pack raw params into the 5 kernel operands (plus ids/pe/bias at call time)."""
    emb_pad = jnp.concatenate(
        [raw["embedding"],
         jnp.zeros((VOCAB_PAD - VOCAB_SIZE, D_MODEL), jnp.float32)], axis=0)

    def pad96(v):
        return jnp.pad(v, (0, 3 * D_MODEL - v.shape[0]))

    w_in_l, w_out_l, smalls_l = [], [], []
    for lay in raw["layers"]:
        w_in_l.append(jnp.concatenate(
            [lay["wq"], lay["wk"], lay["wv"], lay["w1"]], axis=1))      # (32, 160)
        w_out_l.append(jnp.concatenate([lay["wo"], lay["w2"]], axis=0))  # (96, 32)
        smalls_l.append(jnp.stack([
            pad96(jnp.concatenate([lay["bq"], lay["bk"], lay["bv"]])),   # row 0: b_qkv
            pad96(lay["bo"]), pad96(lay["bf1"]), pad96(lay["bf2"]),
            pad96(lay["g1"]), pad96(lay["beta1"]),
            pad96(lay["g2"]), pad96(lay["beta2"])]))                     # (8, 96)
    smalls_l.append(jnp.stack(
        [pad96(raw["g_final"]), pad96(raw["b_final"])]
        + [jnp.zeros(3 * D_MODEL, jnp.float32)] * 6))                    # final LN slice

    return dict(embedding=emb_pad, pe=raw["pe"],
                w_in=jnp.stack(w_in_l),        # (L, 32, 160)
                w_out=jnp.stack(w_out_l),      # (L, 96, 32)
                smalls=jnp.stack(smalls_l))    # (L+1, 8, 96)


# ----------------------------- pure-JAX reference ------------------------------
def encoder_reference(src, raw, src_mask=None):
    B, S = src.shape
    x = raw["embedding"][src] * math.sqrt(D_MODEL) + raw["pe"][:S][None]
    mask4 = None
    if src_mask is not None:
        mask4 = jnp.broadcast_to(jnp.asarray(src_mask) != 0, (B, S, S))[:, None]
    for lay in raw["layers"]:
        q = x @ lay["wq"] + lay["bq"]
        k = x @ lay["wk"] + lay["bk"]
        v = x @ lay["wv"] + lay["bv"]

        def split(t):
            return t.reshape(B, S, NUM_HEADS, D_K).transpose(0, 2, 1, 3)

        qh, kh, vh = split(q), split(k), split(v)
        scores = jnp.einsum('bhqd,bhkd->bhqk', qh, kh) / math.sqrt(D_K)
        if mask4 is not None:
            scores = jnp.where(mask4, scores, -1e9)
        p = jax.nn.softmax(scores, axis=-1)
        ctx = jnp.einsum('bhqk,bhkd->bhqd', p, vh).transpose(0, 2, 1, 3)
        ctx = ctx.reshape(B, S, D_MODEL)
        attn = ctx @ lay["wo"] + lay["bo"]
        x = _layer_norm(x + attn, lay["g1"], lay["beta1"])
        h = jax.nn.relu(x @ lay["w1"] + lay["bf1"])
        ff = h @ lay["w2"] + lay["bf2"]
        x = _layer_norm(x + ff, lay["g2"], lay["beta2"])
    return _layer_norm(x, raw["g_final"], raw["b_final"])


if __name__ == "__main__":
    key = jax.random.PRNGKey(0)
    pkey, skey = jax.random.split(key)
    raw = init_params(pkey)
    packed = pack_params(raw)

    src = jax.random.randint(skey, (BATCH, SEQ), 0, VOCAB_SIZE, dtype=jnp.int32)

    fwd = jax.jit(encoder_forward)

    # Unmasked run (src_mask=None path).
    out = jax.block_until_ready(fwd(src, packed))
    assert out.shape == (BATCH, SEQ, D_MODEL), out.shape
    assert bool(jnp.all(jnp.isfinite(out)))
    with jax.default_matmul_precision("highest"):
        ref = encoder_reference(src, raw)
    # Loose-ish tolerance to allow for MXU f32-emulation passes; still catches
    # any structural/packing error (those would be O(1)).
    assert bool(jnp.allclose(out, ref, atol=2e-2, rtol=2e-2)), \
        float(jnp.max(jnp.abs(out - ref)))

    # Masked run: key-padding mask hiding the last 2 positions of batch 1.
    pad_mask = jnp.ones((BATCH, 1, SEQ), jnp.int32).at[1, 0, SEQ - 2:].set(0)
    out_m = jax.block_until_ready(fwd(src, packed, pad_mask))
    assert out_m.shape == (BATCH, SEQ, D_MODEL), out_m.shape
    assert bool(jnp.all(jnp.isfinite(out_m)))
    with jax.default_matmul_precision("highest"):
        ref_m = encoder_reference(src, raw, pad_mask)
    assert bool(jnp.allclose(out_m, ref_m, atol=2e-2, rtol=2e-2)), \
        float(jnp.max(jnp.abs(out_m - ref_m)))

    print("KERNEL_OK")
</pallas_src>

<mosaic_0001>
module attributes {stable_mosaic.version = 11 : i64} {
  func.func @encoder_fused_kernel(%arg0: i32, %arg1: memref<16x1xi32, #tpu.memory_space<vmem>>, %arg2: memref<56x32xf32, #tpu.memory_space<vmem>>, %arg3: memref<16x32xf32, #tpu.memory_space<vmem>>, %arg4: memref<64x64xf32, #tpu.memory_space<vmem>>, %arg5: memref<2x32x160xf32, #tpu.memory_space<vmem>>, %arg6: memref<2x96x32xf32, #tpu.memory_space<vmem>>, %arg7: memref<3x8x96xf32, #tpu.memory_space<vmem>>, %arg8: memref<16x32xf32, #tpu.memory_space<vmem>>) attributes {dimension_semantics = [#tpu.dimension_semantics<arbitrary>], iteration_bounds = array<i64: 1>, scalar_prefetch = 0 : i64, scratch_operands = 0 : i64, tpu.core_type = #tpu.core_type<tc>, window_params = [{pipeline_mode = #tpu.pipeline_mode<synchronous>, transform_indices = @transform_0, window_bounds = array<i64: 16, 1>}, {pipeline_mode = #tpu.pipeline_mode<synchronous>, transform_indices = @transform_1, window_bounds = array<i64: 56, 32>}, {pipeline_mode = #tpu.pipeline_mode<synchronous>, transform_indices = @transform_2, window_bounds = array<i64: 16, 32>}, {pipeline_mode = #tpu.pipeline_mode<synchronous>, transform_indices = @transform_3, window_bounds = array<i64: 64, 64>}, {pipeline_mode = #tpu.pipeline_mode<synchronous>, transform_indices = @transform_4, window_bounds = array<i64: 2, 32, 160>}, {pipeline_mode = #tpu.pipeline_mode<synchronous>, transform_indices = @transform_5, window_bounds = array<i64: 2, 96, 32>}, {pipeline_mode = #tpu.pipeline_mode<synchronous>, transform_indices = @transform_6, window_bounds = array<i64: 3, 8, 96>}, {pipeline_mode = #tpu.pipeline_mode<synchronous>, transform_indices = @transform_7, window_bounds = array<i64: 16, 32>}]} {
    %c0 = arith.constant 0 : index
    %c0_0 = arith.constant 0 : index
    %0 = vector.load %arg1[%c0, %c0_0] : memref<16x1xi32, #tpu.memory_space<vmem>>, vector<16x1xi32>
    %1 = tpu.iota {dimensions = array<i32: 1>} : vector<16x56xi32>
    %2 = vector.broadcast %0 : vector<16x1xi32> to vector<16x56xi32>
    %3 = arith.cmpi eq, %2, %1 : vector<16x56xi32>
    %4 = arith.extui %3 : vector<16x56xi1> to vector<16x56xi32>
    %5 = arith.sitofp %4 : vector<16x56xi32> to vector<16x56xf32>
    %c0_1 = arith.constant 0 : index
    %c0_2 = arith.constant 0 : index
    %6 = vector.load %arg2[%c0_1, %c0_2] : memref<56x32xf32, #tpu.memory_space<vmem>>, vector<56x32xf32>
    %cst = arith.constant dense<0.000000e+00> : vector<16x32xf32>
    %7 = tpu.matmul %5, %6, %cst {dimension_numbers = #tpu.dot_dimension_numbers<[1], [0], [0], [1], [0, 0, 1, 1], [], []>} : vector<16x56xf32>, vector<56x32xf32>, vector<16x32xf32> -> vector<16x32xf32>
    %cst_3 = arith.constant 5.65685415 : f32
    %8 = vector.broadcast %cst_3 : f32 to vector<16x32xf32>
    %9 = arith.mulf %7, %8 : vector<16x32xf32>
    %c0_4 = arith.constant 0 : index
    %c0_5 = arith.constant 0 : index
    %10 = vector.load %arg3[%c0_4, %c0_5] : memref<16x32xf32, #tpu.memory_space<vmem>>, vector<16x32xf32>
    %11 = arith.addf %9, %10 : vector<16x32xf32>
    %c0_6 = arith.constant 0 : index
    %c0_7 = arith.constant 0 : index
    %12 = vector.load %arg4[%c0_6, %c0_7] : memref<64x64xf32, #tpu.memory_space<vmem>>, vector<64x64xf32>
    %c0_8 = arith.constant 0 : index
    %c0_9 = arith.constant 0 : index
    %c0_10 = arith.constant 0 : index
    %13 = vector.load %arg5[%c0_8, %c0_9, %c0_10] : memref<2x32x160xf32, #tpu.memory_space<vmem>>, vector<1x32x160xf32>
    %14 = vector.shape_cast %13 : vector<1x32x160xf32> to vector<32x160xf32>
    %c0_11 = arith.constant 0 : index
    %c0_12 = arith.constant 0 : index
    %c0_13 = arith.constant 0 : index
    %15 = vector.load %arg6[%c0_11, %c0_12, %c0_13] : memref<2x96x32xf32, #tpu.memory_space<vmem>>, vector<1x96x32xf32>
    %16 = vector.shape_cast %15 : vector<1x96x32xf32> to vector<96x32xf32>
    %c0_14 = arith.constant 0 : index
    %c0_15 = arith.constant 0 : index
    %c0_16 = arith.constant 0 : index
    %17 = vector.load %arg7[%c0_14, %c0_15, %c0_16] : memref<3x8x96xf32, #tpu.memory_space<vmem>>, vector<1x8x96xf32>
    %18 = vector.shape_cast %17 : vector<1x8x96xf32> to vector<8x96xf32>
    %19 = vector.extract_strided_slice %14 {offsets = [0, 0], sizes = [32, 96], strides = [1, 1]} : vector<32x160xf32> to vector<32x96xf32>
    %20 = vector.extract_strided_slice %14 {offsets = [0, 96], sizes = [32, 64], strides = [1, 1]} : vector<32x160xf32> to vector<32x64xf32>
    %21 = vector.extract_strided_slice %16 {offsets = [0, 0], sizes = [32, 32], strides = [1, 1]} : vector<96x32xf32> to vector<32x32xf32>
    %22 = vector.extract_strided_slice %16 {offsets = [32, 0], sizes = [64, 32], strides = [1, 1]} : vector<96x32xf32> to vector<64x32xf32>
    %23 = vector.extract_strided_slice %18 {offsets = [0, 0], sizes = [1, 96], strides = [1, 1]} : vector<8x96xf32> to vector<1x96xf32>
    %24 = vector.extract_strided_slice %18 {offsets = [1, 0], sizes = [1, 32], strides = [1, 1]} : vector<8x96xf32> to vector<1x32xf32>
    %25 = vector.extract_strided_slice %18 {offsets = [2, 0], sizes = [1, 64], strides = [1, 1]} : vector<8x96xf32> to vector<1x64xf32>
    %26 = vector.extract_strided_slice %18 {offsets = [3, 0], sizes = [1, 32], strides = [1, 1]} : vector<8x96xf32> to vector<1x32xf32>
    %27 = vector.extract_strided_slice %18 {offsets = [4, 0], sizes = [1, 32], strides = [1, 1]} : vector<8x96xf32> to vector<1x32xf32>
    %28 = vector.extract_strided_slice %18 {offsets = [5, 0], sizes = [1, 32], strides = [1, 1]} : vector<8x96xf32> to vector<1x32xf32>
    %29 = vector.extract_strided_slice %18 {offsets = [6, 0], sizes = [1, 32], strides = [1, 1]} : vector<8x96xf32> to vector<1x32xf32>
    %30 = vector.extract_strided_slice %18 {offsets = [7, 0], sizes = [1, 32], strides = [1, 1]} : vector<8x96xf32> to vector<1x32xf32>
    %cst_17 = arith.constant dense<0.000000e+00> : vector<16x96xf32>
    %31 = tpu.matmul %11, %19, %cst_17 {dimension_numbers = #tpu.dot_dimension_numbers<[1], [0], [0], [1], [0, 0, 1, 1], [], []>} : vector<16x32xf32>, vector<32x96xf32>, vector<16x96xf32> -> vector<16x96xf32>
    %32 = vector.broadcast %23 : vector<1x96xf32> to vector<16x96xf32>
    %33 = arith.addf %31, %32 : vector<16x96xf32>
    %34 = vector.extract_strided_slice %33 {offsets = [0, 0], sizes = [16, 32], strides = [1, 1]} : vector<16x96xf32> to vector<16x32xf32>
    %35 = vector.extract_strided_slice %34 {offsets = [0, 0], sizes = [16, 8], strides = [1, 1]} : vector<16x32xf32> to vector<16x8xf32>
    %36 = vector.extract_strided_slice %34 {offsets = [0, 8], sizes = [16, 8], strides = [1, 1]} : vector<16x32xf32> to vector<16x8xf32>
    %37 = vector.extract_strided_slice %34 {offsets = [0, 16], sizes = [16, 8], strides = [1, 1]} : vector<16x32xf32> to vector<16x8xf32>
    %38 = vector.extract_strided_slice %34 {offsets = [0, 24], sizes = [16, 8], strides = [1, 1]} : vector<16x32xf32> to vector<16x8xf32>
    %39 = tpu.concatenate %35, %36, %37, %38 in 0 : vector<16x8xf32>, vector<16x8xf32>, vector<16x8xf32>, vector<16x8xf32> -> vector<64x8xf32>
    %40 = vector.extract_strided_slice %33 {offsets = [0, 32], sizes = [16, 32], strides = [1, 1]} : vector<16x96xf32> to vector<16x32xf32>
    %41 = vector.extract_strided_slice %40 {offsets = [0, 0], sizes = [16, 8], strides = [1, 1]} : vector<16x32xf32> to vector<16x8xf32>
    %42 = vector.extract_strided_slice %40 {offsets = [0, 8], sizes = [16, 8], strides = [1, 1]} : vector<16x32xf32> to vector<16x8xf32>
    %43 = vector.extract_strided_slice %40 {offsets = [0, 16], sizes = [16, 8], strides = [1, 1]} : vector<16x32xf32> to vector<16x8xf32>
    %44 = vector.extract_strided_slice %40 {offsets = [0, 24], sizes = [16, 8], strides = [1, 1]} : vector<16x32xf32> to vector<16x8xf32>
    %45 = tpu.concatenate %41, %42, %43, %44 in 0 : vector<16x8xf32>, vector<16x8xf32>, vector<16x8xf32>, vector<16x8xf32> -> vector<64x8xf32>
    %46 = vector.extract_strided_slice %33 {offsets = [0, 64], sizes = [16, 32], strides = [1, 1]} : vector<16x96xf32> to vector<16x32xf32>
    %47 = vector.extract_strided_slice %46 {offsets = [0, 0], sizes = [16, 8], strides = [1, 1]} : vector<16x32xf32> to vector<16x8xf32>
    %48 = vector.extract_strided_slice %46 {offsets = [0, 8], sizes = [16, 8], strides = [1, 1]} : vector<16x32xf32> to vector<16x8xf32>
    %49 = vector.extract_strided_slice %46 {offsets = [0, 16], sizes = [16, 8], strides = [1, 1]} : vector<16x32xf32> to vector<16x8xf32>
    %50 = vector.extract_strided_slice %46 {offsets = [0, 24], sizes = [16, 8], strides = [1, 1]} : vector<16x32xf32> to vector<16x8xf32>
    %51 = tpu.concatenate %47, %48, %49, %50 in 0 : vector<16x8xf32>, vector<16x8xf32>, vector<16x8xf32>, vector<16x8xf32> -> vector<64x8xf32>
    "tpu.trace_start"() <{level = 10 : i32, message = "ik,jk->ij"}> : () -> ()
    %cst_18 = arith.constant dense<0.000000e+00> : vector<64x64xf32>
    %52 = tpu.matmul %39, %45, %cst_18 {dimension_numbers = #tpu.dot_dimension_numbers<[1], [1], [0], [0], [0, 0, 1, 0], [], []>} : vector<64x8xf32>, vector<64x8xf32>, vector<64x64xf32> -> vector<64x64xf32>
    "tpu.trace_stop"() : () -> ()
    %cst_19 = arith.constant 0.353553385 : f32
    %53 = vector.broadcast %cst_19 : f32 to vector<64x64xf32>
    %54 = arith.mulf %52, %53 : vector<64x64xf32>
    %55 = arith.addf %54, %12 : vector<64x64xf32>
    %cst_20 = arith.constant dense<0xFF800000> : vector<64xf32>
    %56 = vector.multi_reduction <maximumf>, %55, %cst_20 [1] : vector<64x64xf32> to vector<64xf32>
    %57 = vector.shape_cast %56 : vector<64xf32> to vector<64x1xf32>
    %58 = vector.broadcast %57 : vector<64x1xf32> to vector<64x64xf32>
    %59 = arith.subf %55, %58 : vector<64x64xf32>
    %60 = math.exp %59 : vector<64x64xf32>
    %cst_21 = arith.constant dense<0.000000e+00> : vector<64xf32>
    %61 = vector.multi_reduction <add>, %60, %cst_21 [1] : vector<64x64xf32> to vector<64xf32>
    %62 = vector.shape_cast %61 : vector<64xf32> to vector<64x1xf32>
    %63 = vector.broadcast %62 : vector<64x1xf32> to vector<64x64xf32>
    %64 = arith.divf %60, %63 : vector<64x64xf32>
    %cst_22 = arith.constant dense<0.000000e+00> : vector<64x8xf32>
    %65 = tpu.matmul %64, %51, %cst_22 {dimension_numbers = #tpu.dot_dimension_numbers<[1], [0], [0], [1], [0, 0, 1, 1], [], []>} : vector<64x64xf32>, vector<64x8xf32>, vector<64x8xf32> -> vector<64x8xf32>
    %66 = vector.extract_strided_slice %65 {offsets = [0, 0], sizes = [16, 8], strides = [1, 1]} : vector<64x8xf32> to vector<16x8xf32>
    %67 = vector.extract_strided_slice %65 {offsets = [16, 0], sizes = [16, 8], strides = [1, 1]} : vector<64x8xf32> to vector<16x8xf32>
    %68 = vector.extract_strided_slice %65 {offsets = [32, 0], sizes = [16, 8], strides = [1, 1]} : vector<64x8xf32> to vector<16x8xf32>
    %69 = vector.extract_strided_slice %65 {offsets = [48, 0], sizes = [16, 8], strides = [1, 1]} : vector<64x8xf32> to vector<16x8xf32>
    %70 = tpu.concatenate %66, %67, %68, %69 in 1 : vector<16x8xf32>, vector<16x8xf32>, vector<16x8xf32>, vector<16x8xf32> -> vector<16x32xf32>
    %cst_23 = arith.constant dense<0.000000e+00> : vector<16x32xf32>
    %71 = tpu.matmul %70, %21, %cst_23 {dimension_numbers = #tpu.dot_dimension_numbers<[1], [0], [0], [1], [0, 0, 1, 1], [], []>} : vector<16x32xf32>, vector<32x32xf32>, vector<16x32xf32> -> vector<16x32xf32>
    %72 = vector.broadcast %24 : vector<1x32xf32> to vector<16x32xf32>
    %73 = arith.addf %71, %72 : vector<16x32xf32>
    %74 = arith.addf %11, %73 : vector<16x32xf32>
    %cst_24 = arith.constant dense<0.000000e+00> : vector<16xf32>
    %75 = vector.multi_reduction <add>, %74, %cst_24 [1] : vector<16x32xf32> to vector<16xf32>
    %76 = vector.shape_cast %75 : vector<16xf32> to vector<16x1xf32>
    %cst_25 = arith.constant 3.200000e+01 : f32
    %77 = vector.broadcast %cst_25 : f32 to vector<16x1xf32>
    %78 = arith.divf %76, %77 : vector<16x1xf32>
    %79 = vector.broadcast %78 : vector<16x1xf32> to vector<16x32xf32>
    %80 = arith.subf %74, %79 : vector<16x32xf32>
    %81 = arith.mulf %80, %80 : vector<16x32xf32>
    %cst_26 = arith.constant dense<0.000000e+00> : vector<16xf32>
    %82 = vector.multi_reduction <add>, %81, %cst_26 [1] : vector<16x32xf32> to vector<16xf32>
    %83 = vector.shape_cast %82 : vector<16xf32> to vector<16x1xf32>
    %cst_27 = arith.constant 3.200000e+01 : f32
    %84 = vector.broadcast %cst_27 : f32 to vector<16x1xf32>
    %85 = arith.divf %83, %84 : vector<16x1xf32>
    %cst_28 = arith.constant 9.99999974E-6 : f32
    %86 = vector.broadcast %cst_28 : f32 to vector<16x1xf32>
    %87 = arith.addf %85, %86 : vector<16x1xf32>
    %88 = math.rsqrt %87 : vector<16x1xf32>
    %89 = vector.broadcast %78 : vector<16x1xf32> to vector<16x32xf32>
    %90 = arith.subf %74, %89 : vector<16x32xf32>
    %91 = vector.broadcast %88 : vector<16x1xf32> to vector<16x32xf32>
    %92 = arith.mulf %90, %91 : vector<16x32xf32>
    %93 = vector.broadcast %27 : vector<1x32xf32> to vector<16x32xf32>
    %94 = arith.mulf %92, %93 : vector<16x32xf32>
    %95 = vector.broadcast %28 : vector<1x32xf32> to vector<16x32xf32>
    %96 = arith.addf %94, %95 : vector<16x32xf32>
    %cst_29 = arith.constant dense<0.000000e+00> : vector<16x64xf32>
    %97 = tpu.matmul %96, %20, %cst_29 {dimension_numbers = #tpu.dot_dimension_numbers<[1], [0], [0], [1], [0, 0, 1, 1], [], []>} : vector<16x32xf32>, vector<32x64xf32>, vector<16x64xf32> -> vector<16x64xf32>
    %98 = vector.broadcast %25 : vector<1x64xf32> to vector<16x64xf32>
    %99 = arith.addf %97, %98 : vector<16x64xf32>
    %cst_30 = arith.constant 0.000000e+00 : f32
    %100 = vector.broadcast %cst_30 : f32 to vector<16x64xf32>
    %101 = arith.maximumf %99, %100 : vector<16x64xf32>
    %cst_31 = arith.constant dense<0.000000e+00> : vector<16x32xf32>
    %102 = tpu.matmul %101, %22, %cst_31 {dimension_numbers = #tpu.dot_dimension_numbers<[1], [0], [0], [1], [0, 0, 1, 1], [], []>} : vector<16x64xf32>, vector<64x32xf32>, vector<16x32xf32> -> vector<16x32xf32>
    %103 = vector.broadcast %26 : vector<1x32xf32> to vector<16x32xf32>
    %104 = arith.addf %102, %103 : vector<16x32xf32>
    %105 = arith.addf %96, %104 : vector<16x32xf32>
    %cst_32 = arith.constant dense<0.000000e+00> : vector<16xf32>
    %106 = vector.multi_reduction <add>, %105, %cst_32 [1] : vector<16x32xf32> to vector<16xf32>
    %107 = vector.shape_cast %106 : vector<16xf32> to vector<16x1xf32>
    %cst_33 = arith.constant 3.200000e+01 : f32
    %108 = vector.broadcast %cst_33 : f32 to vector<16x1xf32>
    %109 = arith.divf %107, %108 : vector<16x1xf32>
    %110 = vector.broadcast %109 : vector<16x1xf32> to vector<16x32xf32>
    %111 = arith.subf %105, %110 : vector<16x32xf32>
    %112 = arith.mulf %111, %111 : vector<16x32xf32>
    %cst_34 = arith.constant dense<0.000000e+00> : vector<16xf32>
    %113 = vector.multi_reduction <add>, %112, %cst_34 [1] : vector<16x32xf32> to vector<16xf32>
    %114 = vector.shape_cast %113 : vector<16xf32> to vector<16x1xf32>
    %cst_35 = arith.constant 3.200000e+01 : f32
    %115 = vector.broadcast %cst_35 : f32 to vector<16x1xf32>
    %116 = arith.divf %114, %115 : vector<16x1xf32>
    %cst_36 = arith.constant 9.99999974E-6 : f32
    %117 = vector.broadcast %cst_36 : f32 to vector<16x1xf32>
    %118 = arith.addf %116, %117 : vector<16x1xf32>
    %119 = math.rsqrt %118 : vector<16x1xf32>
    %120 = vector.broadcast %109 : vector<16x1xf32> to vector<16x32xf32>
    %121 = arith.subf %105, %120 : vector<16x32xf32>
    %122 = vector.broadcast %119 : vector<16x1xf32> to vector<16x32xf32>
    %123 = arith.mulf %121, %122 : vector<16x32xf32>
    %124 = vector.broadcast %29 : vector<1x32xf32> to vector<16x32xf32>
    %125 = arith.mulf %123, %124 : vector<16x32xf32>
    %126 = vector.broadcast %30 : vector<1x32xf32> to vector<16x32xf32>
    %127 = arith.addf %125, %126 : vector<16x32xf32>
    %c1 = arith.constant 1 : index
    %c0_37 = arith.constant 0 : index
    %c0_38 = arith.constant 0 : index
    %128 = vector.load %arg5[%c1, %c0_37, %c0_38] : memref<2x32x160xf32, #tpu.memory_space<vmem>>, vector<1x32x160xf32>
    %129 = vector.shape_cast %128 : vector<1x32x160xf32> to vector<32x160xf32>
    %c1_39 = arith.constant 1 : index
    %c0_40 = arith.constant 0 : index
    %c0_41 = arith.constant 0 : index
    %130 = vector.load %arg6[%c1_39, %c0_40, %c0_41] : memref<2x96x32xf32, #tpu.memory_space<vmem>>, vector<1x96x32xf32>
    %131 = vector.shape_cast %130 : vector<1x96x32xf32> to vector<96x32xf32>
    %c1_42 = arith.constant 1 : index
    %c0_43 = arith.constant 0 : index
    %c0_44 = arith.constant 0 : index
    %132 = vector.load %arg7[%c1_42, %c0_43, %c0_44] : memref<3x8x96xf32, #tpu.memory_space<vmem>>, vector<1x8x96xf32>
    %133 = vector.shape_cast %132 : vector<1x8x96xf32> to vector<8x96xf32>
    %134 = vector.extract_strided_slice %129 {offsets = [0, 0], sizes = [32, 96], strides = [1, 1]} : vector<32x160xf32> to vector<32x96xf32>
    %135 = vector.extract_strided_slice %129 {offsets = [0, 96], sizes = [32, 64], strides = [1, 1]} : vector<32x160xf32> to vector<32x64xf32>
    %136 = vector.extract_strided_slice %131 {offsets = [0, 0], sizes = [32, 32], strides = [1, 1]} : vector<96x32xf32> to vector<32x32xf32>
    %137 = vector.extract_strided_slice %131 {offsets = [32, 0], sizes = [64, 32], strides = [1, 1]} : vector<96x32xf32> to vector<64x32xf32>
    %138 = vector.extract_strided_slice %133 {offsets = [0, 0], sizes = [1, 96], strides = [1, 1]} : vector<8x96xf32> to vector<1x96xf32>
    %139 = vector.extract_strided_slice %133 {offsets = [1, 0], sizes = [1, 32], strides = [1, 1]} : vector<8x96xf32> to vector<1x32xf32>
    %140 = vector.extract_strided_slice %133 {offsets = [2, 0], sizes = [1, 64], strides = [1, 1]} : vector<8x96xf32> to vector<1x64xf32>
    %141 = vector.extract_strided_slice %133 {offsets = [3, 0], sizes = [1, 32], strides = [1, 1]} : vector<8x96xf32> to vector<1x32xf32>
    %142 = vector.extract_strided_slice %133 {offsets = [4, 0], sizes = [1, 32], strides = [1, 1]} : vector<8x96xf32> to vector<1x32xf32>
    %143 = vector.extract_strided_slice %133 {offsets = [5, 0], sizes = [1, 32], strides = [1, 1]} : vector<8x96xf32> to vector<1x32xf32>
    %144 = vector.extract_strided_slice %133 {offsets = [6, 0], sizes = [1, 32], strides = [1, 1]} : vector<8x96xf32> to vector<1x32xf32>
    %145 = vector.extract_strided_slice %133 {offsets = [7, 0], sizes = [1, 32], strides = [1, 1]} : vector<8x96xf32> to vector<1x32xf32>
    %cst_45 = arith.constant dense<0.000000e+00> : vector<16x96xf32>
    %146 = tpu.matmul %127, %134, %cst_45 {dimension_numbers = #tpu.dot_dimension_numbers<[1], [0], [0], [1], [0, 0, 1, 1], [], []>} : vector<16x32xf32>, vector<32x96xf32>, vector<16x96xf32> -> vector<16x96xf32>
    %147 = vector.broadcast %138 : vector<1x96xf32> to vector<16x96xf32>
    %148 = arith.addf %146, %147 : vector<16x96xf32>
    %149 = vector.extract_strided_slice %148 {offsets = [0, 0], sizes = [16, 32], strides = [1, 1]} : vector<16x96xf32> to vector<16x32xf32>
    %150 = vector.extract_strided_slice %149 {offsets = [0, 0], sizes = [16, 8], strides = [1, 1]} : vector<16x32xf32> to vector<16x8xf32>
    %151 = vector.extract_strided_slice %149 {offsets = [0, 8], sizes = [16, 8], strides = [1, 1]} : vector<16x32xf32> to vector<16x8xf32>
    %152 = vector.extract_strided_slice %149 {offsets = [0, 16], sizes = [16, 8], strides = [1, 1]} : vector<16x32xf32> to vector<16x8xf32>
    %153 = vector.extract_strided_slice %149 {offsets = [0, 24], sizes = [16, 8], strides = [1, 1]} : vector<16x32xf32> to vector<16x8xf32>
    %154 = tpu.concatenate %150, %151, %152, %153 in 0 : vector<16x8xf32>, vector<16x8xf32>, vector<16x8xf32>, vector<16x8xf32> -> vector<64x8xf32>
    %155 = vector.extract_strided_slice %148 {offsets = [0, 32], sizes = [16, 32], strides = [1, 1]} : vector<16x96xf32> to vector<16x32xf32>
    %156 = vector.extract_strided_slice %155 {offsets = [0, 0], sizes = [16, 8], strides = [1, 1]} : vector<16x32xf32> to vector<16x8xf32>
    %157 = vector.extract_strided_slice %155 {offsets = [0, 8], sizes = [16, 8], strides = [1, 1]} : vector<16x32xf32> to vector<16x8xf32>
    %158 = vector.extract_strided_slice %155 {offsets = [0, 16], sizes = [16, 8], strides = [1, 1]} : vector<16x32xf32> to vector<16x8xf32>
    %159 = vector.extract_strided_slice %155 {offsets = [0, 24], sizes = [16, 8], strides = [1, 1]} : vector<16x32xf32> to vector<16x8xf32>
    %160 = tpu.concatenate %156, %157, %158, %159 in 0 : vector<16x8xf32>, vector<16x8xf32>, vector<16x8xf32>, vector<16x8xf32> -> vector<64x8xf32>
    %161 = vector.extract_strided_slice %148 {offsets = [0, 64], sizes = [16, 32], strides = [1, 1]} : vector<16x96xf32> to vector<16x32xf32>
    %162 = vector.extract_strided_slice %161 {offsets = [0, 0], sizes = [16, 8], strides = [1, 1]} : vector<16x32xf32> to vector<16x8xf32>
    %163 = vector.extract_strided_slice %161 {offsets = [0, 8], sizes = [16, 8], strides = [1, 1]} : vector<16x32xf32> to vector<16x8xf32>
    %164 = vector.extract_strided_slice %161 {offsets = [0, 16], sizes = [16, 8], strides = [1, 1]} : vector<16x32xf32> to vector<16x8xf32>
    %165 = vector.extract_strided_slice %161 {offsets = [0, 24], sizes = [16, 8], strides = [1, 1]} : vector<16x32xf32> to vector<16x8xf32>
    %166 = tpu.concatenate %162, %163, %164, %165 in 0 : vector<16x8xf32>, vector<16x8xf32>, vector<16x8xf32>, vector<16x8xf32> -> vector<64x8xf32>
    "tpu.trace_start"() <{level = 10 : i32, message = "ik,jk->ij"}> : () -> ()
    %cst_46 = arith.constant dense<0.000000e+00> : vector<64x64xf32>
    %167 = tpu.matmul %154, %160, %cst_46 {dimension_numbers = #tpu.dot_dimension_numbers<[1], [1], [0], [0], [0, 0, 1, 0], [], []>} : vector<64x8xf32>, vector<64x8xf32>, vector<64x64xf32> -> vector<64x64xf32>
    "tpu.trace_stop"() : () -> ()
    %cst_47 = arith.constant 0.353553385 : f32
    %168 = vector.broadcast %cst_47 : f32 to vector<64x64xf32>
    %169 = arith.mulf %167, %168 : vector<64x64xf32>
    %170 = arith.addf %169, %12 : vector<64x64xf32>
    %cst_48 = arith.constant dense<0xFF800000> : vector<64xf32>
    %171 = vector.multi_reduction <maximumf>, %170, %cst_48 [1] : vector<64x64xf32> to vector<64xf32>
    %172 = vector.shape_cast %171 : vector<64xf32> to vector<64x1xf32>
    %173 = vector.broadcast %172 : vector<64x1xf32> to vector<64x64xf32>
    %174 = arith.subf %170, %173 : vector<64x64xf32>
    %175 = math.exp %174 : vector<64x64xf32>
    %cst_49 = arith.constant dense<0.000000e+00> : vector<64xf32>
    %176 = vector.multi_reduction <add>, %175, %cst_49 [1] : vector<64x64xf32> to vector<64xf32>
    %177 = vector.shape_cast %176 : vector<64xf32> to vector<64x1xf32>
    %178 = vector.broadcast %177 : vector<64x1xf32> to vector<64x64xf32>
    %179 = arith.divf %175, %178 : vector<64x64xf32>
    %cst_50 = arith.constant dense<0.000000e+00> : vector<64x8xf32>
    %180 = tpu.matmul %179, %166, %cst_50 {dimension_numbers = #tpu.dot_dimension_numbers<[1], [0], [0], [1], [0, 0, 1, 1], [], []>} : vector<64x64xf32>, vector<64x8xf32>, vector<64x8xf32> -> vector<64x8xf32>
    %181 = vector.extract_strided_slice %180 {offsets = [0, 0], sizes = [16, 8], strides = [1, 1]} : vector<64x8xf32> to vector<16x8xf32>
    %182 = vector.extract_strided_slice %180 {offsets = [16, 0], sizes = [16, 8], strides = [1, 1]} : vector<64x8xf32> to vector<16x8xf32>
    %183 = vector.extract_strided_slice %180 {offsets = [32, 0], sizes = [16, 8], strides = [1, 1]} : vector<64x8xf32> to vector<16x8xf32>
    %184 = vector.extract_strided_slice %180 {offsets = [48, 0], sizes = [16, 8], strides = [1, 1]} : vector<64x8xf32> to vector<16x8xf32>
    %185 = tpu.concatenate %181, %182, %183, %184 in 1 : vector<16x8xf32>, vector<16x8xf32>, vector<16x8xf32>, vector<16x8xf32> -> vector<16x32xf32>
    %cst_51 = arith.constant dense<0.000000e+00> : vector<16x32xf32>
    %186 = tpu.matmul %185, %136, %cst_51 {dimension_numbers = #tpu.dot_dimension_numbers<[1], [0], [0], [1], [0, 0, 1, 1], [], []>} : vector<16x32xf32>, vector<32x32xf32>, vector<16x32xf32> -> vector<16x32xf32>
    %187 = vector.broadcast %139 : vector<1x32xf32> to vector<16x32xf32>
    %188 = arith.addf %186, %187 : vector<16x32xf32>
    %189 = arith.addf %127, %188 : vector<16x32xf32>
    %cst_52 = arith.constant dense<0.000000e+00> : vector<16xf32>
    %190 = vector.multi_reduction <add>, %189, %cst_52 [1] : vector<16x32xf32> to vector<16xf32>
    %191 = vector.shape_cast %190 : vector<16xf32> to vector<16x1xf32>
    %cst_53 = arith.constant 3.200000e+01 : f32
    %192 = vector.broadcast %cst_53 : f32 to vector<16x1xf32>
    %193 = arith.divf %191, %192 : vector<16x1xf32>
    %194 = vector.broadcast %193 : vector<16x1xf32> to vector<16x32xf32>
    %195 = arith.subf %189, %194 : vector<16x32xf32>
    %196 = arith.mulf %195, %195 : vector<16x32xf32>
    %cst_54 = arith.constant dense<0.000000e+00> : vector<16xf32>
    %197 = vector.multi_reduction <add>, %196, %cst_54 [1] : vector<16x32xf32> to vector<16xf32>
    %198 = vector.shape_cast %197 : vector<16xf32> to vector<16x1xf32>
    %cst_55 = arith.constant 3.200000e+01 : f32
    %199 = vector.broadcast %cst_55 : f32 to vector<16x1xf32>
    %200 = arith.divf %198, %199 : vector<16x1xf32>
    %cst_56 = arith.constant 9.99999974E-6 : f32
    %201 = vector.broadcast %cst_56 : f32 to vector<16x1xf32>
    %202 = arith.addf %200, %201 : vector<16x1xf32>
    %203 = math.rsqrt %202 : vector<16x1xf32>
    %204 = vector.broadcast %193 : vector<16x1xf32> to vector<16x32xf32>
    %205 = arith.subf %189, %204 : vector<16x32xf32>
    %206 = vector.broadcast %203 : vector<16x1xf32> to vector<16x32xf32>
    %207 = arith.mulf %205, %206 : vector<16x32xf32>
    %208 = vector.broadcast %142 : vector<1x32xf32> to vector<16x32xf32>
    %209 = arith.mulf %207, %208 : vector<16x32xf32>
    %210 = vector.broadcast %143 : vector<1x32xf32> to vector<16x32xf32>
    %211 = arith.addf %209, %210 : vector<16x32xf32>
    %cst_57 = arith.constant dense<0.000000e+00> : vector<16x64xf32>
    %212 = tpu.matmul %211, %135, %cst_57 {dimension_numbers = #tpu.dot_dimension_numbers<[1], [0], [0], [1], [0, 0, 1, 1], [], []>} : vector<16x32xf32>, vector<32x64xf32>, vector<16x64xf32> -> vector<16x64xf32>
    %213 = vector.broadcast %140 : vector<1x64xf32> to vector<16x64xf32>
    %214 = arith.addf %212, %213 : vector<16x64xf32>
    %cst_58 = arith.constant 0.000000e+00 : f32
    %215 = vector.broadcast %cst_58 : f32 to vector<16x64xf32>
    %216 = arith.maximumf %214, %215 : vector<16x64xf32>
    %cst_59 = arith.constant dense<0.000000e+00> : vector<16x32xf32>
    %217 = tpu.matmul %216, %137, %cst_59 {dimension_numbers = #tpu.dot_dimension_numbers<[1], [0], [0], [1], [0, 0, 1, 1], [], []>} : vector<16x64xf32>, vector<64x32xf32>, vector<16x32xf32> -> vector<16x32xf32>
    %218 = vector.broadcast %141 : vector<1x32xf32> to vector<16x32xf32>
    %219 = arith.addf %217, %218 : vector<16x32xf32>
    %220 = arith.addf %211, %219 : vector<16x32xf32>
    %cst_60 = arith.constant dense<0.000000e+00> : vector<16xf32>
    %221 = vector.multi_reduction <add>, %220, %cst_60 [1] : vector<16x32xf32> to vector<16xf32>
    %222 = vector.shape_cast %221 : vector<16xf32> to vector<16x1xf32>
    %cst_61 = arith.constant 3.200000e+01 : f32
    %223 = vector.broadcast %cst_61 : f32 to vector<16x1xf32>
    %224 = arith.divf %222, %223 : vector<16x1xf32>
    %225 = vector.broadcast %224 : vector<16x1xf32> to vector<16x32xf32>
    %226 = arith.subf %220, %225 : vector<16x32xf32>
    %227 = arith.mulf %226, %226 : vector<16x32xf32>
    %cst_62 = arith.constant dense<0.000000e+00> : vector<16xf32>
    %228 = vector.multi_reduction <add>, %227, %cst_62 [1] : vector<16x32xf32> to vector<16xf32>
    %229 = vector.shape_cast %228 : vector<16xf32> to vector<16x1xf32>
    %cst_63 = arith.constant 3.200000e+01 : f32
    %230 = vector.broadcast %cst_63 : f32 to vector<16x1xf32>
    %231 = arith.divf %229, %230 : vector<16x1xf32>
    %cst_64 = arith.constant 9.99999974E-6 : f32
    %232 = vector.broadcast %cst_64 : f32 to vector<16x1xf32>
    %233 = arith.addf %231, %232 : vector<16x1xf32>
    %234 = math.rsqrt %233 : vector<16x1xf32>
    %235 = vector.broadcast %224 : vector<16x1xf32> to vector<16x32xf32>
    %236 = arith.subf %220, %235 : vector<16x32xf32>
    %237 = vector.broadcast %234 : vector<16x1xf32> to vector<16x32xf32>
    %238 = arith.mulf %236, %237 : vector<16x32xf32>
    %239 = vector.broadcast %144 : vector<1x32xf32> to vector<16x32xf32>
    %240 = arith.mulf %238, %239 : vector<16x32xf32>
    %241 = vector.broadcast %145 : vector<1x32xf32> to vector<16x32xf32>
    %242 = arith.addf %240, %241 : vector<16x32xf32>
    %c2 = arith.constant 2 : index
    %c0_65 = arith.constant 0 : index
    %c0_66 = arith.constant 0 : index
    %243 = vector.load %arg7[%c2, %c0_65, %c0_66] : memref<3x8x96xf32, #tpu.memory_space<vmem>>, vector<1x8x96xf32>
    %244 = vector.shape_cast %243 : vector<1x8x96xf32> to vector<8x96xf32>
    %245 = vector.extract_strided_slice %244 {offsets = [0, 0], sizes = [1, 32], strides = [1, 1]} : vector<8x96xf32> to vector<1x32xf32>
    %246 = vector.extract_strided_slice %244 {offsets = [1, 0], sizes = [1, 32], strides = [1, 1]} : vector<8x96xf32> to vector<1x32xf32>
    %cst_67 = arith.constant dense<0.000000e+00> : vector<16xf32>
    %247 = vector.multi_reduction <add>, %242, %cst_67 [1] : vector<16x32xf32> to vector<16xf32>
    %248 = vector.shape_cast %247 : vector<16xf32> to vector<16x1xf32>
    %cst_68 = arith.constant 3.200000e+01 : f32
    %249 = vector.broadcast %cst_68 : f32 to vector<16x1xf32>
    %250 = arith.divf %248, %249 : vector<16x1xf32>
    %251 = vector.broadcast %250 : vector<16x1xf32> to vector<16x32xf32>
    %252 = arith.subf %242, %251 : vector<16x32xf32>
    %253 = arith.mulf %252, %252 : vector<16x32xf32>
    %cst_69 = arith.constant dense<0.000000e+00> : vector<16xf32>
    %254 = vector.multi_reduction <add>, %253, %cst_69 [1] : vector<16x32xf32> to vector<16xf32>
    %255 = vector.shape_cast %254 : vector<16xf32> to vector<16x1xf32>
    %cst_70 = arith.constant 3.200000e+01 : f32
    %256 = vector.broadcast %cst_70 : f32 to vector<16x1xf32>
    %257 = arith.divf %255, %256 : vector<16x1xf32>
    %cst_71 = arith.constant 9.99999974E-6 : f32
    %258 = vector.broadcast %cst_71 : f32 to vector<16x1xf32>
    %259 = arith.addf %257, %258 : vector<16x1xf32>
    %260 = math.rsqrt %259 : vector<16x1xf32>
    %261 = vector.broadcast %250 : vector<16x1xf32> to vector<16x32xf32>
    %262 = arith.subf %242, %261 : vector<16x32xf32>
    %263 = vector.broadcast %260 : vector<16x1xf32> to vector<16x32xf32>
    %264 = arith.mulf %262, %263 : vector<16x32xf32>
    %265 = vector.broadcast %245 : vector<1x32xf32> to vector<16x32xf32>
    %266 = arith.mulf %264, %265 : vector<16x32xf32>
    %267 = vector.broadcast %246 : vector<1x32xf32> to vector<16x32xf32>
    %268 = arith.addf %266, %267 : vector<16x32xf32>
    %c0_72 = arith.constant 0 : index
    %c0_73 = arith.constant 0 : index
    %269 = vector.load %arg8[%c0_72, %c0_73] : memref<16x32xf32, #tpu.memory_space<vmem>>, vector<16x32xf32>
    tpu.vector_store %arg8[%c0_72, %c0_73], %268 {strides = array<i32>} : memref<16x32xf32, #tpu.memory_space<vmem>>, vector<16x32xf32>,
    return
  }
  func.func @transform_0(%arg0: i32) -> (i32, i32) {
    %c0_i32 = arith.constant 0 : i32
    %c0_i32_0 = arith.constant 0 : i32
    %c0_i32_1 = arith.constant 0 : i32
    return %c0_i32, %c0_i32_0 : i32, i32
  }
  func.func @transform_1(%arg0: i32) -> (i32, i32) {
    %c0_i32 = arith.constant 0 : i32
    %c0_i32_0 = arith.constant 0 : i32
    %c0_i32_1 = arith.constant 0 : i32
    return %c0_i32, %c0_i32_0 : i32, i32
  }
  func.func @transform_2(%arg0: i32) -> (i32, i32) {
    %c0_i32 = arith.constant 0 : i32
    %c0_i32_0 = arith.constant 0 : i32
    %c0_i32_1 = arith.constant 0 : i32
    return %c0_i32, %c0_i32_0 : i32, i32
  }
  func.func @transform_3(%arg0: i32) -> (i32, i32) {
    %c0_i32 = arith.constant 0 : i32
    %c0_i32_0 = arith.constant 0 : i32
    %c0_i32_1 = arith.constant 0 : i32
    return %c0_i32, %c0_i32_0 : i32, i32
  }
  func.func @transform_4(%arg0: i32) -> (i32, i32, i32) {
    %c0_i32 = arith.constant 0 : i32
    %c0_i32_0 = arith.constant 0 : i32
    %c0_i32_1 = arith.constant 0 : i32
    %c0_i32_2 = arith.constant 0 : i32
    return %c0_i32, %c0_i32_0, %c0_i32_1 : i32, i32, i32
  }
  func.func @transform_5(%arg0: i32) -> (i32, i32, i32) {
    %c0_i32 = arith.constant 0 : i32
    %c0_i32_0 = arith.constant 0 : i32
    %c0_i32_1 = arith.constant 0 : i32
    %c0_i32_2 = arith.constant 0 : i32
    return %c0_i32, %c0_i32_0, %c0_i32_1 : i32, i32, i32
  }
  func.func @transform_6(%arg0: i32) -> (i32, i32, i32) {
    %c0_i32 = arith.constant 0 : i32
    %c0_i32_0 = arith.constant 0 : i32
    %c0_i32_1 = arith.constant 0 : i32
    %c0_i32_2 = arith.constant 0 : i32
    return %c0_i32, %c0_i32_0, %c0_i32_1 : i32, i32, i32
  }
  func.func @transform_7(%arg0: i32) -> (i32, i32) {
    %c0_i32 = arith.constant 0 : i32
    %c0_i32_0 = arith.constant 0 : i32
    %c0_i32_1 = arith.constant 0 : i32
    return %c0_i32, %c0_i32_0 : i32, i32
  }
}

</mosaic_0001>

<llo_original>
// kernel: tile.18
$region0: #{tile.18}
  #allocation0 [shape = 's32[1]{0}', space=sflag, size = 0x4, scoped, tag = 'scoped memory for tile.18']
  %s0 = inlined_call_operand.vmem [shape: pred[16,16], index: 0, kind: input, shape index: {}]
  %s1 = inlined_call_operand.vmem [shape: pred[4,16,4,16], index: 1, kind: output, shape index: {}]
  // Predicated region
  $region2: #{tile.18} parent=0 // pred_check
    _
  $region3: #{tile.18} parent=0 // pred_check_branch
    %3 = sbr.rel (0) target = $region5
  $region4: #{tile.18} parent=0 // pred_region
    _
  $region5: #{tile.18} parent=0 // pred_fallthru
    _
  %v4 = vld [vmem:[%s0] ss:$0 sm:$0xff]
  %v6 = vshra.s32 %v4, 0
  %v7 = vand.u32 %v6, 255
  %v8 = vpack.c.b16 0, %v7
  %v9 = vpack.c.b8 0, %v8
  %11 = vst [vmem:[%s1] sm:$0x1] %v9
  %s12 = scalar_lea.vmem %s1, 16
  %v13 = vpack.c.b16 0, %v7
  %v14 = vpack.c.b8 0, %v13
  %16 = vst [vmem:[%s12] sm:$0x1] %v14
  %s17 = scalar_lea.vmem %s1, 32
  %v18 = vpack.c.b16 0, %v7
  %v19 = vpack.c.b8 0, %v18
  %21 = vst [vmem:[%s17] sm:$0x1] %v19
  %s22 = scalar_lea.vmem %s1, 48
  %v23 = vpack.c.b16 0, %v7
  %v24 = vpack.c.b8 0, %v23
  %26 = vst [vmem:[%s22] sm:$0x1] %v24
  %v27 = vld [vmem:[%s0] ss:$0 sm:$0xff]
  %v29 = vshra.s32 %v27, 8
  %v30 = vand.u32 %v29, 255
  %s31 = scalar_lea.vmem %s1, 1
  %v32 = vpack.c.b16 0, %v30
  %v33 = vpack.c.b8 0, %v32
  %35 = vst [vmem:[%s31] sm:$0x1] %v33
  %s36 = scalar_lea.vmem %s1, 17
  %v37 = vpack.c.b16 0, %v30
  %v38 = vpack.c.b8 0, %v37
  %40 = vst [vmem:[%s36] sm:$0x1] %v38
  %s41 = scalar_lea.vmem %s1, 33
  %v42 = vpack.c.b16 0, %v30
  %v43 = vpack.c.b8 0, %v42
  %45 = vst [vmem:[%s41] sm:$0x1] %v43
  %s46 = scalar_lea.vmem %s1, 49
  %v47 = vpack.c.b16 0, %v30
  %v48 = vpack.c.b8 0, %v47
  %50 = vst [vmem:[%s46] sm:$0x1] %v48
  %v51 = vld [vmem:[%s0] ss:$0 sm:$0xff]
  %v53 = vshra.s32 %v51, 16
  %v54 = vand.u32 %v53, 255
  %s55 = scalar_lea.vmem %s1, 2
  %v56 = vpack.c.b16 0, %v54
  %v57 = vpack.c.b8 0, %v56
  %59 = vst [vmem:[%s55] sm:$0x1] %v57
  %s60 = scalar_lea.vmem %s1, 18
  %v61 = vpack.c.b16 0, %v54
  %v62 = vpack.c.b8 0, %v61
  %64 = vst [vmem:[%s60] sm:$0x1] %v62
  %s65 = scalar_lea.vmem %s1, 34
  %v66 = vpack.c.b16 0, %v54
  %v67 = vpack.c.b8 0, %v66
  %69 = vst [vmem:[%s65] sm:$0x1] %v67
  %s70 = scalar_lea.vmem %s1, 50
  %v71 = vpack.c.b16 0, %v54
  %v72 = vpack.c.b8 0, %v71
  %74 = vst [vmem:[%s70] sm:$0x1] %v72
  %v75 = vld [vmem:[%s0] ss:$0 sm:$0xff]
  %v77 = vshra.s32 %v75, 24
  %v78 = vand.u32 %v77, 255
  %s79 = scalar_lea.vmem %s1, 3
  %v80 = vpack.c.b16 0, %v78
  %v81 = vpack.c.b8 0, %v80
  %83 = vst [vmem:[%s79] sm:$0x1] %v81
  %s84 = scalar_lea.vmem %s1, 19
  %v85 = vpack.c.b16 0, %v78
  %v86 = vpack.c.b8 0, %v85
  %88 = vst [vmem:[%s84] sm:$0x1] %v86
  %s89 = scalar_lea.vmem %s1, 35
  %v90 = vpack.c.b16 0, %v78
  %v91 = vpack.c.b8 0, %v90
  %93 = vst [vmem:[%s89] sm:$0x1] %v91
  %s94 = scalar_lea.vmem %s1, 51
  %v95 = vpack.c.b16 0, %v78
  %v96 = vpack.c.b8 0, %v95
  %98 = vst [vmem:[%s94] sm:$0x1] %v96
  %s99 = scalar_lea.vmem %s0, 1
  %v100 = vld [vmem:[%s99] ss:$0 sm:$0xff]
  %v102 = vshra.s32 %v100, 0
  %v103 = vand.u32 %v102, 255
  %s104 = scalar_lea.vmem %s1, 4
  %v105 = vpack.c.b16 0, %v103
  %v106 = vpack.c.b8 0, %v105
  %108 = vst [vmem:[%s104] sm:$0x1] %v106
  %s109 = scalar_lea.vmem %s1, 20
  %v110 = vpack.c.b16 0, %v103
  %v111 = vpack.c.b8 0, %v110
  %113 = vst [vmem:[%s109] sm:$0x1] %v111
  %s114 = scalar_lea.vmem %s1, 36
  %v115 = vpack.c.b16 0, %v103
  %v116 = vpack.c.b8 0, %v115
  %118 = vst [vmem:[%s114] sm:$0x1] %v116
  %s119 = scalar_lea.vmem %s1, 52
  %v120 = vpack.c.b16 0, %v103
  %v121 = vpack.c.b8 0, %v120
  %123 = vst [vmem:[%s119] sm:$0x1] %v121
  %s124 = scalar_lea.vmem %s0, 1
  %v125 = vld [vmem:[%s124] ss:$0 sm:$0xff]
  %v127 = vshra.s32 %v125, 8
  %v128 = vand.u32 %v127, 255
  %s129 = scalar_lea.vmem %s1, 5
  %v130 = vpack.c.b16 0, %v128
  %v131 = vpack.c.b8 0, %v130
  %133 = vst [vmem:[%s129] sm:$0x1] %v131
  %s134 = scalar_lea.vmem %s1, 21
  %v135 = vpack.c.b16 0, %v128
  %v136 = vpack.c.b8 0, %v135
  %138 = vst [vmem:[%s134] sm:$0x1] %v136
  %s139 = scalar_lea.vmem %s1, 37
  %v140 = vpack.c.b16 0, %v128
  %v141 = vpack.c.b8 0, %v140
  %143 = vst [vmem:[%s139] sm:$0x1] %v141
  %s144 = scalar_lea.vmem %s1, 53
  %v145 = vpack.c.b16 0, %v128
  %v146 = vpack.c.b8 0, %v145
  %148 = vst [vmem:[%s144] sm:$0x1] %v146
  %s149 = scalar_lea.vmem %s0, 1
  %v150 = vld [vmem:[%s149] ss:$0 sm:$0xff]
  %v152 = vshra.s32 %v150, 16
  %v153 = vand.u32 %v152, 255
  %s154 = scalar_lea.vmem %s1, 6
  %v155 = vpack.c.b16 0, %v153
  %v156 = vpack.c.b8 0, %v155
  %158 = vst [vmem:[%s154] sm:$0x1] %v156
  %s159 = scalar_lea.vmem %s1, 22
  %v160 = vpack.c.b16 0, %v153
  %v161 = vpack.c.b8 0, %v160
  %163 = vst [vmem:[%s159] sm:$0x1] %v161
  %s164 = scalar_lea.vmem %s1, 38
  %v165 = vpack.c.b16 0, %v153
  %v166 = vpack.c.b8 0, %v165
  %168 = vst [vmem:[%s164] sm:$0x1] %v166
  %s169 = scalar_lea.vmem %s1, 54
  %v170 = vpack.c.b16 0, %v153
  %v171 = vpack.c.b8 0, %v170
  %173 = vst [vmem:[%s169] sm:$0x1] %v171
  %s174 = scalar_lea.vmem %s0, 1
  %v175 = vld [vmem:[%s174] ss:$0 sm:$0xff]
  %v177 = vshra.s32 %v175, 24
  %v178 = vand.u32 %v177, 255
  %s179 = scalar_lea.vmem %s1, 7
  %v180 = vpack.c.b16 0, %v178
  %v181 = vpack.c.b8 0, %v180
  %183 = vst [vmem:[%s179] sm:$0x1] %v181
  %s184 = scalar_lea.vmem %s1, 23
  %v185 = vpack.c.b16 0, %v178
  %v186 = vpack.c.b8 0, %v185
  %188 = vst [vmem:[%s184] sm:$0x1] %v186
  %s189 = scalar_lea.vmem %s1, 39
  %v190 = vpack.c.b16 0, %v178
  %v191 = vpack.c.b8 0, %v190
  %193 = vst [vmem:[%s189] sm:$0x1] %v191
  %s194 = scalar_lea.vmem %s1, 55
  %v195 = vpack.c.b16 0, %v178
  %v196 = vpack.c.b8 0, %v195
  %198 = vst [vmem:[%s194] sm:$0x1] %v196
  %s199 = scalar_lea.vmem %s0, 2
  %v200 = vld [vmem:[%s199] ss:$0 sm:$0xff]
  %v202 = vshra.s32 %v200, 0
  %v203 = vand.u32 %v202, 255
  %s204 = scalar_lea.vmem %s1, 8
  %v205 = vpack.c.b16 0, %v203
  %v206 = vpack.c.b8 0, %v205
  %208 = vst [vmem:[%s204] sm:$0x1] %v206
  %s209 = scalar_lea.vmem %s1, 24
  %v210 = vpack.c.b16 0, %v203
  %v211 = vpack.c.b8 0, %v210
  %213 = vst [vmem:[%s209] sm:$0x1] %v211
  %s214 = scalar_lea.vmem %s1, 40
  %v215 = vpack.c.b16 0, %v203
  %v216 = vpack.c.b8 0, %v215
  %218 = vst [vmem:[%s214] sm:$0x1] %v216
  %s219 = scalar_lea.vmem %s1, 56
  %v220 = vpack.c.b16 0, %v203
  %v221 = vpack.c.b8 0, %v220
  %223 = vst [vmem:[%s219] sm:$0x1] %v221
  %s224 = scalar_lea.vmem %s0, 2
  %v225 = vld [vmem:[%s224] ss:$0 sm:$0xff]
  %v227 = vshra.s32 %v225, 8
  %v228 = vand.u32 %v227, 255
  %s229 = scalar_lea.vmem %s1, 9
  %v230 = vpack.c.b16 0, %v228
  %v231 = vpack.c.b8 0, %v230
  %233 = vst [vmem:[%s229] sm:$0x1] %v231
  %s234 = scalar_lea.vmem %s1, 25
  %v235 = vpack.c.b16 0, %v228
  %v236 = vpack.c.b8 0, %v235
  %238 = vst [vmem:[%s234] sm:$0x1] %v236
  %s239 = scalar_lea.vmem %s1, 41
  %v240 = vpack.c.b16 0, %v228
  %v241 = vpack.c.b8 0, %v240
  %243 = vst [vmem:[%s239] sm:$0x1] %v241
  %s244 = scalar_lea.vmem %s1, 57
  %v245 = vpack.c.b16 0, %v228
  %v246 = vpack.c.b8 0, %v245
  %248 = vst [vmem:[%s244] sm:$0x1] %v246
  %s249 = scalar_lea.vmem %s0, 2
  %v250 = vld [vmem:[%s249] ss:$0 sm:$0xff]
  %v252 = vshra.s32 %v250, 16
  %v253 = vand.u32 %v252, 255
  %s254 = scalar_lea.vmem %s1, 10
  %v255 = vpack.c.b16 0, %v253
  %v256 = vpack.c.b8 0, %v255
  %258 = vst [vmem:[%s254] sm:$0x1] %v256
  %s259 = scalar_lea.vmem %s1, 26
  %v260 = vpack.c.b16 0, %v253
  %v261 = vpack.c.b8 0, %v260
  %263 = vst [vmem:[%s259] sm:$0x1] %v261
  %s264 = scalar_lea.vmem %s1, 42
  %v265 = vpack.c.b16 0, %v253
  %v266 = vpack.c.b8 0, %v265
  %268 = vst [vmem:[%s264] sm:$0x1] %v266
  %s269 = scalar_lea.vmem %s1, 58
  %v270 = vpack.c.b16 0, %v253
  %v271 = vpack.c.b8 0, %v270
  %273 = vst [vmem:[%s269] sm:$0x1] %v271
  %s274 = scalar_lea.vmem %s0, 2
  %v275 = vld [vmem:[%s274] ss:$0 sm:$0xff]
  %v277 = vshra.s32 %v275, 24
  %v278 = vand.u32 %v277, 255
  %s279 = scalar_lea.vmem %s1, 11
  %v280 = vpack.c.b16 0, %v278
  %v281 = vpack.c.b8 0, %v280
  %283 = vst [vmem:[%s279] sm:$0x1] %v281
  %s284 = scalar_lea.vmem %s1, 27
  %v285 = vpack.c.b16 0, %v278
  %v286 = vpack.c.b8 0, %v285
  %288 = vst [vmem:[%s284] sm:$0x1] %v286
  %s289 = scalar_lea.vmem %s1, 43
  %v290 = vpack.c.b16 0, %v278
  %v291 = vpack.c.b8 0, %v290
  %293 = vst [vmem:[%s289] sm:$0x1] %v291
  %s294 = scalar_lea.vmem %s1, 59
  %v295 = vpack.c.b16 0, %v278
  %v296 = vpack.c.b8 0, %v295
  %298 = vst [vmem:[%s294] sm:$0x1] %v296
  %s299 = scalar_lea.vmem %s0, 2
  %s300 = scalar_lea.vmem %s299, 1
  %v301 = vld [vmem:[%s300] ss:$0 sm:$0xff]
  %v303 = vshra.s32 %v301, 0
  %v304 = vand.u32 %v303, 255
  %s305 = scalar_lea.vmem %s1, 12
  %v306 = vpack.c.b16 0, %v304
  %v307 = vpack.c.b8 0, %v306
  %309 = vst [vmem:[%s305] sm:$0x1] %v307
  %s310 = scalar_lea.vmem %s1, 28
  %v311 = vpack.c.b16 0, %v304
  %v312 = vpack.c.b8 0, %v311
  %314 = vst [vmem:[%s310] sm:$0x1] %v312
  %s315 = scalar_lea.vmem %s1, 44
  %v316 = vpack.c.b16 0, %v304
  %v317 = vpack.c.b8 0, %v316
  %319 = vst [vmem:[%s315] sm:$0x1] %v317
  %s320 = scalar_lea.vmem %s1, 60
  %v321 = vpack.c.b16 0, %v304
  %v322 = vpack.c.b8 0, %v321
  %324 = vst [vmem:[%s320] sm:$0x1] %v322
  %s325 = scalar_lea.vmem %s0, 2
  %s326 = scalar_lea.vmem %s325, 1
  %v327 = vld [vmem:[%s326] ss:$0 sm:$0xff]
  %v329 = vshra.s32 %v327, 8
  %v330 = vand.u32 %v329, 255
  %s331 = scalar_lea.vmem %s1, 13
  %v332 = vpack.c.b16 0, %v330
  %v333 = vpack.c.b8 0, %v332
  %335 = vst [vmem:[%s331] sm:$0x1] %v333
  %s336 = scalar_lea.vmem %s1, 29
  %v337 = vpack.c.b16 0, %v330
  %v338 = vpack.c.b8 0, %v337
  %340 = vst [vmem:[%s336] sm:$0x1] %v338
  %s341 = scalar_lea.vmem %s1, 45
  %v342 = vpack.c.b16 0, %v330
  %v343 = vpack.c.b8 0, %v342
  %345 = vst [vmem:[%s341] sm:$0x1] %v343
  %s346 = scalar_lea.vmem %s1, 61
  %v347 = vpack.c.b16 0, %v330
  %v348 = vpack.c.b8 0, %v347
  %350 = vst [vmem:[%s346] sm:$0x1] %v348
  %s351 = scalar_lea.vmem %s0, 2
  %s352 = scalar_lea.vmem %s351, 1
  %v353 = vld [vmem:[%s352] ss:$0 sm:$0xff]
  %v355 = vshra.s32 %v353, 16
  %v356 = vand.u32 %v355, 255
  %s357 = scalar_lea.vmem %s1, 14
  %v358 = vpack.c.b16 0, %v356
  %v359 = vpack.c.b8 0, %v358
  %361 = vst [vmem:[%s357] sm:$0x1] %v359
  %s362 = scalar_lea.vmem %s1, 30
  %v363 = vpack.c.b16 0, %v356
  %v364 = vpack.c.b8 0, %v363
  %366 = vst [vmem:[%s362] sm:$0x1] %v364
  %s367 = scalar_lea.vmem %s1, 46
  %v368 = vpack.c.b16 0, %v356
  %v369 = vpack.c.b8 0, %v368
  %371 = vst [vmem:[%s367] sm:$0x1] %v369
  %s372 = scalar_lea.vmem %s1, 62
  %v373 = vpack.c.b16 0, %v356
  %v374 = vpack.c.b8 0, %v373
  %376 = vst [vmem:[%s372] sm:$0x1] %v374
  %s377 = scalar_lea.vmem %s0, 2
  %s378 = scalar_lea.vmem %s377, 1
  %v379 = vld [vmem:[%s378] ss:$0 sm:$0xff]
  %v381 = vshra.s32 %v379, 24
  %v382 = vand.u32 %v381, 255
  %s383 = scalar_lea.vmem %s1, 15
  %v384 = vpack.c.b16 0, %v382
  %v385 = vpack.c.b8 0, %v384
  %387 = vst [vmem:[%s383] sm:$0x1] %v385
  %s388 = scalar_lea.vmem %s1, 31
  %v389 = vpack.c.b16 0, %v382
  %v390 = vpack.c.b8 0, %v389
  %392 = vst [vmem:[%s388] sm:$0x1] %v390
  %s393 = scalar_lea.vmem %s1, 47
  %v394 = vpack.c.b16 0, %v382
  %v395 = vpack.c.b8 0, %v394
  %397 = vst [vmem:[%s393] sm:$0x1] %v395
  %s398 = scalar_lea.vmem %s1, 63
  %v399 = vpack.c.b16 0, %v382
  %v400 = vpack.c.b8 0, %v399
  %402 = vst [vmem:[%s398] sm:$0x1] %v400

// kernel: tile.19
$region0: #{tile.19}
  %s0 = inlined_call_operand.vmem [shape: pred[4,16,4,16], index: 0, kind: input, shape index: {}]
  %s1 = inlined_call_operand.vmem [shape: pred[64,64], index: 1, kind: output, shape index: {}]
  $region1: #{tile.19} parent=0
    #allocation0 [shape = 'u8[32768]{0}', space=vmem, size = 0x8000, scoped, tag = 'scoped mem for output reshape']
    #allocation1 [shape = 'u8[262144]{0}', space=vmem, size = 0x40000, scoped, tag = 'scoped mem for input reshape']
    %s3 = smul.u32 1, 4
    %s4 = sshllo.u32 0, %s3
    %s5 = sand.u32 %s4, 15
    %p6 = scmp.ne.s32.totalorder %s5, 0
    %s7 = scalar_select %p6, 1, 0
    %s8 = sand.u32 %s4, 240
    %p9 = scmp.ne.s32.totalorder %s8, 0
    %s10 = scalar_select %p9, 2, 0
    %s11 = sor.u32 %s7, %s10
    %s12 = smul.addr 1, 63
    %s13 = scalar_lea.vmem %s0, %s12
    %v14 = vld [vmem:[%s13] sm:%s11]
    %v15 = vunpack.c.0.s8 %v14
    %v16 = vunpack.c.1.s8 %v14
    %v17 = vunpack.c.2.s8 %v14
    %v18 = vunpack.c.3.s8 %v14
    %s19 = scalar_lea.vmem [#allocation1], 504
    %20 = vst [vmem:[%s19] sm:%s4] %v15
    %s21 = sand.u32 %s4, 15
    %p22 = scmp.ne.s32.totalorder %s21, 0
    %s23 = scalar_select %p22, 1, 0
    %s24 = sand.u32 %s4, 240
    %p25 = scmp.ne.s32.totalorder %s24, 0
    %s26 = scalar_select %p25, 2, 0
    %s27 = sor.u32 %s23, %s26
    %s28 = smul.addr 1, 62
    %s29 = scalar_lea.vmem %s0, %s28
    %v30 = vld [vmem:[%s29] sm:%s27]
    %v31 = vunpack.c.0.s8 %v30
    %v32 = vunpack.c.1.s8 %v30
    %v33 = vunpack.c.2.s8 %v30
    %v34 = vunpack.c.3.s8 %v30
    %s35 = scalar_lea.vmem [#allocation1], 496
    %36 = vst [vmem:[%s35] sm:%s4] %v31
    %s37 = sand.u32 %s4, 15
    %p38 = scmp.ne.s32.totalorder %s37, 0
    %s39 = scalar_select %p38, 1, 0
    %s40 = sand.u32 %s4, 240
    %p41 = scmp.ne.s32.totalorder %s40, 0
    %s42 = scalar_select %p41, 2, 0
    %s43 = sor.u32 %s39, %s42
    %s44 = smul.addr 1, 61
    %s45 = scalar_lea.vmem %s0, %s44
    %v46 = vld [vmem:[%s45] sm:%s43]
    %v47 = vunpack.c.0.s8 %v46
    %v48 = vunpack.c.1.s8 %v46
    %v49 = vunpack.c.2.s8 %v46
    %v50 = vunpack.c.3.s8 %v46
    %s51 = scalar_lea.vmem [#allocation1], 488
    %52 = vst [vmem:[%s51] sm:%s4] %v47
    %s53 = sand.u32 %s4, 15
    %p54 = scmp.ne.s32.totalorder %s53, 0
    %s55 = scalar_select %p54, 1, 0
    %s56 = sand.u32 %s4, 240
    %p57 = scmp.ne.s32.totalorder %s56, 0
    %s58 = scalar_select %p57, 2, 0
    %s59 = sor.u32 %s55, %s58
    %s60 = smul.addr 1, 60
    %s61 = scalar_lea.vmem %s0, %s60
    %v62 = vld [vmem:[%s61] sm:%s59]
    %v63 = vunpack.c.0.s8 %v62
    %v64 = vunpack.c.1.s8 %v62
    %v65 = vunpack.c.2.s8 %v62
    %v66 = vunpack.c.3.s8 %v62
    %s67 = scalar_lea.vmem [#allocation1], 480
    %68 = vst [vmem:[%s67] sm:%s4] %v63
    %s69 = sand.u32 %s4, 15
    %p70 = scmp.ne.s32.totalorder %s69, 0
    %s71 = scalar_select %p70, 1, 0
    %s72 = sand.u32 %s4, 240
    %p73 = scmp.ne.s32.totalorder %s72, 0
    %s74 = scalar_select %p73, 2, 0
    %s75 = sor.u32 %s71, %s74
    %s76 = smul.addr 1, 59
    %s77 = scalar_lea.vmem %s0, %s76
    %v78 = vld [vmem:[%s77] sm:%s75]
    %v79 = vunpack.c.0.s8 %v78
    %v80 = vunpack.c.1.s8 %v78
    %v81 = vunpack.c.2.s8 %v78
    %v82 = vunpack.c.3.s8 %v78
    %s83 = scalar_lea.vmem [#allocation1], 472
    %84 = vst [vmem:[%s83] sm:%s4] %v79
    %s85 = sand.u32 %s4, 15
    %p86 = scmp.ne.s32.totalorder %s85, 0
    %s87 = scalar_select %p86, 1, 0
    %s88 = sand.u32 %s4, 240
    %p89 = scmp.ne.s32.totalorder %s88, 0
    %s90 = scalar_select %p89, 2, 0
    %s91 = sor.u32 %s87, %s90
    %s92 = smul.addr 1, 58
    %s93 = scalar_lea.vmem %s0, %s92
    %v94 = vld [vmem:[%s93] sm:%s91]
    %v95 = vunpack.c.0.s8 %v94
    %v96 = vunpack.c.1.s8 %v94
    %v97 = vunpack.c.2.s8 %v94
    %v98 = vunpack.c.3.s8 %v94
    %s99 = scalar_lea.vmem [#allocation1], 464
    %100 = vst [vmem:[%s99] sm:%s4] %v95
    %s101 = sand.u32 %s4, 15
    %p102 = scmp.ne.s32.totalorder %s101, 0
    %s103 = scalar_select %p102, 1, 0
    %s104 = sand.u32 %s4, 240
    %p105 = scmp.ne.s32.totalorder %s104, 0
    %s106 = scalar_select %p105, 2, 0
    %s107 = sor.u32 %s103, %s106
    %s108 = smul.addr 1, 57
    %s109 = scalar_lea.vmem %s0, %s108
    %v110 = vld [vmem:[%s109] sm:%s107]
    %v111 = vunpack.c.0.s8 %v110
    %v112 = vunpack.c.1.s8 %v110
    %v113 = vunpack.c.2.s8 %v110
    %v114 = vunpack.c.3.s8 %v110
    %s115 = scalar_lea.vmem [#allocation1], 456
    %116 = vst [vmem:[%s115] sm:%s4] %v111
    %s117 = sand.u32 %s4, 15
    %p118 = scmp.ne.s32.totalorder %s117, 0
    %s119 = scalar_select %p118, 1, 0
    %s120 = sand.u32 %s4, 240
    %p121 = scmp.ne.s32.totalorder %s120, 0
    %s122 = scalar_select %p121, 2, 0
    %s123 = sor.u32 %s119, %s122
    %s124 = smul.addr 1, 56
    %s125 = scalar_lea.vmem %s0, %s124
    %v126 = vld [vmem:[%s125] sm:%s123]
    %v127 = vunpack.c.0.s8 %v126
    %v128 = vunpack.c.1.s8 %v126
    %v129 = vunpack.c.2.s8 %v126
    %v130 = vunpack.c.3.s8 %v126
    %s131 = scalar_lea.vmem [#allocation1], 448
    %132 = vst [vmem:[%s131] sm:%s4] %v127
    %s133 = sand.u32 %s4, 15
    %p134 = scmp.ne.s32.totalorder %s133, 0
    %s135 = scalar_select %p134, 1, 0
    %s136 = sand.u32 %s4, 240
    %p137 = scmp.ne.s32.totalorder %s136, 0
    %s138 = scalar_select %p137, 2, 0
    %s139 = sor.u32 %s135, %s138
    %s140 = smul.addr 1, 55
    %s141 = scalar_lea.vmem %s0, %s140
    %v142 = vld [vmem:[%s141] sm:%s139]
    %v143 = vunpack.c.0.s8 %v142
    %v144 = vunpack.c.1.s8 %v142
    %v145 = vunpack.c.2.s8 %v142
    %v146 = vunpack.c.3.s8 %v142
    %s147 = scalar_lea.vmem [#allocation1], 440
    %148 = vst [vmem:[%s147] sm:%s4] %v143
    %s149 = sand.u32 %s4, 15
    %p150 = scmp.ne.s32.totalorder %s149, 0
    %s151 = scalar_select %p150, 1, 0
    %s152 = sand.u32 %s4, 240
    %p153 = scmp.ne.s32.totalorder %s152, 0
    %s154 = scalar_select %p153, 2, 0
    %s155 = sor.u32 %s151, %s154
    %s156 = smul.addr 1, 54
    %s157 = scalar_lea.vmem %s0, %s156
    %v158 = vld [vmem:[%s157] sm:%s155]
    %v159 = vunpack.c.0.s8 %v158
    %v160 = vunpack.c.1.s8 %v158
    %v161 = vunpack.c.2.s8 %v158
    %v162 = vunpack.c.3.s8 %v158
    %s163 = scalar_lea.vmem [#allocation1], 432
    %164 = vst [vmem:[%s163] sm:%s4] %v159
    %s165 = sand.u32 %s4, 15
    %p166 = scmp.ne.s32.totalorder %s165, 0
    %s167 = scalar_select %p166, 1, 0
    %s168 = sand.u32 %s4, 240
    %p169 = scmp.ne.s32.totalorder %s168, 0
    %s170 = scalar_select %p169, 2, 0
    %s171 = sor.u32 %s167, %s170
    %s172 = smul.addr 1, 53
    %s173 = scalar_lea.vmem %s0, %s172
    %v174 = vld [vmem:[%s173] sm:%s171]
    %v175 = vunpack.c.0.s8 %v174
    %v176 = vunpack.c.1.s8 %v174
    %v177 = vunpack.c.2.s8 %v174
    %v178 = vunpack.c.3.s8 %v174
    %s179 = scalar_lea.vmem [#allocation1], 424
    %180 = vst [vmem:[%s179] sm:%s4] %v175
    %s181 = sand.u32 %s4, 15
    %p182 = scmp.ne.s32.totalorder %s181, 0
    %s183 = scalar_select %p182, 1, 0
    %s184 = sand.u32 %s4, 240
    %p185 = scmp.ne.s32.totalorder %s184, 0
    %s186 = scalar_select %p185, 2, 0
    %s187 = sor.u32 %s183, %s186
    %s188 = smul.addr 1, 52
    %s189 = scalar_lea.vmem %s0, %s188
    %v190 = vld [vmem:[%s189] sm:%s187]
    %v191 = vunpack.c.0.s8 %v190
    %v192 = vunpack.c.1.s8 %v190
    %v193 = vunpack.c.2.s8 %v190
    %v194 = vunpack.c.3.s8 %v190
    %s195 = scalar_lea.vmem [#allocation1], 416
    %196 = vst [vmem:[%s195] sm:%s4] %v191
    %s197 = sand.u32 %s4, 15
    %p198 = scmp.ne.s32.totalorder %s197, 0
    %s199 = scalar_select %p198, 1, 0
    %s200 = sand.u32 %s4, 240
    %p201 = scmp.ne.s32.totalorder %s200, 0
    %s202 = scalar_select %p201, 2, 0
    %s203 = sor.u32 %s199, %s202
    %s204 = smul.addr 1, 51
    %s205 = scalar_lea.vmem %s0, %s204
    %v206 = vld [vmem:[%s205] sm:%s203]
    %v207 = vunpack.c.0.s8 %v206
    %v208 = vunpack.c.1.s8 %v206
    %v209 = vunpack.c.2.s8 %v206
    %v210 = vunpack.c.3.s8 %v206
    %s211 = scalar_lea.vmem [#allocation1], 408
    %212 = vst [vmem:[%s211] sm:%s4] %v207
    %s213 = sand.u32 %s4, 15
    %p214 = scmp.ne.s32.totalorder %s213, 0
    %s215 = scalar_select %p214, 1, 0
    %s216 = sand.u32 %s4, 240
    %p217 = scmp.ne.s32.totalorder %s216, 0
    %s218 = scalar_select %p217, 2, 0
    %s219 = sor.u32 %s215, %s218
    %s220 = smul.addr 1, 50
    %s221 = scalar_lea.vmem %s0, %s220
    %v222 = vld [vmem:[%s221] sm:%s219]
    %v223 = vunpack.c.0.s8 %v222
    %v224 = vunpack.c.1.s8 %v222
    %v225 = vunpack.c.2.s8 %v222
    %v226 = vunpack.c.3.s8 %v222
    %s227 = scalar_lea.vmem [#allocation1], 400
    %228 = vst [vmem:[%s227] sm:%s4] %v223
    %s229 = sand.u32 %s4, 15
    %p230 = scmp.ne.s32.totalorder %s229, 0
    %s231 = scalar_select %p230, 1, 0
    %s232 = sand.u32 %s4, 240
    %p233 = scmp.ne.s32.totalorder %s232, 0
    %s234 = scalar_select %p233, 2, 0
    %s235 = sor.u32 %s231, %s234
    %s236 = smul.addr 1, 49
    %s237 = scalar_lea.vmem %s0, %s236
    %v238 = vld [vmem:[%s237] sm:%s235]
    %v239 = vunpack.c.0.s8 %v238
    %v240 = vunpack.c.1.s8 %v238
    %v241 = vunpack.c.2.s8 %v238
    %v242 = vunpack.c.3.s8 %v238
    %s243 = scalar_lea.vmem [#allocation1], 392
    %244 = vst [vmem:[%s243] sm:%s4] %v239
    %s245 = sand.u32 %s4, 15
    %p246 = scmp.ne.s32.totalorder %s245, 0
    %s247 = scalar_select %p246, 1, 0
    %s248 = sand.u32 %s4, 240
    %p249 = scmp.ne.s32.totalorder %s248, 0
    %s250 = scalar_select %p249, 2, 0
    %s251 = sor.u32 %s247, %s250
    %s252 = smul.addr 1, 48
    %s253 = scalar_lea.vmem %s0, %s252
    %v254 = vld [vmem:[%s253] sm:%s251]
    %v255 = vunpack.c.0.s8 %v254
    %v256 = vunpack.c.1.s8 %v254
    %v257 = vunpack.c.2.s8 %v254
    %v258 = vunpack.c.3.s8 %v254
    %s259 = scalar_lea.vmem [#allocation1], 384
    %260 = vst [vmem:[%s259] sm:%s4] %v255
    %s261 = sand.u32 %s4, 15
    %p262 = scmp.ne.s32.totalorder %s261, 0
    %s263 = scalar_select %p262, 1, 0
    %s264 = sand.u32 %s4, 240
    %p265 = scmp.ne.s32.totalorder %s264, 0
    %s266 = scalar_select %p265, 2, 0
    %s267 = sor.u32 %s263, %s266
    %s268 = smul.addr 1, 47
    %s269 = scalar_lea.vmem %s0, %s268
    %v270 = vld [vmem:[%s269] sm:%s267]
    %v271 = vunpack.c.0.s8 %v270
    %v272 = vunpack.c.1.s8 %v270
    %v273 = vunpack.c.2.s8 %v270
    %v274 = vunpack.c.3.s8 %v270
    %s275 = scalar_lea.vmem [#allocation1], 376
    %276 = vst [vmem:[%s275] sm:%s4] %v271
    %s277 = sand.u32 %s4, 15
    %p278 = scmp.ne.s32.totalorder %s277, 0
    %s279 = scalar_select %p278, 1, 0
    %s280 = sand.u32 %s4, 240
    %p281 = scmp.ne.s32.totalorder %s280, 0
    %s282 = scalar_select %p281, 2, 0
    %s283 = sor.u32 %s279, %s282
    %s284 = smul.addr 1, 46
    %s285 = scalar_lea.vmem %s0, %s284
    %v286 = vld [vmem:[%s285] sm:%s283]
    %v287 = vunpack.c.0.s8 %v286
    %v288 = vunpack.c.1.s8 %v286
    %v289 = vunpack.c.2.s8 %v286
    %v290 = vunpack.c.3.s8 %v286
    %s291 = scalar_lea.vmem [#allocation1], 368
    %292 = vst [vmem:[%s291] sm:%s4] %v287
    %s293 = sand.u32 %s4, 15
    %p294 = scmp.ne.s32.totalorder %s293, 0
    %s295 = scalar_select %p294, 1, 0
    %s296 = sand.u32 %s4, 240
    %p297 = scmp.ne.s32.totalorder %s296, 0
    %s298 = scalar_select %p297, 2, 0
    %s299 = sor.u32 %s295, %s298
    %s300 = smul.addr 1, 45
    %s301 = scalar_lea.vmem %s0, %s300
    %v302 = vld [vmem:[%s301] sm:%s299]
    %v303 = vunpack.c.0.s8 %v302
    %v304 = vunpack.c.1.s8 %v302
    %v305 = vunpack.c.2.s8 %v302
    %v306 = vunpack.c.3.s8 %v302
    %s307 = scalar_lea.vmem [#allocation1], 360
    %308 = vst [vmem:[%s307] sm:%s4] %v303
    %s309 = sand.u32 %s4, 15
    %p310 = scmp.ne.s32.totalorder %s309, 0
    %s311 = scalar_select %p310, 1, 0
    %s312 = sand.u32 %s4, 240
    %p313 = scmp.ne.s32.totalorder %s312, 0
    %s314 = scalar_select %p313, 2, 0
    %s315 = sor.u32 %s311, %s314
    %s316 = smul.addr 1, 44
    %s317 = scalar_lea.vmem %s0, %s316
    %v318 = vld [vmem:[%s317] sm:%s315]
    %v319 = vunpack.c.0.s8 %v318
    %v320 = vunpack.c.1.s8 %v318
    %v321 = vunpack.c.2.s8 %v318
    %v322 = vunpack.c.3.s8 %v318
    %s323 = scalar_lea.vmem [#allocation1], 352
    %324 = vst [vmem:[%s323] sm:%s4] %v319
    %s325 = sand.u32 %s4, 15
    %p326 = scmp.ne.s32.totalorder %s325, 0
    %s327 = scalar_select %p326, 1, 0
    %s328 = sand.u32 %s4, 240
    %p329 = scmp.ne.s32.totalorder %s328, 0
    %s330 = scalar_select %p329, 2, 0
    %s331 = sor.u32 %s327, %s330
    %s332 = smul.addr 1, 43
    %s333 = scalar_lea.vmem %s0, %s332
    %v334 = vld [vmem:[%s333] sm:%s331]
    %v335 = vunpack.c.0.s8 %v334
    %v336 = vunpack.c.1.s8 %v334
    %v337 = vunpack.c.2.s8 %v334
    %v338 = vunpack.c.3.s8 %v334
    %s339 = scalar_lea.vmem [#allocation1], 344
    %340 = vst [vmem:[%s339] sm:%s4] %v335
    %s341 = sand.u32 %s4, 15
    %p342 = scmp.ne.s32.totalorder %s341, 0
    %s343 = scalar_select %p342, 1, 0
    %s344 = sand.u32 %s4, 240
    %p345 = scmp.ne.s32.totalorder %s344, 0
    %s346 = scalar_select %p345, 2, 0
    %s347 = sor.u32 %s343, %s346
    %s348 = smul.addr 1, 42
    %s349 = scalar_lea.vmem %s0, %s348
    %v350 = vld [vmem:[%s349] sm:%s347]
    %v351 = vunpack.c.0.s8 %v350
    %v352 = vunpack.c.1.s8 %v350
    %v353 = vunpack.c.2.s8 %v350
    %v354 = vunpack.c.3.s8 %v350
    %s355 = scalar_lea.vmem [#allocation1], 336
    %356 = vst [vmem:[%s355] sm:%s4] %v351
    %s357 = sand.u32 %s4, 15
    %p358 = scmp.ne.s32.totalorder %s357, 0
    %s359 = scalar_select %p358, 1, 0
    %s360 = sand.u32 %s4, 240
    %p361 = scmp.ne.s32.totalorder %s360, 0
    %s362 = scalar_select %p361, 2, 0
    %s363 = sor.u32 %s359, %s362
    %s364 = smul.addr 1, 41
    %s365 = scalar_lea.vmem %s0, %s364
    %v366 = vld [vmem:[%s365] sm:%s363]
    %v367 = vunpack.c.0.s8 %v366
    %v368 = vunpack.c.1.s8 %v366
    %v369 = vunpack.c.2.s8 %v366
    %v370 = vunpack.c.3.s8 %v366
    %s371 = scalar_lea.vmem [#allocation1], 328
    %372 = vst [vmem:[%s371] sm:%s4] %v367
    %s373 = sand.u32 %s4, 15
    %p374 = scmp.ne.s32.totalorder %s373, 0
    %s375 = scalar_select %p374, 1, 0
    %s376 = sand.u32 %s4, 240
    %p377 = scmp.ne.s32.totalorder %s376, 0
    %s378 = scalar_select %p377, 2, 0
    %s379 = sor.u32 %s375, %s378
    %s380 = smul.addr 1, 40
    %s381 = scalar_lea.vmem %s0, %s380
    %v382 = vld [vmem:[%s381] sm:%s379]
    %v383 = vunpack.c.0.s8 %v382
    %v384 = vunpack.c.1.s8 %v382
    %v385 = vunpack.c.2.s8 %v382
    %v386 = vunpack.c.3.s8 %v382
    %s387 = scalar_lea.vmem [#allocation1], 320
    %388 = vst [vmem:[%s387] sm:%s4] %v383
    %s389 = sand.u32 %s4, 15
    %p390 = scmp.ne.s32.totalorder %s389, 0
    %s391 = scalar_select %p390, 1, 0
    %s392 = sand.u32 %s4, 240
    %p393 = scmp.ne.s32.totalorder %s392, 0
    %s394 = scalar_select %p393, 2, 0
    %s395 = sor.u32 %s391, %s394
    %s396 = smul.addr 1, 39
    %s397 = scalar_lea.vmem %s0, %s396
    %v398 = vld [vmem:[%s397] sm:%s395]
    %v399 = vunpack.c.0.s8 %v398
    %v400 = vunpack.c.1.s8 %v398
    %v401 = vunpack.c.2.s8 %v398
    %v402 = vunpack.c.3.s8 %v398
    %s403 = scalar_lea.vmem [#allocation1], 312
    %404 = vst [vmem:[%s403] sm:%s4] %v399
    %s405 = sand.u32 %s4, 15
    %p406 = scmp.ne.s32.totalorder %s405, 0
    %s407 = scalar_select %p406, 1, 0
    %s408 = sand.u32 %s4, 240
    %p409 = scmp.ne.s32.totalorder %s408, 0
    %s410 = scalar_select %p409, 2, 0
    %s411 = sor.u32 %s407, %s410
    %s412 = smul.addr 1, 38
    %s413 = scalar_lea.vmem %s0, %s412
    %v414 = vld [vmem:[%s413] sm:%s411]
    %v415 = vunpack.c.0.s8 %v414
    %v416 = vunpack.c.1.s8 %v414
    %v417 = vunpack.c.2.s8 %v414
    %v418 = vunpack.c.3.s8 %v414
    %s419 = scalar_lea.vmem [#allocation1], 304
    %420 = vst [vmem:[%s419] sm:%s4] %v415
    %s421 = sand.u32 %s4, 15
    %p422 = scmp.ne.s32.totalorder %s421, 0
    %s423 = scalar_select %p422, 1, 0
    %s424 = sand.u32 %s4, 240
    %p425 = scmp.ne.s32.totalorder %s424, 0
    %s426 = scalar_select %p425, 2, 0
    %s427 = sor.u32 %s423, %s426
    %s428 = smul.addr 1, 37
    %s429 = scalar_lea.vmem %s0, %s428
    %v430 = vld [vmem:[%s429] sm:%s427]
    %v431 = vunpack.c.0.s8 %v430
    %v432 = vunpack.c.1.s8 %v430
    %v433 = vunpack.c.2.s8 %v430
    %v434 = vunpack.c.3.s8 %v430
    %s435 = scalar_lea.vmem [#allocation1], 296
    %436 = vst [vmem:[%s435] sm:%s4] %v431
    %s437 = sand.u32 %s4, 15
    %p438 = scmp.ne.s32.totalorder %s437, 0
    %s439 = scalar_select %p438, 1, 0
    %s440 = sand.u32 %s4, 240
    %p441 = scmp.ne.s32.totalorder %s440, 0
    %s442 = scalar_select %p441, 2, 0
    %s443 = sor.u32 %s439, %s442
    %s444 = smul.addr 1, 36
    %s445 = scalar_lea.vmem %s0, %s444
    %v446 = vld [vmem:[%s445] sm:%s443]
    %v447 = vunpack.c.0.s8 %v446
    %v448 = vunpack.c.1.s8 %v446
    %v449 = vunpack.c.2.s8 %v446
    %v450 = vunpack.c.3.s8 %v446
    %s451 = scalar_lea.vmem [#allocation1], 288
    %452 = vst [vmem:[%s451] sm:%s4] %v447
    %s453 = sand.u32 %s4, 15
    %p454 = scmp.ne.s32.totalorder %s453, 0
    %s455 = scalar_select %p454, 1, 0
    %s456 = sand.u32 %s4, 240
    %p457 = scmp.ne.s32.totalorder %s456, 0
    %s458 = scalar_select %p457, 2, 0
    %s459 = sor.u32 %s455, %s458
    %s460 = smul.addr 1, 35
    %s461 = scalar_lea.vmem %s0, %s460
    %v462 = vld [vmem:[%s461] sm:%s459]
    %v463 = vunpack.c.0.s8 %v462
    %v464 = vunpack.c.1.s8 %v462
    %v465 = vunpack.c.2.s8 %v462
    %v466 = vunpack.c.3.s8 %v462
    %s467 = scalar_lea.vmem [#allocation1], 280
    %468 = vst [vmem:[%s467] sm:%s4] %v463
    %s469 = sand.u32 %s4, 15
    %p470 = scmp.ne.s32.totalorder %s469, 0
    %s471 = scalar_select %p470, 1, 0
    %s472 = sand.u32 %s4, 240
    %p473 = scmp.ne.s32.totalorder %s472, 0
    %s474 = scalar_select %p473, 2, 0
    %s475 = sor.u32 %s471, %s474
    %s476 = smul.addr 1, 34
    %s477 = scalar_lea.vmem %s0, %s476
    %v478 = vld [vmem:[%s477] sm:%s475]
    %v479 = vunpack.c.0.s8 %v478
    %v480 = vunpack.c.1.s8 %v478
    %v481 = vunpack.c.2.s8 %v478
    %v482 = vunpack.c.3.s8 %v478
    %s483 = scalar_lea.vmem [#allocation1], 272
    %484 = vst [vmem:[%s483] sm:%s4] %v479
    %s485 = sand.u32 %s4, 15
    %p486 = scmp.ne.s32.totalorder %s485, 0
    %s487 = scalar_select %p486, 1, 0
    %s488 = sand.u32 %s4, 240
    %p489 = scmp.ne.s32.totalorder %s488, 0
    %s490 = scalar_select %p489, 2, 0
    %s491 = sor.u32 %s487, %s490
    %s492 = smul.addr 1, 33
    %s493 = scalar_lea.vmem %s0, %s492
    %v494 = vld [vmem:[%s493] sm:%s491]
    %v495 = vunpack.c.0.s8 %v494
    %v496 = vunpack.c.1.s8 %v494
    %v497 = vunpack.c.2.s8 %v494
    %v498 = vunpack.c.3.s8 %v494
    %s499 = scalar_lea.vmem [#allocation1], 264
    %500 = vst [vmem:[%s499] sm:%s4] %v495
    %s501 = sand.u32 %s4, 15
    %p502 = scmp.ne.s32.totalorder %s501, 0
    %s503 = scalar_select %p502, 1, 0
    %s504 = sand.u32 %s4, 240
    %p505 = scmp.ne.s32.totalorder %s504, 0
    %s506 = scalar_select %p505, 2, 0
    %s507 = sor.u32 %s503, %s506
    %s508 = smul.addr 1, 32
    %s509 = scalar_lea.vmem %s0, %s508
    %v510 = vld [vmem:[%s509] sm:%s507]
    %v511 = vunpack.c.0.s8 %v510
    %v512 = vunpack.c.1.s8 %v510
    %v513 = vunpack.c.2.s8 %v510
    %v514 = vunpack.c.3.s8 %v510
    %s515 = scalar_lea.vmem [#allocation1], 256
    %516 = vst [vmem:[%s515] sm:%s4] %v511
    %s517 = sand.u32 %s4, 15
    %p518 = scmp.ne.s32.totalorder %s517, 0
    %s519 = scalar_select %p518, 1, 0
    %s520 = sand.u32 %s4, 240
    %p521 = scmp.ne.s32.totalorder %s520, 0
    %s522 = scalar_select %p521, 2, 0
    %s523 = sor.u32 %s519, %s522
    %s524 = smul.addr 1, 31
    %s525 = scalar_lea.vmem %s0, %s524
    %v526 = vld [vmem:[%s525] sm:%s523]
    %v527 = vunpack.c.0.s8 %v526
    %v528 = vunpack.c.1.s8 %v526
    %v529 = vunpack.c.2.s8 %v526
    %v530 = vunpack.c.3.s8 %v526
    %s531 = scalar_lea.vmem [#allocation1], 248
    %532 = vst [vmem:[%s531] sm:%s4] %v527
    %s533 = sand.u32 %s4, 15
    %p534 = scmp.ne.s32.totalorder %s533, 0
    %s535 = scalar_select %p534, 1, 0
    %s536 = sand.u32 %s4, 240
    %p537 = scmp.ne.s32.totalorder %s536, 0
    %s538 = scalar_select %p537, 2, 0
    %s539 = sor.u32 %s535, %s538
    %s540 = smul.addr 1, 30
    %s541 = scalar_lea.vmem %s0, %s540
    %v542 = vld [vmem:[%s541] sm:%s539]
    %v543 = vunpack.c.0.s8 %v542
    %v544 = vunpack.c.1.s8 %v542
    %v545 = vunpack.c.2.s8 %v542
    %v546 = vunpack.c.3.s8 %v542
    %s547 = scalar_lea.vmem [#allocation1], 240
    %548 = vst [vmem:[%s547] sm:%s4] %v543
    %s549 = sand.u32 %s4, 15
    %p550 = scmp.ne.s32.totalorder %s549, 0
    %s551 = scalar_select %p550, 1, 0
    %s552 = sand.u32 %s4, 240
    %p553 = scmp.ne.s32.totalorder %s552, 0
    %s554 = scalar_select %p553, 2, 0
    %s555 = sor.u32 %s551, %s554
    %s556 = smul.addr 1, 29
    %s557 = scalar_lea.vmem %s0, %s556
    %v558 = vld [vmem:[%s557] sm:%s555]
    %v559 = vunpack.c.0.s8 %v558
    %v560 = vunpack.c.1.s8 %v558
    %v561 = vunpack.c.2.s8 %v558
    %v562 = vunpack.c.3.s8 %v558
    %s563 = scalar_lea.vmem [#allocation1], 232
    %564 = vst [vmem:[%s563] sm:%s4] %v559
    %s565 = sand.u32 %s4, 15
    %p566 = scmp.ne.s32.totalorder %s565, 0
    %s567 = scalar_select %p566, 1, 0
    %s568 = sand.u32 %s4, 240
    %p569 = scmp.ne.s32.totalorder %s568, 0
    %s570 = scalar_select %p569, 2, 0
    %s571 = sor.u32 %s567, %s570
    %s572 = smul.addr 1, 28
    %s573 = scalar_lea.vmem %s0, %s572
    %v574 = vld [vmem:[%s573] sm:%s571]
    %v575 = vunpack.c.0.s8 %v574
    %v576 = vunpack.c.1.s8 %v574
    %v577 = vunpack.c.2.s8 %v574
    %v578 = vunpack.c.3.s8 %v574
    %s579 = scalar_lea.vmem [#allocation1], 224
    %580 = vst [vmem:[%s579] sm:%s4] %v575
    %s581 = sand.u32 %s4, 15
    %p582 = scmp.ne.s32.totalorder %s581, 0
    %s583 = scalar_select %p582, 1, 0
    %s584 = sand.u32 %s4, 240
    %p585 = scmp.ne.s32.totalorder %s584, 0
    %s586 = scalar_select %p585, 2, 0
    %s587 = sor.u32 %s583, %s586
    %s588 = smul.addr 1, 27
    %s589 = scalar_lea.vmem %s0, %s588
    %v590 = vld [vmem:[%s589] sm:%s587]
    %v591 = vunpack.c.0.s8 %v590
    %v592 = vunpack.c.1.s8 %v590
    %v593 = vunpack.c.2.s8 %v590
    %v594 = vunpack.c.3.s8 %v590
    %s595 = scalar_lea.vmem [#allocation1], 216
    %596 = vst [vmem:[%s595] sm:%s4] %v591
    %s597 = sand.u32 %s4, 15
    %p598 = scmp.ne.s32.totalorder %s597, 0
    %s599 = scalar_select %p598, 1, 0
    %s600 = sand.u32 %s4, 240
    %p601 = scmp.ne.s32.totalorder %s600, 0
    %s602 = scalar_select %p601, 2, 0
    %s603 = sor.u32 %s599, %s602
    %s604 = smul.addr 1, 26
    %s605 = scalar_lea.vmem %s0, %s604
    %v606 = vld [vmem:[%s605] sm:%s603]
    %v607 = vunpack.c.0.s8 %v606
    %v608 = vunpack.c.1.s8 %v606
    %v609 = vunpack.c.2.s8 %v606
    %v610 = vunpack.c.3.s8 %v606
    %s611 = scalar_lea.vmem [#allocation1], 208
    %612 = vst [vmem:[%s611] sm:%s4] %v607
    %s613 = sand.u32 %s4, 15
    %p614 = scmp.ne.s32.totalorder %s613, 0
    %s615 = scalar_select %p614, 1, 0
    %s616 = sand.u32 %s4, 240
    %p617 = scmp.ne.s32.totalorder %s616, 0
    %s618 = scalar_select %p617, 2, 0
    %s619 = sor.u32 %s615, %s618
    %s620 = smul.addr 1, 25
    %s621 = scalar_lea.vmem %s0, %s620
    %v622 = vld [vmem:[%s621] sm:%s619]
    %v623 = vunpack.c.0.s8 %v622
    %v624 = vunpack.c.1.s8 %v622
    %v625 = vunpack.c.2.s8 %v622
    %v626 = vunpack.c.3.s8 %v622
    %s627 = scalar_lea.vmem [#allocation1], 200
    %628 = vst [vmem:[%s627] sm:%s4] %v623
    %s629 = sand.u32 %s4, 15
    %p630 = scmp.ne.s32.totalorder %s629, 0
    %s631 = scalar_select %p630, 1, 0
    %s632 = sand.u32 %s4, 240
    %p633 = scmp.ne.s32.totalorder %s632, 0
    %s634 = scalar_select %p633, 2, 0
    %s635 = sor.u32 %s631, %s634
    %s636 = smul.addr 1, 24
    %s637 = scalar_lea.vmem %s0, %s636
    %v638 = vld [vmem:[%s637] sm:%s635]
    %v639 = vunpack.c.0.s8 %v638
    %v640 = vunpack.c.1.s8 %v638
    %v641 = vunpack.c.2.s8 %v638
    %v642 = vunpack.c.3.s8 %v638
    %s643 = scalar_lea.vmem [#allocation1], 192
    %644 = vst [vmem:[%s643] sm:%s4] %v639
    %s645 = sand.u32 %s4, 15
    %p646 = scmp.ne.s32.totalorder %s645, 0
    %s647 = scalar_select %p646, 1, 0
    %s648 = sand.u32 %s4, 240
    %p649 = scmp.ne.s32.totalorder %s648, 0
    %s650 = scalar_select %p649, 2, 0
    %s651 = sor.u32 %s647, %s650
    %s652 = smul.addr 1, 23
    %s653 = scalar_lea.vmem %s0, %s652
    %v654 = vld [vmem:[%s653] sm:%s651]
    %v655 = vunpack.c.0.s8 %v654
    %v656 = vunpack.c.1.s8 %v654
    %v657 = vunpack.c.2.s8 %v654
    %v658 = vunpack.c.3.s8 %v654
    %s659 = scalar_lea.vmem [#allocation1], 184
    %660 = vst [vmem:[%s659] sm:%s4] %v655
    %s661 = sand.u32 %s4, 15
    %p662 = scmp.ne.s32.totalorder %s661, 0
    %s663 = scalar_select %p662, 1, 0
    %s664 = sand.u32 %s4, 240
    %p665 = scmp.ne.s32.totalorder %s664, 0
    %s666 = scalar_select %p665, 2, 0
    %s667 = sor.u32 %s663, %s666
    %s668 = smul.addr 1, 22
    %s669 = scalar_lea.vmem %s0, %s668
    %v670 = vld [vmem:[%s669] sm:%s667]
    %v671 = vunpack.c.0.s8 %v670
    %v672 = vunpack.c.1.s8 %v670
    %v673 = vunpack.c.2.s8 %v670
    %v674 = vunpack.c.3.s8 %v670
    %s675 = scalar_lea.vmem [#allocation1], 176
    %676 = vst [vmem:[%s675] sm:%s4] %v671
    %s677 = sand.u32 %s4, 15
    %p678 = scmp.ne.s32.totalorder %s677, 0
    %s679 = scalar_select %p678, 1, 0
    %s680 = sand.u32 %s4, 240
    %p681 = scmp.ne.s32.totalorder %s680, 0
    %s682 = scalar_select %p681, 2, 0
    %s683 = sor.u32 %s679, %s682
    %s684 = smul.addr 1, 21
    %s685 = scalar_lea.vmem %s0, %s684
    %v686 = vld [vmem:[%s685] sm:%s683]
    %v687 = vunpack.c.0.s8 %v686
    %v688 = vunpack.c.1.s8 %v686
    %v689 = vunpack.c.2.s8 %v686
    %v690 = vunpack.c.3.s8 %v686
    %s691 = scalar_lea.vmem [#allocation1], 168
    %692 = vst [vmem:[%s691] sm:%s4] %v687
    %s693 = sand.u32 %s4, 15
    %p694 = scmp.ne.s32.totalorder %s693, 0
    %s695 = scalar_select %p694, 1, 0
    %s696 = sand.u32 %s4, 240
    %p697 = scmp.ne.s32.totalorder %s696, 0
    %s698 = scalar_select %p697, 2, 0
    %s699 = sor.u32 %s695, %s698
    %s700 = smul.addr 1, 20
    %s701 = scalar_lea.vmem %s0, %s700
    %v702 = vld [vmem:[%s701] sm:%s699]
    %v703 = vunpack.c.0.s8 %v702
    %v704 = vunpack.c.1.s8 %v702
    %v705 = vunpack.c.2.s8 %v702
    %v706 = vunpack.c.3.s8 %v702
    %s707 = scalar_lea.vmem [#allocation1], 160
    %708 = vst [vmem:[%s707] sm:%s4] %v703
    %s709 = sand.u32 %s4, 15
    %p710 = scmp.ne.s32.totalorder %s709, 0
    %s711 = scalar_select %p710, 1, 0
    %s712 = sand.u32 %s4, 240
    %p713 = scmp.ne.s32.totalorder %s712, 0
    %s714 = scalar_select %p713, 2, 0
    %s715 = sor.u32 %s711, %s714
    %s716 = smul.addr 1, 19
    %s717 = scalar_lea.vmem %s0, %s716
    %v718 = vld [vmem:[%s717] sm:%s715]
    %v719 = vunpack.c.0.s8 %v718
    %v720 = vunpack.c.1.s8 %v718
    %v721 = vunpack.c.2.s8 %v718
    %v722 = vunpack.c.3.s8 %v718
    %s723 = scalar_lea.vmem [#allocation1], 152
    %724 = vst [vmem:[%s723] sm:%s4] %v719
    %s725 = sand.u32 %s4, 15
    %p726 = scmp.ne.s32.totalorder %s725, 0
    %s727 = scalar_select %p726, 1, 0
    %s728 = sand.u32 %s4, 240
    %p729 = scmp.ne.s32.totalorder %s728, 0
    %s730 = scalar_select %p729, 2, 0
    %s731 = sor.u32 %s727, %s730
    %s732 = smul.addr 1, 18
    %s733 = scalar_lea.vmem %s0, %s732
    %v734 = vld [vmem:[%s733] sm:%s731]
    %v735 = vunpack.c.0.s8 %v734
    %v736 = vunpack.c.1.s8 %v734
    %v737 = vunpack.c.2.s8 %v734
    %v738 = vunpack.c.3.s8 %v734
    %s739 = scalar_lea.vmem [#allocation1], 144
    %740 = vst [vmem:[%s739] sm:%s4] %v735
    %s741 = sand.u32 %s4, 15
    %p742 = scmp.ne.s32.totalorder %s741, 0
    %s743 = scalar_select %p742, 1, 0
    %s744 = sand.u32 %s4, 240
    %p745 = scmp.ne.s32.totalorder %s744, 0
    %s746 = scalar_select %p745, 2, 0
    %s747 = sor.u32 %s743, %s746
    %s748 = smul.addr 1, 17
    %s749 = scalar_lea.vmem %s0, %s748
    %v750 = vld [vmem:[%s749] sm:%s747]
    %v751 = vunpack.c.0.s8 %v750
    %v752 = vunpack.c.1.s8 %v750
    %v753 = vunpack.c.2.s8 %v750
    %v754 = vunpack.c.3.s8 %v750
    %s755 = scalar_lea.vmem [#allocation1], 136
    %756 = vst [vmem:[%s755] sm:%s4] %v751
    %s757 = sand.u32 %s4, 15
    %p758 = scmp.ne.s32.totalorder %s757, 0
    %s759 = scalar_select %p758, 1, 0
    %s760 = sand.u32 %s4, 240
    %p761 = scmp.ne.s32.totalorder %s760, 0
    %s762 = scalar_select %p761, 2, 0
    %s763 = sor.u32 %s759, %s762
    %s764 = smul.addr 1, 16
    %s765 = scalar_lea.vmem %s0, %s764
    %v766 = vld [vmem:[%s765] sm:%s763]
    %v767 = vunpack.c.0.s8 %v766
    %v768 = vunpack.c.1.s8 %v766
    %v769 = vunpack.c.2.s8 %v766
    %v770 = vunpack.c.3.s8 %v766
    %s771 = scalar_lea.vmem [#allocation1], 128
    %772 = vst [vmem:[%s771] sm:%s4] %v767
    %s773 = sand.u32 %s4, 15
    %p774 = scmp.ne.s32.totalorder %s773, 0
    %s775 = scalar_select %p774, 1, 0
    %s776 = sand.u32 %s4, 240
    %p777 = scmp.ne.s32.totalorder %s776, 0
    %s778 = scalar_select %p777, 2, 0
    %s779 = sor.u32 %s775, %s778
    %s780 = smul.addr 1, 15
    %s781 = scalar_lea.vmem %s0, %s780
    %v782 = vld [vmem:[%s781] sm:%s779]
    %v783 = vunpack.c.0.s8 %v782
    %v784 = vunpack.c.1.s8 %v782
    %v785 = vunpack.c.2.s8 %v782
    %v786 = vunpack.c.3.s8 %v782
    %s787 = scalar_lea.vmem [#allocation1], 120
    %788 = vst [vmem:[%s787] sm:%s4] %v783
    %s789 = sand.u32 %s4, 15
    %p790 = scmp.ne.s32.totalorder %s789, 0
    %s791 = scalar_select %p790, 1, 0
    %s792 = sand.u32 %s4, 240
    %p793 = scmp.ne.s32.totalorder %s792, 0
    %s794 = scalar_select %p793, 2, 0
    %s795 = sor.u32 %s791, %s794
    %s796 = smul.addr 1, 14
    %s797 = scalar_lea.vmem %s0, %s796
    %v798 = vld [vmem:[%s797] sm:%s795]
    %v799 = vunpack.c.0.s8 %v798
    %v800 = vunpack.c.1.s8 %v798
    %v801 = vunpack.c.2.s8 %v798
    %v802 = vunpack.c.3.s8 %v798
    %s803 = scalar_lea.vmem [#allocation1], 112
    %804 = vst [vmem:[%s803] sm:%s4] %v799
    %s805 = sand.u32 %s4, 15
    %p806 = scmp.ne.s32.totalorder %s805, 0
    %s807 = scalar_select %p806, 1, 0
    %s808 = sand.u32 %s4, 240
    %p809 = scmp.ne.s32.totalorder %s808, 0
    %s810 = scalar_select %p809, 2, 0
    %s811 = sor.u32 %s807, %s810
    %s812 = smul.addr 1, 13
    %s813 = scalar_lea.vmem %s0, %s812
    %v814 = vld [vmem:[%s813] sm:%s811]
    %v815 = vunpack.c.0.s8 %v814
    %v816 = vunpack.c.1.s8 %v814
    %v817 = vunpack.c.2.s8 %v814
    %v818 = vunpack.c.3.s8 %v814
    %s819 = scalar_lea.vmem [#allocation1], 104
    %820 = vst [vmem:[%s819] sm:%s4] %v815
    %s821 = sand.u32 %s4, 15
    %p822 = scmp.ne.s32.totalorder %s821, 0
    %s823 = scalar_select %p822, 1, 0
    %s824 = sand.u32 %s4, 240
    %p825 = scmp.ne.s32.totalorder %s824, 0
    %s826 = scalar_select %p825, 2, 0
    %s827 = sor.u32 %s823, %s826
    %s828 = smul.addr 1, 12
    %s829 = scalar_lea.vmem %s0, %s828
    %v830 = vld [vmem:[%s829] sm:%s827]
    %v831 = vunpack.c.0.s8 %v830
    %v832 = vunpack.c.1.s8 %v830
    %v833 = vunpack.c.2.s8 %v830
    %v834 = vunpack.c.3.s8 %v830
    %s835 = scalar_lea.vmem [#allocation1], 96
    %836 = vst [vmem:[%s835] sm:%s4] %v831
    %s837 = sand.u32 %s4, 15
    %p838 = scmp.ne.s32.totalorder %s837, 0
    %s839 = scalar_select %p838, 1, 0
    %s840 = sand.u32 %s4, 240
    %p841 = scmp.ne.s32.totalorder %s840, 0
    %s842 = scalar_select %p841, 2, 0
    %s843 = sor.u32 %s839, %s842
    %s844 = smul.addr 1, 11
    %s845 = scalar_lea.vmem %s0, %s844
    %v846 = vld [vmem:[%s845] sm:%s843]
    %v847 = vunpack.c.0.s8 %v846
    %v848 = vunpack.c.1.s8 %v846
    %v849 = vunpack.c.2.s8 %v846
    %v850 = vunpack.c.3.s8 %v846
    %s851 = scalar_lea.vmem [#allocation1], 88
    %852 = vst [vmem:[%s851] sm:%s4] %v847
    %s853 = sand.u32 %s4, 15
    %p854 = scmp.ne.s32.totalorder %s853, 0
    %s855 = scalar_select %p854, 1, 0
    %s856 = sand.u32 %s4, 240
    %p857 = scmp.ne.s32.totalorder %s856, 0
    %s858 = scalar_select %p857, 2, 0
    %s859 = sor.u32 %s855, %s858
    %s860 = smul.addr 1, 10
    %s861 = scalar_lea.vmem %s0, %s860
    %v862 = vld [vmem:[%s861] sm:%s859]
    %v863 = vunpack.c.0.s8 %v862
    %v864 = vunpack.c.1.s8 %v862
    %v865 = vunpack.c.2.s8 %v862
    %v866 = vunpack.c.3.s8 %v862
    %s867 = scalar_lea.vmem [#allocation1], 80
    %868 = vst [vmem:[%s867] sm:%s4] %v863
    %s869 = sand.u32 %s4, 15
    %p870 = scmp.ne.s32.totalorder %s869, 0
    %s871 = scalar_select %p870, 1, 0
    %s872 = sand.u32 %s4, 240
    %p873 = scmp.ne.s32.totalorder %s872, 0
    %s874 = scalar_select %p873, 2, 0
    %s875 = sor.u32 %s871, %s874
    %s876 = smul.addr 1, 9
    %s877 = scalar_lea.vmem %s0, %s876
    %v878 = vld [vmem:[%s877] sm:%s875]
    %v879 = vunpack.c.0.s8 %v878
    %v880 = vunpack.c.1.s8 %v878
    %v881 = vunpack.c.2.s8 %v878
    %v882 = vunpack.c.3.s8 %v878
    %s883 = scalar_lea.vmem [#allocation1], 72
    %884 = vst [vmem:[%s883] sm:%s4] %v879
    %s885 = sand.u32 %s4, 15
    %p886 = scmp.ne.s32.totalorder %s885, 0
    %s887 = scalar_select %p886, 1, 0
    %s888 = sand.u32 %s4, 240
    %p889 = scmp.ne.s32.totalorder %s888, 0
    %s890 = scalar_select %p889, 2, 0
    %s891 = sor.u32 %s887, %s890
    %s892 = smul.addr 1, 8
    %s893 = scalar_lea.vmem %s0, %s892
    %v894 = vld [vmem:[%s893] sm:%s891]
    %v895 = vunpack.c.0.s8 %v894
    %v896 = vunpack.c.1.s8 %v894
    %v897 = vunpack.c.2.s8 %v894
    %v898 = vunpack.c.3.s8 %v894
    %s899 = scalar_lea.vmem [#allocation1], 64
    %900 = vst [vmem:[%s899] sm:%s4] %v895
    %s901 = sand.u32 %s4, 15
    %p902 = scmp.ne.s32.totalorder %s901, 0
    %s903 = scalar_select %p902, 1, 0
    %s904 = sand.u32 %s4, 240
    %p905 = scmp.ne.s32.totalorder %s904, 0
    %s906 = scalar_select %p905, 2, 0
    %s907 = sor.u32 %s903, %s906
    %s908 = smul.addr 1, 7
    %s909 = scalar_lea.vmem %s0, %s908
    %v910 = vld [vmem:[%s909] sm:%s907]
    %v911 = vunpack.c.0.s8 %v910
    %v912 = vunpack.c.1.s8 %v910
    %v913 = vunpack.c.2.s8 %v910
    %v914 = vunpack.c.3.s8 %v910
    %s915 = scalar_lea.vmem [#allocation1], 56
    %916 = vst [vmem:[%s915] sm:%s4] %v911
    %s917 = sand.u32 %s4, 15
    %p918 = scmp.ne.s32.totalorder %s917, 0
    %s919 = scalar_select %p918, 1, 0
    %s920 = sand.u32 %s4, 240
    %p921 = scmp.ne.s32.totalorder %s920, 0
    %s922 = scalar_select %p921, 2, 0
    %s923 = sor.u32 %s919, %s922
    %s924 = smul.addr 1, 6
    %s925 = scalar_lea.vmem %s0, %s924
    %v926 = vld [vmem:[%s925] sm:%s923]
    %v927 = vunpack.c.0.s8 %v926
    %v928 = vunpack.c.1.s8 %v926
    %v929 = vunpack.c.2.s8 %v926
    %v930 = vunpack.c.3.s8 %v926
    %s931 = scalar_lea.vmem [#allocation1], 48
    %932 = vst [vmem:[%s931] sm:%s4] %v927
    %s933 = sand.u32 %s4, 15
    %p934 = scmp.ne.s32.totalorder %s933, 0
    %s935 = scalar_select %p934, 1, 0
    %s936 = sand.u32 %s4, 240
    %p937 = scmp.ne.s32.totalorder %s936, 0
    %s938 = scalar_select %p937, 2, 0
    %s939 = sor.u32 %s935, %s938
    %s940 = smul.addr 1, 5
    %s941 = scalar_lea.vmem %s0, %s940
    %v942 = vld [vmem:[%s941] sm:%s939]
    %v943 = vunpack.c.0.s8 %v942
    %v944 = vunpack.c.1.s8 %v942
    %v945 = vunpack.c.2.s8 %v942
    %v946 = vunpack.c.3.s8 %v942
    %s947 = scalar_lea.vmem [#allocation1], 40
    %948 = vst [vmem:[%s947] sm:%s4] %v943
    %s949 = sand.u32 %s4, 15
    %p950 = scmp.ne.s32.totalorder %s949, 0
    %s951 = scalar_select %p950, 1, 0
    %s952 = sand.u32 %s4, 240
    %p953 = scmp.ne.s32.totalorder %s952, 0
    %s954 = scalar_select %p953, 2, 0
    %s955 = sor.u32 %s951, %s954
    %s956 = smul.addr 1, 4
    %s957 = scalar_lea.vmem %s0, %s956
    %v958 = vld [vmem:[%s957] sm:%s955]
    %v959 = vunpack.c.0.s8 %v958
    %v960 = vunpack.c.1.s8 %v958
    %v961 = vunpack.c.2.s8 %v958
    %v962 = vunpack.c.3.s8 %v958
    %s963 = scalar_lea.vmem [#allocation1], 32
    %964 = vst [vmem:[%s963] sm:%s4] %v959
    %s965 = sand.u32 %s4, 15
    %p966 = scmp.ne.s32.totalorder %s965, 0
    %s967 = scalar_select %p966, 1, 0
    %s968 = sand.u32 %s4, 240
    %p969 = scmp.ne.s32.totalorder %s968, 0
    %s970 = scalar_select %p969, 2, 0
    %s971 = sor.u32 %s967, %s970
    %s972 = smul.addr 1, 3
    %s973 = scalar_lea.vmem %s0, %s972
    %v974 = vld [vmem:[%s973] sm:%s971]
    %v975 = vunpack.c.0.s8 %v974
    %v976 = vunpack.c.1.s8 %v974
    %v977 = vunpack.c.2.s8 %v974
    %v978 = vunpack.c.3.s8 %v974
    %s979 = scalar_lea.vmem [#allocation1], 24
    %980 = vst [vmem:[%s979] sm:%s4] %v975
    %s981 = sand.u32 %s4, 15
    %p982 = scmp.ne.s32.totalorder %s981, 0
    %s983 = scalar_select %p982, 1, 0
    %s984 = sand.u32 %s4, 240
    %p985 = scmp.ne.s32.totalorder %s984, 0
    %s986 = scalar_select %p985, 2, 0
    %s987 = sor.u32 %s983, %s986
    %s988 = smul.addr 1, 2
    %s989 = scalar_lea.vmem %s0, %s988
    %v990 = vld [vmem:[%s989] sm:%s987]
    %v991 = vunpack.c.0.s8 %v990
    %v992 = vunpack.c.1.s8 %v990
    %v993 = vunpack.c.2.s8 %v990
    %v994 = vunpack.c.3.s8 %v990
    %s995 = scalar_lea.vmem [#allocation1], 16
    %996 = vst [vmem:[%s995] sm:%s4] %v991
    %s997 = sand.u32 %s4, 15
    %p998 = scmp.ne.s32.totalorder %s997, 0
    %s999 = scalar_select %p998, 1, 0
    %s1000 = sand.u32 %s4, 240
    %p1001 = scmp.ne.s32.totalorder %s1000, 0
    %s1002 = scalar_select %p1001, 2, 0
    %s1003 = sor.u32 %s999, %s1002
    %s1004 = scalar_lea.vmem %s0, 1
    %v1005 = vld [vmem:[%s1004] sm:%s1003]
    %v1006 = vunpack.c.0.s8 %v1005
    %v1007 = vunpack.c.1.s8 %v1005
    %v1008 = vunpack.c.2.s8 %v1005
    %v1009 = vunpack.c.3.s8 %v1005
    %s1010 = scalar_lea.vmem [#allocation1], 8
    %1011 = vst [vmem:[%s1010] sm:%s4] %v1006
    %s1012 = sand.u32 %s4, 15
    %p1013 = scmp.ne.s32.totalorder %s1012, 0
    %s1014 = scalar_select %p1013, 1, 0
    %s1015 = sand.u32 %s4, 240
    %p1016 = scmp.ne.s32.totalorder %s1015, 0
    %s1017 = scalar_select %p1016, 2, 0
    %s1018 = sor.u32 %s1014, %s1017
    %v1019 = vld [vmem:[%s0] sm:%s1018]
    %v1020 = vunpack.c.0.s8 %v1019
    %v1021 = vunpack.c.1.s8 %v1019
    %v1022 = vunpack.c.2.s8 %v1019
    %v1023 = vunpack.c.3.s8 %v1019
    %1024 = vst [vmem:[#allocation1] sm:%s4] %v1020
    %v1025 = vld [vmem:[#allocation1] ss:$8 sm:$0xf]
    %v1026 = vld [vmem:[#allocation1] ss:$8 sm:$0xf0]
    %vm1027 = vcmask 1047556
    %v1028 = vsel %vm1027, %v1026, %v1025
    %vm1029 = vcmask 130048
    %1030 = vst.msk [vmem:[#allocation0] sm:$0xff] %vm1029, %v1028
    %s1031 = scalar_lea.vmem [#allocation1], 64
    %v1032 = vld [vmem:[%s1031] ss:$8 sm:$0xf]
    %s1033 = scalar_lea.vmem [#allocation1], 64
    %v1034 = vld [vmem:[%s1033] ss:$8 sm:$0xf0]
    %vm1035 = vcmask 1047556
    %v1036 = vsel %vm1035, %v1034, %v1032
    %vm1037 = vcmask 130048
    %s1038 = scalar_lea.vmem [#allocation0], 8
    %1039 = vst.msk [vmem:[%s1038] sm:$0xff] %vm1037, %v1036
    %s1040 = scalar_lea.vmem [#allocation1], 128
    %v1041 = vld [vmem:[%s1040] ss:$8 sm:$0xf]
    %s1042 = scalar_lea.vmem [#allocation1], 128
    %v1043 = vld [vmem:[%s1042] ss:$8 sm:$0xf0]
    %vm1044 = vcmask 1047556
    %v1045 = vsel %vm1044, %v1043, %v1041
    %vm1046 = vcmask 130048
    %s1047 = scalar_lea.vmem [#allocation0], 16
    %1048 = vst.msk [vmem:[%s1047] sm:$0xff] %vm1046, %v1045
    %s1049 = scalar_lea.vmem [#allocation1], 192
    %v1050 = vld [vmem:[%s1049] ss:$8 sm:$0xf]
    %s1051 = scalar_lea.vmem [#allocation1], 192
    %v1052 = vld [vmem:[%s1051] ss:$8 sm:$0xf0]
    %vm1053 = vcmask 1047556
    %v1054 = vsel %vm1053, %v1052, %v1050
    %vm1055 = vcmask 130048
    %s1056 = scalar_lea.vmem [#allocation0], 24
    %1057 = vst.msk [vmem:[%s1056] sm:$0xff] %vm1055, %v1054
    %s1058 = scalar_lea.vmem [#allocation1], 256
    %v1059 = vld [vmem:[%s1058] ss:$8 sm:$0xf]
    %s1060 = scalar_lea.vmem [#allocation1], 256
    %v1061 = vld [vmem:[%s1060] ss:$8 sm:$0xf0]
    %vm1062 = vcmask 1047556
    %v1063 = vsel %vm1062, %v1061, %v1059
    %vm1064 = vcmask 130048
    %s1065 = scalar_lea.vmem [#allocation0], 32
    %1066 = vst.msk [vmem:[%s1065] sm:$0xff] %vm1064, %v1063
    %s1067 = scalar_lea.vmem [#allocation1], 320
    %v1068 = vld [vmem:[%s1067] ss:$8 sm:$0xf]
    %s1069 = scalar_lea.vmem [#allocation1], 320
    %v1070 = vld [vmem:[%s1069] ss:$8 sm:$0xf0]
    %vm1071 = vcmask 1047556
    %v1072 = vsel %vm1071, %v1070, %v1068
    %vm1073 = vcmask 130048
    %s1074 = scalar_lea.vmem [#allocation0], 40
    %1075 = vst.msk [vmem:[%s1074] sm:$0xff] %vm1073, %v1072
    %s1076 = scalar_lea.vmem [#allocation1], 384
    %v1077 = vld [vmem:[%s1076] ss:$8 sm:$0xf]
    %s1078 = scalar_lea.vmem [#allocation1], 384
    %v1079 = vld [vmem:[%s1078] ss:$8 sm:$0xf0]
    %vm1080 = vcmask 1047556
    %v1081 = vsel %vm1080, %v1079, %v1077
    %vm1082 = vcmask 130048
    %s1083 = scalar_lea.vmem [#allocation0], 48
    %1084 = vst.msk [vmem:[%s1083] sm:$0xff] %vm1082, %v1081
    %s1085 = scalar_lea.vmem [#allocation1], 448
    %v1086 = vld [vmem:[%s1085] ss:$8 sm:$0xf]
    %s1087 = scalar_lea.vmem [#allocation1], 448
    %v1088 = vld [vmem:[%s1087] ss:$8 sm:$0xf0]
    %vm1089 = vcmask 1047556
    %v1090 = vsel %vm1089, %v1088, %v1086
    %vm1091 = vcmask 130048
    %s1092 = scalar_lea.vmem [#allocation0], 56
    %1093 = vst.msk [vmem:[%s1092] sm:$0xff] %vm1091, %v1090
    %s1094 = scalar_lea.vmem [#allocation1], 3
    %v1095 = vld [vmem:[%s1094] ss:$8 sm:$0xf]
    %s1096 = scalar_lea.vmem [#allocation1], 3
    %v1097 = vld [vmem:[%s1096] ss:$8 sm:$0xf0]
    %vm1098 = vcmask 1047556
    %v1099 = vsel %vm1098, %v1097, %v1095
    %1100 = vrot.lane.b32.xlu0 %v1099, 48
    %v1101 = vpop.permute.xlu0 %1100
    %vm1102 = vcmask 523648
    %1103 = vst.msk [vmem:[#allocation0] sm:$0xff] %vm1102, %v1101
    %s1104 = scalar_lea.vmem [#allocation1], 259
    %v1105 = vld [vmem:[%s1104] ss:$8 sm:$0xf]
    %s1106 = scalar_lea.vmem [#allocation1], 259
    %v1107 = vld [vmem:[%s1106] ss:$8 sm:$0xf0]
    %vm1108 = vcmask 1047556
    %v1109 = vsel %vm1108, %v1107, %v1105
    %1110 = vrot.lane.b32.xlu0 %v1109, 48
    %v1111 = vpop.permute.xlu0 %1110
    %vm1112 = vcmask 523648
    %s1113 = scalar_lea.vmem [#allocation0], 32
    %1114 = vst.msk [vmem:[%s1113] sm:$0xff] %vm1112, %v1111
    %s1115 = scalar_lea.vmem [#allocation1], 67
    %v1116 = vld [vmem:[%s1115] ss:$8 sm:$0xf]
    %s1117 = scalar_lea.vmem [#allocation1], 67
    %v1118 = vld [vmem:[%s1117] ss:$8 sm:$0xf0]
    %vm1119 = vcmask 1047556
    %v1120 = vsel %vm1119, %v1118, %v1116
    %1121 = vrot.lane.b32.xlu0 %v1120, 48
    %v1122 = vpop.permute.xlu0 %1121
    %vm1123 = vcmask 523648
    %s1124 = scalar_lea.vmem [#allocation0], 8
    %1125 = vst.msk [vmem:[%s1124] sm:$0xff] %vm1123, %v1122
    %s1126 = scalar_lea.vmem [#allocation1], 323
    %v1127 = vld [vmem:[%s1126] ss:$8 sm:$0xf]
    %s1128 = scalar_lea.vmem [#allocation1], 323
    %v1129 = vld [vmem:[%s1128] ss:$8 sm:$0xf0]
    %vm1130 = vcmask 1047556
    %v1131 = vsel %vm1130, %v1129, %v1127
    %1132 = vrot.lane.b32.xlu0 %v1131, 48
    %v1133 = vpop.permute.xlu0 %1132
    %vm1134 = vcmask 523648
    %s1135 = scalar_lea.vmem [#allocation0], 40
    %1136 = vst.msk [vmem:[%s1135] sm:$0xff] %vm1134, %v1133
    %s1137 = scalar_lea.vmem [#allocation1], 131
    %v1138 = vld [vmem:[%s1137] ss:$8 sm:$0xf]
    %s1139 = scalar_lea.vmem [#allocation1], 131
    %v1140 = vld [vmem:[%s1139] ss:$8 sm:$0xf0]
    %vm1141 = vcmask 1047556
    %v1142 = vsel %vm1141, %v1140, %v1138
    %1143 = vrot.lane.b32.xlu0 %v1142, 48
    %v1144 = vpop.permute.xlu0 %1143
    %vm1145 = vcmask 523648
    %s1146 = scalar_lea.vmem [#allocation0], 16
    %1147 = vst.msk [vmem:[%s1146] sm:$0xff] %vm1145, %v1144
    %s1148 = scalar_lea.vmem [#allocation1], 387
    %v1149 = vld [vmem:[%s1148] ss:$8 sm:$0xf]
    %s1150 = scalar_lea.vmem [#allocation1], 387
    %v1151 = vld [vmem:[%s1150] ss:$8 sm:$0xf0]
    %vm1152 = vcmask 1047556
    %v1153 = vsel %vm1152, %v1151, %v1149
    %1154 = vrot.lane.b32.xlu0 %v1153, 48
    %v1155 = vpop.permute.xlu0 %1154
    %vm1156 = vcmask 523648
    %s1157 = scalar_lea.vmem [#allocation0], 48
    %1158 = vst.msk [vmem:[%s1157] sm:$0xff] %vm1156, %v1155
    %s1159 = scalar_lea.vmem [#allocation1], 195
    %v1160 = vld [vmem:[%s1159] ss:$8 sm:$0xf]
    %s1161 = scalar_lea.vmem [#allocation1], 195
    %v1162 = vld [vmem:[%s1161] ss:$8 sm:$0xf0]
    %vm1163 = vcmask 1047556
    %v1164 = vsel %vm1163, %v1162, %v1160
    %1165 = vrot.lane.b32.xlu0 %v1164, 48
    %v1166 = vpop.permute.xlu0 %1165
    %vm1167 = vcmask 523648
    %s1168 = scalar_lea.vmem [#allocation0], 24
    %1169 = vst.msk [vmem:[%s1168] sm:$0xff] %vm1167, %v1166
    %s1170 = scalar_lea.vmem [#allocation1], 451
    %v1171 = vld [vmem:[%s1170] ss:$8 sm:$0xf]
    %s1172 = scalar_lea.vmem [#allocation1], 451
    %v1173 = vld [vmem:[%s1172] ss:$8 sm:$0xf0]
    %vm1174 = vcmask 1047556
    %v1175 = vsel %vm1174, %v1173, %v1171
    %1176 = vrot.lane.b32.xlu0 %v1175, 48
    %v1177 = vpop.permute.xlu0 %1176
    %vm1178 = vcmask 523648
    %s1179 = scalar_lea.vmem [#allocation0], 56
    %1180 = vst.msk [vmem:[%s1179] sm:$0xff] %vm1178, %v1177
    %s1181 = scalar_lea.vmem [#allocation1], 2
    %v1182 = vld [vmem:[%s1181] ss:$8 sm:$0xf]
    %s1183 = scalar_lea.vmem [#allocation1], 2
    %v1184 = vld [vmem:[%s1183] ss:$8 sm:$0xf0]
    %vm1185 = vcmask 1047556
    %v1186 = vsel %vm1185, %v1184, %v1182
    %1187 = vrot.lane.b32.xlu0 %v1186, 32
    %v1188 = vpop.permute.xlu0 %1187
    %vm1189 = vcmask 392448
    %1190 = vst.msk [vmem:[#allocation0] sm:$0xff] %vm1189, %v1188
    %s1191 = scalar_lea.vmem [#allocation1], 258
    %v1192 = vld [vmem:[%s1191] ss:$8 sm:$0xf]
    %s1193 = scalar_lea.vmem [#allocation1], 258
    %v1194 = vld [vmem:[%s1193] ss:$8 sm:$0xf0]
    %vm1195 = vcmask 1047556
    %v1196 = vsel %vm1195, %v1194, %v1192
    %1197 = vrot.lane.b32.xlu0 %v1196, 32
    %v1198 = vpop.permute.xlu0 %1197
    %vm1199 = vcmask 392448
    %s1200 = scalar_lea.vmem [#allocation0], 32
    %1201 = vst.msk [vmem:[%s1200] sm:$0xff] %vm1199, %v1198
    %s1202 = scalar_lea.vmem [#allocation1], 66
    %v1203 = vld [vmem:[%s1202] ss:$8 sm:$0xf]
    %s1204 = scalar_lea.vmem [#allocation1], 66
    %v1205 = vld [vmem:[%s1204] ss:$8 sm:$0xf0]
    %vm1206 = vcmask 1047556
    %v1207 = vsel %vm1206, %v1205, %v1203
    %1208 = vrot.lane.b32.xlu0 %v1207, 32
    %v1209 = vpop.permute.xlu0 %1208
    %vm1210 = vcmask 392448
    %s1211 = scalar_lea.vmem [#allocation0], 8
    %1212 = vst.msk [vmem:[%s1211] sm:$0xff] %vm1210, %v1209
    %s1213 = scalar_lea.vmem [#allocation1], 322
    %v1214 = vld [vmem:[%s1213] ss:$8 sm:$0xf]
    %s1215 = scalar_lea.vmem [#allocation1], 322
    %v1216 = vld [vmem:[%s1215] ss:$8 sm:$0xf0]
    %vm1217 = vcmask 1047556
    %v1218 = vsel %vm1217, %v1216, %v1214
    %1219 = vrot.lane.b32.xlu0 %v1218, 32
    %v1220 = vpop.permute.xlu0 %1219
    %vm1221 = vcmask 392448
    %s1222 = scalar_lea.vmem [#allocation0], 40
    %1223 = vst.msk [vmem:[%s1222] sm:$0xff] %vm1221, %v1220
    %s1224 = scalar_lea.vmem [#allocation1], 130
    %v1225 = vld [vmem:[%s1224] ss:$8 sm:$0xf]
    %s1226 = scalar_lea.vmem [#allocation1], 130
    %v1227 = vld [vmem:[%s1226] ss:$8 sm:$0xf0]
    %vm1228 = vcmask 1047556
    %v1229 = vsel %vm1228, %v1227, %v1225
    %1230 = vrot.lane.b32.xlu0 %v1229, 32
    %v1231 = vpop.permute.xlu0 %1230
    %vm1232 = vcmask 392448
    %s1233 = scalar_lea.vmem [#allocation0], 16
    %1234 = vst.msk [vmem:[%s1233] sm:$0xff] %vm1232, %v1231
    %s1235 = scalar_lea.vmem [#allocation1], 386
    %v1236 = vld [vmem:[%s1235] ss:$8 sm:$0xf]
    %s1237 = scalar_lea.vmem [#allocation1], 386
    %v1238 = vld [vmem:[%s1237] ss:$8 sm:$0xf0]
    %vm1239 = vcmask 1047556
    %v1240 = vsel %vm1239, %v1238, %v1236
    %1241 = vrot.lane.b32.xlu0 %v1240, 32
    %v1242 = vpop.permute.xlu0 %1241
    %vm1243 = vcmask 392448
    %s1244 = scalar_lea.vmem [#allocation0], 48
    %1245 = vst.msk [vmem:[%s1244] sm:$0xff] %vm1243, %v1242
    %s1246 = scalar_lea.vmem [#allocation1], 194
    %v1247 = vld [vmem:[%s1246] ss:$8 sm:$0xf]
    %s1248 = scalar_lea.vmem [#allocation1], 194
    %v1249 = vld [vmem:[%s1248] ss:$8 sm:$0xf0]
    %vm1250 = vcmask 1047556
    %v1251 = vsel %vm1250, %v1249, %v1247
    %1252 = vrot.lane.b32.xlu0 %v1251, 32
    %v1253 = vpop.permute.xlu0 %1252
    %vm1254 = vcmask 392448
    %s1255 = scalar_lea.vmem [#allocation0], 24
    %1256 = vst.msk [vmem:[%s1255] sm:$0xff] %vm1254, %v1253
    %s1257 = scalar_lea.vmem [#allocation1], 450
    %v1258 = vld [vmem:[%s1257] ss:$8 sm:$0xf]
    %s1259 = scalar_lea.vmem [#allocation1], 450
    %v1260 = vld [vmem:[%s1259] ss:$8 sm:$0xf0]
    %vm1261 = vcmask 1047556
    %v1262 = vsel %vm1261, %v1260, %v1258
    %1263 = vrot.lane.b32.xlu0 %v1262, 32
    %v1264 = vpop.permute.xlu0 %1263
    %vm1265 = vcmask 392448
    %s1266 = scalar_lea.vmem [#allocation0], 56
    %1267 = vst.msk [vmem:[%s1266] sm:$0xff] %vm1265, %v1264
    %s1268 = scalar_lea.vmem [#allocation1], 1
    %v1269 = vld [vmem:[%s1268] ss:$8 sm:$0xf]
    %s1270 = scalar_lea.vmem [#allocation1], 1
    %v1271 = vld [vmem:[%s1270] ss:$8 sm:$0xf0]
    %vm1272 = vcmask 1047556
    %v1273 = vsel %vm1272, %v1271, %v1269
    %1274 = vrot.lane.b32.xlu0 %v1273, 16
    %v1275 = vpop.permute.xlu0 %1274
    %vm1276 = vcmask 261248
    %1277 = vst.msk [vmem:[#allocation0] sm:$0xff] %vm1276, %v1275
    %s1278 = scalar_lea.vmem [#allocation1], 257
    %v1279 = vld [vmem:[%s1278] ss:$8 sm:$0xf]
    %s1280 = scalar_lea.vmem [#allocation1], 257
    %v1281 = vld [vmem:[%s1280] ss:$8 sm:$0xf0]
    %vm1282 = vcmask 1047556
    %v1283 = vsel %vm1282, %v1281, %v1279
    %1284 = vrot.lane.b32.xlu0 %v1283, 16
    %v1285 = vpop.permute.xlu0 %1284
    %vm1286 = vcmask 261248
    %s1287 = scalar_lea.vmem [#allocation0], 32
    %1288 = vst.msk [vmem:[%s1287] sm:$0xff] %vm1286, %v1285
    %s1289 = scalar_lea.vmem [#allocation1], 65
    %v1290 = vld [vmem:[%s1289] ss:$8 sm:$0xf]
    %s1291 = scalar_lea.vmem [#allocation1], 65
    %v1292 = vld [vmem:[%s1291] ss:$8 sm:$0xf0]
    %vm1293 = vcmask 1047556
    %v1294 = vsel %vm1293, %v1292, %v1290
    %1295 = vrot.lane.b32.xlu0 %v1294, 16
    %v1296 = vpop.permute.xlu0 %1295
    %vm1297 = vcmask 261248
    %s1298 = scalar_lea.vmem [#allocation0], 8
    %1299 = vst.msk [vmem:[%s1298] sm:$0xff] %vm1297, %v1296
    %s1300 = scalar_lea.vmem [#allocation1], 321
    %v1301 = vld [vmem:[%s1300] ss:$8 sm:$0xf]
    %s1302 = scalar_lea.vmem [#allocation1], 321
    %v1303 = vld [vmem:[%s1302] ss:$8 sm:$0xf0]
    %vm1304 = vcmask 1047556
    %v1305 = vsel %vm1304, %v1303, %v1301
    %1306 = vrot.lane.b32.xlu0 %v1305, 16
    %v1307 = vpop.permute.xlu0 %1306
    %vm1308 = vcmask 261248
    %s1309 = scalar_lea.vmem [#allocation0], 40
    %1310 = vst.msk [vmem:[%s1309] sm:$0xff] %vm1308, %v1307
    %s1311 = scalar_lea.vmem [#allocation1], 129
    %v1312 = vld [vmem:[%s1311] ss:$8 sm:$0xf]
    %s1313 = scalar_lea.vmem [#allocation1], 129
    %v1314 = vld [vmem:[%s1313] ss:$8 sm:$0xf0]
    %vm1315 = vcmask 1047556
    %v1316 = vsel %vm1315, %v1314, %v1312
    %1317 = vrot.lane.b32.xlu0 %v1316, 16
    %v1318 = vpop.permute.xlu0 %1317
    %vm1319 = vcmask 261248
    %s1320 = scalar_lea.vmem [#allocation0], 16
    %1321 = vst.msk [vmem:[%s1320] sm:$0xff] %vm1319, %v1318
    %s1322 = scalar_lea.vmem [#allocation1], 385
    %v1323 = vld [vmem:[%s1322] ss:$8 sm:$0xf]
    %s1324 = scalar_lea.vmem [#allocation1], 385
    %v1325 = vld [vmem:[%s1324] ss:$8 sm:$0xf0]
    %vm1326 = vcmask 1047556
    %v1327 = vsel %vm1326, %v1325, %v1323
    %1328 = vrot.lane.b32.xlu0 %v1327, 16
    %v1329 = vpop.permute.xlu0 %1328
    %vm1330 = vcmask 261248
    %s1331 = scalar_lea.vmem [#allocation0], 48
    %1332 = vst.msk [vmem:[%s1331] sm:$0xff] %vm1330, %v1329
    %s1333 = scalar_lea.vmem [#allocation1], 193
    %v1334 = vld [vmem:[%s1333] ss:$8 sm:$0xf]
    %s1335 = scalar_lea.vmem [#allocation1], 193
    %v1336 = vld [vmem:[%s1335] ss:$8 sm:$0xf0]
    %vm1337 = vcmask 1047556
    %v1338 = vsel %vm1337, %v1336, %v1334
    %1339 = vrot.lane.b32.xlu0 %v1338, 16
    %v1340 = vpop.permute.xlu0 %1339
    %vm1341 = vcmask 261248
    %s1342 = scalar_lea.vmem [#allocation0], 24
    %1343 = vst.msk [vmem:[%s1342] sm:$0xff] %vm1341, %v1340
    %s1344 = scalar_lea.vmem [#allocation1], 449
    %v1345 = vld [vmem:[%s1344] ss:$8 sm:$0xf]
    %s1346 = scalar_lea.vmem [#allocation1], 449
    %v1347 = vld [vmem:[%s1346] ss:$8 sm:$0xf0]
    %vm1348 = vcmask 1047556
    %v1349 = vsel %vm1348, %v1347, %v1345
    %1350 = vrot.lane.b32.xlu0 %v1349, 16
    %v1351 = vpop.permute.xlu0 %1350
    %vm1352 = vcmask 261248
    %s1353 = scalar_lea.vmem [#allocation0], 56
    %1354 = vst.msk [vmem:[%s1353] sm:$0xff] %vm1352, %v1351
    %s1356 = smul.u32 2, 4
    %s1357 = sshllo.u32 0, %s1356
    %s1358 = sshrl.u32 %s1356, 2
    %v1359 = vld [vmem:[#allocation0] sm:%s1357]
    %s1360 = sshllo.u32 0, %s1358
    %v1361 = vpack.c.b16 0, %v1359
    %v1362 = vpack.c.b8 0, %v1361
    %1363 = vst [vmem:[%s1] sm:%s1360] %v1362
    %s1364 = scalar_lea.vmem [#allocation0], 8
    %v1365 = vld [vmem:[%s1364] sm:%s1357]
    %s1366 = sshllo.u32 0, %s1358
    %s1367 = scalar_lea.vmem %s1, 2
    %v1368 = vpack.c.b16 0, %v1365
    %v1369 = vpack.c.b8 0, %v1368
    %1370 = vst [vmem:[%s1367] sm:%s1366] %v1369
    %s1371 = scalar_lea.vmem [#allocation0], 16
    %v1372 = vld [vmem:[%s1371] sm:%s1357]
    %s1373 = sshllo.u32 0, %s1358
    %s1374 = smul.addr 2, 2
    %s1375 = scalar_lea.vmem %s1, %s1374
    %v1376 = vpack.c.b16 0, %v1372
    %v1377 = vpack.c.b8 0, %v1376
    %1378 = vst [vmem:[%s1375] sm:%s1373] %v1377
    %s1379 = scalar_lea.vmem [#allocation0], 24
    %v1380 = vld [vmem:[%s1379] sm:%s1357]
    %s1381 = sshllo.u32 0, %s1358
    %s1382 = smul.addr 2, 3
    %s1383 = scalar_lea.vmem %s1, %s1382
    %v1384 = vpack.c.b16 0, %v1380
    %v1385 = vpack.c.b8 0, %v1384
    %1386 = vst [vmem:[%s1383] sm:%s1381] %v1385
    %s1387 = scalar_lea.vmem [#allocation0], 32
    %v1388 = vld [vmem:[%s1387] sm:%s1357]
    %s1389 = sshllo.u32 0, %s1358
    %s1390 = smul.addr 2, 4
    %s1391 = scalar_lea.vmem %s1, %s1390
    %v1392 = vpack.c.b16 0, %v1388
    %v1393 = vpack.c.b8 0, %v1392
    %1394 = vst [vmem:[%s1391] sm:%s1389] %v1393
    %s1395 = scalar_lea.vmem [#allocation0], 40
    %v1396 = vld [vmem:[%s1395] sm:%s1357]
    %s1397 = sshllo.u32 0, %s1358
    %s1398 = smul.addr 2, 5
    %s1399 = scalar_lea.vmem %s1, %s1398
    %v1400 = vpack.c.b16 0, %v1396
    %v1401 = vpack.c.b8 0, %v1400
    %1402 = vst [vmem:[%s1399] sm:%s1397] %v1401
    %s1403 = scalar_lea.vmem [#allocation0], 48
    %v1404 = vld [vmem:[%s1403] sm:%s1357]
    %s1405 = sshllo.u32 0, %s1358
    %s1406 = smul.addr 2, 6
    %s1407 = scalar_lea.vmem %s1, %s1406
    %v1408 = vpack.c.b16 0, %v1404
    %v1409 = vpack.c.b8 0, %v1408
    %1410 = vst [vmem:[%s1407] sm:%s1405] %v1409
    %s1411 = scalar_lea.vmem [#allocation0], 56
    %v1412 = vld [vmem:[%s1411] sm:%s1357]
    %s1413 = sshllo.u32 0, %s1358
    %s1414 = smul.addr 2, 7
    %s1415 = scalar_lea.vmem %s1, %s1414
    %v1416 = vpack.c.b16 0, %v1412
    %v1417 = vpack.c.b8 0, %v1416
    %1418 = vst [vmem:[%s1415] sm:%s1413] %v1417

// kernel: encoder_forward.1
$region0: #{encoder_forward.1}
  #allocation0 [shape = 'u32[]', space=smem, size = 0x4, offset = 0x4, fixed_abs, tag = 'smem constant byte address 0x4 - core index']
  #allocation1 [shape = 'u32[144,128]{1,0:T(1,128)}', space=vmem, size = 0x12000, scoped, tag = 'internal scratch']
  %s0 = inlined_call_operand.vmem [shape: s32[16,1], index: 0, kind: input, shape index: {}]
  %s1 = inlined_call_operand.vmem [shape: f32[56,32], index: 1, kind: input, shape index: {}]
  %s2 = inlined_call_operand.vmem [shape: f32[16,32], index: 2, kind: input, shape index: {}]
  %s3 = inlined_call_operand.vmem [shape: f32[64,64], index: 3, kind: input, shape index: {}]
  %s4 = inlined_call_operand.vmem [shape: f32[2,32,160], index: 4, kind: input, shape index: {}]
  %s5 = inlined_call_operand.vmem [shape: f32[2,96,32], index: 5, kind: input, shape index: {}]
  %s6 = inlined_call_operand.vmem [shape: f32[3,8,96], index: 6, kind: input, shape index: {}]
  %s7 = inlined_call_operand.hbm [shape: f32[16,32], index: 7, kind: output, shape index: {}]
  %s8 = sld [smem:[#allocation0]]
  $region38: #{encoder_forward.1} parent=0
    _
  %s10 = ssub.s32 1, %s8
  %s11 = scalar_select 0, %s10, %s8
  $region1: #{encoder_forward.1} parent=0
    #allocation2 [shape = 'u8[8192]{0}', space=vmem, size = 0x2000, scoped, tag = 'output window, operand 0, single buffered']
    #allocation3 [shape = 's32[1]{0}', space=sflag, size = 0x4, scoped, tag = 'scoped memory for encoder_forward.1']
    %12 = vsyncpa [#allocation3], 0
    // Predicated region
    $region2: #{encoder_forward.1} parent=1 // pred_check
      _
    $region3: #{encoder_forward.1} parent=1 // pred_check_branch
      %14 = sbr.rel (0) target = $region5
    $region4: #{encoder_forward.1} parent=1 // pred_region
      _
    $region5: #{encoder_forward.1} parent=1 // pred_fallthru
      _
    // Predicated region
    $region6: #{encoder_forward.1} parent=1 // pred_check
      _
    $region7: #{encoder_forward.1} parent=1 // pred_check_branch
      %16 = sbr.rel (0) target = $region9
    $region8: #{encoder_forward.1} parent=1 // pred_region
      _
    $region9: #{encoder_forward.1} parent=1 // pred_fallthru
      _
    // Predicated region
    $region10: #{encoder_forward.1} parent=1 // pred_check
      _
    $region11: #{encoder_forward.1} parent=1 // pred_check_branch
      %18 = sbr.rel (0) target = $region13
    $region12: #{encoder_forward.1} parent=1 // pred_region
      _
    $region13: #{encoder_forward.1} parent=1 // pred_fallthru
      _
    // Predicated region
    $region14: #{encoder_forward.1} parent=1 // pred_check
      _
    $region15: #{encoder_forward.1} parent=1 // pred_check_branch
      %20 = sbr.rel (0) target = $region17
    $region16: #{encoder_forward.1} parent=1 // pred_region
      _
    $region17: #{encoder_forward.1} parent=1 // pred_fallthru
      _
    // Predicated region
    $region18: #{encoder_forward.1} parent=1 // pred_check
      _
    $region19: #{encoder_forward.1} parent=1 // pred_check_branch
      %22 = sbr.rel (0) target = $region21
    $region20: #{encoder_forward.1} parent=1 // pred_region
      _
    $region21: #{encoder_forward.1} parent=1 // pred_fallthru
      _
    // Predicated region
    $region22: #{encoder_forward.1} parent=1 // pred_check
      _
    $region23: #{encoder_forward.1} parent=1 // pred_check_branch
      %24 = sbr.rel (0) target = $region25
    $region24: #{encoder_forward.1} parent=1 // pred_region
      _
    $region25: #{encoder_forward.1} parent=1 // pred_fallthru
      _
    // Predicated region
    $region26: #{encoder_forward.1} parent=1 // pred_check
      _
    $region27: #{encoder_forward.1} parent=1 // pred_check_branch
      %26 = sbr.rel (0) target = $region29
    $region28: #{encoder_forward.1} parent=1 // pred_region
      _
    $region29: #{encoder_forward.1} parent=1 // pred_fallthru
      _
    %v27 = vld [vmem:[%s0] sm:$0xff]
    %v28 = vld [vmem:[%s0 + $0x8] sm:$0xff]
    %v29 = vlaneseq
    %v30 = vand.u32 %v29, 127
    %31 = vset.pattern.permute.xlu0 0
    %32 = vperm.xlu0 %31, %v27
    %v33 = vpop.permute.xlu0 %32
    %34 = vset.pattern.permute.xlu0 0
    %35 = vperm.xlu0 %34, %v28
    %v36 = vpop.permute.xlu0 %35
    %vm37 = vcmp.eq.s32.totalorder %v33, %v30
    %vm38 = vcmp.eq.s32.totalorder %v36, %v30
    %v39 = vsel %vm37, 1, 0
    %v40 = vsel %vm38, 1, 0
    %v41 = vcvt.s32.f32 %v39
    %v42 = vcvt.s32.f32 %v40
    %v43 = vld [vmem:[%s1] sm:$0xff]
    %v44 = vld [vmem:[%s1 + $0x8] sm:$0xff]
    %v45 = vld [vmem:[%s1 + $0x10] sm:$0xff]
    %v46 = vld [vmem:[%s1 + $0x18] sm:$0xff]
    %v47 = vld [vmem:[%s1 + $0x20] sm:$0xff]
    %v48 = vld [vmem:[%s1 + $0x28] sm:$0xff]
    %v49 = vld [vmem:[%s1 + $0x30] sm:$0xff]
    %vm50 = vcmask 457728
    %v52 = vsel %vm50, %v41, 0
    %v55 = vsel %vm50, %v42, 0
    %57 = vmatprep.subr.mxu0 0.0
    %58 = vmatpush1.msra.mxu0 %v43
    %59 = vmatprep.subr.mxu0 0.0
    %60 = vmatpush1.msra.mxu0 %v44
    %61 = vmatprep.subr.mxu0 0.0
    %62 = vmatpush1.msra.mxu0 %v45
    %63 = vmatprep.subr.mxu0 0.0
    %64 = vmatpush1.msra.mxu0 %v46
    %65 = vmatprep.subr.mxu0 0.0
    %66 = vmatpush1.msra.mxu0 %v47
    %67 = vmatprep.subr.mxu0 0.0
    %68 = vmatpush1.msra.mxu0 %v48
    %69 = vmatprep.subr.mxu0 0.0
    %70 = vmatpush1.msra.mxu0 %v49
    %71 = vmatprep.subr.mxu0 0.0
    %72 = vmatpush1.msra.mxu0 0.0
    %73 = vmatprep.subr.mxu0 0.0
    %74 = vmatpush1.msra.mxu0 0.0
    %75 = vmatprep.subr.mxu0 0.0
    %76 = vmatpush1.msra.mxu0 0.0
    %77 = vmatprep.subr.mxu0 0.0
    %78 = vmatpush1.msra.mxu0 0.0
    %79 = vmatprep.subr.mxu0 0.0
    %80 = vmatpush1.msra.mxu0 0.0
    %81 = vmatprep.subr.mxu0 0.0
    %82 = vmatpush1.msra.mxu0 0.0
    %83 = vmatprep.subr.mxu0 0.0
    %84 = vmatpush1.msra.mxu0 0.0
    %85 = vmatprep.subr.mxu0 0.0
    %86 = vmatpush1.msra.mxu0 0.0
    %87 = vmatprep.subr.mxu0 0.0
    %88 = vmatpush1.msra.mxu0 0.0
    %89 = vmatprep.subr.mxu0 0.0
    %90 = vmatpush1.msra.mxu0 0.0
    %91 = vmatprep.subr.mxu0 0.0
    %92 = vmatpush1.msra.mxu0 0.0
    %93 = vmatprep.subr.mxu0 0.0
    %94 = vmatpush1.msra.mxu0 0.0
    %95 = vmatprep.subr.mxu0 0.0
    %96 = vmatpush1.msra.mxu0 0.0
    %97 = vmatprep.subr.mxu0 0.0
    %98 = vmatpush1.msra.mxu0 0.0
    %99 = vmatprep.subr.mxu0 0.0
    %100 = vmatpush1.msra.mxu0 0.0
    %101 = vmatprep.subr.mxu0 0.0
    %102 = vmatpush1.msra.mxu0 0.0
    %103 = vmatprep.subr.mxu0 0.0
    %104 = vmatpush1.msra.mxu0 0.0
    %105 = vmatprep.subr.mxu0 0.0
    %106 = vmatpush1.msra.mxu0 0.0
    %107 = vmatprep.subr.mxu0 0.0
    %108 = vmatpush1.msra.mxu0 0.0
    %109 = vmatprep.subr.mxu0 0.0
    %110 = vmatpush1.msra.mxu0 0.0
    %111 = vmatprep.subr.mxu0 0.0
    %112 = vmatpush1.msra.mxu0 0.0
    %113 = vmatprep.subr.mxu0 0.0
    %114 = vmatpush1.msra.mxu0 0.0
    %115 = vmatprep.subr.mxu0 0.0
    %116 = vmatpush1.msra.mxu0 0.0
    %117 = vmatprep.subr.mxu0 0.0
    %118 = vmatpush1.msra.mxu0 0.0
    %119 = vmatprep.subr.mxu0 0.0
    %120 = vmatpush1.msra.mxu0 0.0
    %121 = vmatprep.mubr.f32.mxu0 0.0
    %122 = vmatmul.mubr.f32.gmra.mrb[0].mxu0 %v52
    %v123 = vpop.f32.mrb[0].mxu0
    %v124 = vadd.f32 0.0, %v123
    %v125 = vpop.f32.mrb[0].mxu0
    %126 = vmatprep.mubr.f32.mxu0 0.0
    %127 = vmatmul.mubr.f32.gmra.mrb[0].mxu0 %v55
    %v128 = vpop.f32.mrb[0].mxu0
    %v129 = vadd.f32 0.0, %v128
    %v130 = vpop.f32.mrb[0].mxu0
    %131 = vdwg.mxu0
    %v132 = vmul.f32 %v124, 5.656854
    %v133 = vmul.f32 %v129, 5.656854
    %v134 = vld [vmem:[%s2] sm:$0xff]
    %v135 = vld [vmem:[%s2 + $0x8] sm:$0xff]
    %v136 = vadd.f32 %v132, %v134
    %v137 = vadd.f32 %v133, %v135
    %v138 = vld [vmem:[%s3] sm:$0xff]
    %v139 = vld [vmem:[%s3 + $0x8] sm:$0xff]
    %v140 = vld [vmem:[%s3 + $0x10] sm:$0xff]
    %v141 = vld [vmem:[%s3 + $0x18] sm:$0xff]
    %v142 = vld [vmem:[%s3 + $0x20] sm:$0xff]
    %v143 = vld [vmem:[%s3 + $0x28] sm:$0xff]
    %v144 = vld [vmem:[%s3 + $0x30] sm:$0xff]
    %v145 = vld [vmem:[%s3 + $0x38] sm:$0xff]
    %v146 = vld [vmem:[%s4] sm:$0xff]
    %v147 = vld [vmem:[%s4 + $0x8] sm:$0xff]
    %v148 = vld [vmem:[%s4 + $0x10] sm:$0xff]
    %v149 = vld [vmem:[%s4 + $0x18] sm:$0xff]
    %v150 = vld [vmem:[%s4 + $0x20] sm:$0xff]
    %v151 = vld [vmem:[%s4 + $0x28] sm:$0xff]
    %v152 = vld [vmem:[%s4 + $0x30] sm:$0xff]
    %v153 = vld [vmem:[%s4 + $0x38] sm:$0xff]
    %v154 = vld [vmem:[%s5] sm:$0xff]
    %v155 = vld [vmem:[%s5 + $0x8] sm:$0xff]
    %v156 = vld [vmem:[%s5 + $0x10] sm:$0xff]
    %v157 = vld [vmem:[%s5 + $0x18] sm:$0xff]
    %v158 = vld [vmem:[%s5 + $0x20] sm:$0xff]
    %v159 = vld [vmem:[%s5 + $0x28] sm:$0xff]
    %v160 = vld [vmem:[%s5 + $0x30] sm:$0xff]
    %v161 = vld [vmem:[%s5 + $0x38] sm:$0xff]
    %v162 = vld [vmem:[%s5 + $0x40] sm:$0xff]
    %v163 = vld [vmem:[%s5 + $0x48] sm:$0xff]
    %v164 = vld [vmem:[%s5 + $0x50] sm:$0xff]
    %v165 = vld [vmem:[%s5 + $0x58] sm:$0xff]
    %v166 = vld [vmem:[%s6] sm:$0xff]
    %v167 = vlaneseq
    %v168 = vshrl.u32 %v167, 7
    %v169 = vsub.s32 0, %v168
    %v170 = vrot.slane %v166, %v169
    %vm171 = vcmask 261120
    %v173 = vsel %vm171, %v136, 0
    %v176 = vsel %vm171, %v137, 0
    %178 = vmatprep.subr.mxu0 0.0
    %179 = vmatpush1.msra.mxu0 %v146
    %180 = vmatprep.subr.mxu0 0.0
    %181 = vmatpush1.msra.mxu0 %v148
    %182 = vmatprep.subr.mxu0 0.0
    %183 = vmatpush1.msra.mxu0 %v150
    %184 = vmatprep.subr.mxu0 0.0
    %185 = vmatpush1.msra.mxu0 %v152
    %186 = vmatprep.subr.mxu0 0.0
    %187 = vmatpush1.msra.mxu0 0.0
    %188 = vmatprep.subr.mxu0 0.0
    %189 = vmatpush1.msra.mxu0 0.0
    %190 = vmatprep.subr.mxu0 0.0
    %191 = vmatpush1.msra.mxu0 0.0
    %192 = vmatprep.subr.mxu0 0.0
    %193 = vmatpush1.msra.mxu0 0.0
    %194 = vmatprep.subr.mxu0 0.0
    %195 = vmatpush1.msra.mxu0 0.0
    %196 = vmatprep.subr.mxu0 0.0
    %197 = vmatpush1.msra.mxu0 0.0
    %198 = vmatprep.subr.mxu0 0.0
    %199 = vmatpush1.msra.mxu0 0.0
    %200 = vmatprep.subr.mxu0 0.0
    %201 = vmatpush1.msra.mxu0 0.0
    %202 = vmatprep.subr.mxu0 0.0
    %203 = vmatpush1.msra.mxu0 0.0
    %204 = vmatprep.subr.mxu0 0.0
    %205 = vmatpush1.msra.mxu0 0.0
    %206 = vmatprep.subr.mxu0 0.0
    %207 = vmatpush1.msra.mxu0 0.0
    %208 = vmatprep.subr.mxu0 0.0
    %209 = vmatpush1.msra.mxu0 0.0
    %210 = vmatprep.subr.mxu0 0.0
    %211 = vmatpush1.msra.mxu0 0.0
    %212 = vmatprep.subr.mxu0 0.0
    %213 = vmatpush1.msra.mxu0 0.0
    %214 = vmatprep.subr.mxu0 0.0
    %215 = vmatpush1.msra.mxu0 0.0
    %216 = vmatprep.subr.mxu0 0.0
    %217 = vmatpush1.msra.mxu0 0.0
    %218 = vmatprep.subr.mxu0 0.0
    %219 = vmatpush1.msra.mxu0 0.0
    %220 = vmatprep.subr.mxu0 0.0
    %221 = vmatpush1.msra.mxu0 0.0
    %222 = vmatprep.subr.mxu0 0.0
    %223 = vmatpush1.msra.mxu0 0.0
    %224 = vmatprep.subr.mxu0 0.0
    %225 = vmatpush1.msra.mxu0 0.0
    %226 = vmatprep.subr.mxu0 0.0
    %227 = vmatpush1.msra.mxu0 0.0
    %228 = vmatprep.subr.mxu0 0.0
    %229 = vmatpush1.msra.mxu0 0.0
    %230 = vmatprep.subr.mxu0 0.0
    %231 = vmatpush1.msra.mxu0 0.0
    %232 = vmatprep.subr.mxu0 0.0
    %233 = vmatpush1.msra.mxu0 0.0
    %234 = vmatprep.subr.mxu0 0.0
    %235 = vmatpush1.msra.mxu0 0.0
    %236 = vmatprep.subr.mxu0 0.0
    %237 = vmatpush1.msra.mxu0 0.0
    %238 = vmatprep.subr.mxu0 0.0
    %239 = vmatpush1.msra.mxu0 0.0
    %240 = vmatprep.subr.mxu0 0.0
    %241 = vmatpush1.msra.mxu0 0.0
    %242 = vmatprep.mubr.f32.mxu0 0.0
    %243 = vmatmul.mubr.f32.gmra.mrb[0].mxu0 %v173
    %v244 = vpop.f32.mrb[0].mxu0
    %v245 = vadd.f32 %v170, %v244
    %v246 = vpop.f32.mrb[0].mxu0
    %247 = vmatprep.mubr.f32.mxu0 0.0
    %248 = vmatmul.mubr.f32.gmra.mrb[0].mxu0 %v176
    %v249 = vpop.f32.mrb[0].mxu0
    %v250 = vadd.f32 %v170, %v249
    %v251 = vpop.f32.mrb[0].mxu0
    %252 = vdwg.mxu0
    %255 = vrot.lane.b32.xlu0 %v245, 120
    %v256 = vpop.permute.xlu0 %255
    %257 = vrot.lane.b32.xlu0 %v250, 120
    %v258 = vpop.permute.xlu0 %257
    %259 = vrot.lane.b32.xlu0 %v245, 112
    %v260 = vpop.permute.xlu0 %259
    %261 = vrot.lane.b32.xlu0 %v250, 112
    %v262 = vpop.permute.xlu0 %261
    %263 = vrot.lane.b32.xlu0 %v245, 104
    %v264 = vpop.permute.xlu0 %263
    %265 = vrot.lane.b32.xlu0 %v250, 104
    %v266 = vpop.permute.xlu0 %265
    %267 = vrot.lane.b32.xlu0 %v245, 96
    %v268 = vpop.permute.xlu0 %267
    %269 = vrot.lane.b32.xlu0 %v250, 96
    %v270 = vpop.permute.xlu0 %269
    %271 = vrot.lane.b32.xlu0 %v256, 96
    %v272 = vpop.permute.xlu0 %271
    %273 = vrot.lane.b32.xlu0 %v258, 96
    %v274 = vpop.permute.xlu0 %273
    %275 = vrot.lane.b32.xlu0 %v260, 96
    %v276 = vpop.permute.xlu0 %275
    %277 = vrot.lane.b32.xlu0 %v262, 96
    %v278 = vpop.permute.xlu0 %277
    %279 = vrot.lane.b32.xlu0 %v264, 96
    %v280 = vpop.permute.xlu0 %279
    %281 = vrot.lane.b32.xlu0 %v266, 96
    %v282 = vpop.permute.xlu0 %281
    %vm283 = vcmask 64512
    %v284 = vsel %vm283, %v245, 0
    %v286 = vsel %vm283, %v250, 0
    %v288 = vsel %vm283, %v256, 0
    %v290 = vsel %vm283, %v258, 0
    %v292 = vsel %vm283, %v260, 0
    %v294 = vsel %vm283, %v262, 0
    %v296 = vsel %vm283, %v264, 0
    %v298 = vsel %vm283, %v266, 0
    %v300 = vsel %vm283, %v268, 0
    %v302 = vsel %vm283, %v270, 0
    %v304 = vsel %vm283, %v272, 0
    %v306 = vsel %vm283, %v274, 0
    %v308 = vsel %vm283, %v276, 0
    %v310 = vsel %vm283, %v278, 0
    %v312 = vsel %vm283, %v280, 0
    %v314 = vsel %vm283, %v282, 0
    %316 = vmatprep.subr.mxu0 0.0
    %317 = vmatpush1.xpose.msra.mxu0 %v300
    %318 = vmatprep.subr.mxu0 0.0
    %319 = vmatpush1.xpose.msra.mxu0 %v302
    %320 = vmatprep.subr.mxu0 0.0
    %321 = vmatpush1.xpose.msra.mxu0 %v304
    %322 = vmatprep.subr.mxu0 0.0
    %323 = vmatpush1.xpose.msra.mxu0 %v306
    %324 = vmatprep.subr.mxu0 0.0
    %325 = vmatpush1.xpose.msra.mxu0 %v308
    %326 = vmatprep.subr.mxu0 0.0
    %327 = vmatpush1.xpose.msra.mxu0 %v310
    %328 = vmatprep.subr.mxu0 0.0
    %329 = vmatpush1.xpose.msra.mxu0 %v312
    %330 = vmatprep.subr.mxu0 0.0
    %331 = vmatpush1.xpose.msra.mxu0 %v314
    %332 = vmatprep.subr.mxu0 0.0
    %333 = vmatpush1.xpose.msra.mxu0 0.0
    %334 = vmatprep.subr.mxu0 0.0
    %335 = vmatpush1.xpose.msra.mxu0 0.0
    %336 = vmatprep.subr.mxu0 0.0
    %337 = vmatpush1.xpose.msra.mxu0 0.0
    %338 = vmatprep.subr.mxu0 0.0
    %339 = vmatpush1.xpose.msra.mxu0 0.0
    %340 = vmatprep.subr.mxu0 0.0
    %341 = vmatpush1.xpose.msra.mxu0 0.0
    %342 = vmatprep.subr.mxu0 0.0
    %343 = vmatpush1.xpose.msra.mxu0 0.0
    %344 = vmatprep.subr.mxu0 0.0
    %345 = vmatpush1.xpose.msra.mxu0 0.0
    %346 = vmatprep.subr.mxu0 0.0
    %347 = vmatpush1.xpose.msra.mxu0 0.0
    %348 = vmatprep.subr.mxu0 0.0
    %349 = vmatpush1.xpose.msra.mxu0 0.0
    %350 = vmatprep.subr.mxu0 0.0
    %351 = vmatpush1.xpose.msra.mxu0 0.0
    %352 = vmatprep.subr.mxu0 0.0
    %353 = vmatpush1.xpose.msra.mxu0 0.0
    %354 = vmatprep.subr.mxu0 0.0
    %355 = vmatpush1.xpose.msra.mxu0 0.0
    %356 = vmatprep.subr.mxu0 0.0
    %357 = vmatpush1.xpose.msra.mxu0 0.0
    %358 = vmatprep.subr.mxu0 0.0
    %359 = vmatpush1.xpose.msra.mxu0 0.0
    %360 = vmatprep.subr.mxu0 0.0
    %361 = vmatpush1.xpose.msra.mxu0 0.0
    %362 = vmatprep.subr.mxu0 0.0
    %363 = vmatpush1.xpose.msra.mxu0 0.0
    %364 = vmatprep.subr.mxu0 0.0
    %365 = vmatpush1.xpose.msra.mxu0 0.0
    %366 = vmatprep.subr.mxu0 0.0
    %367 = vmatpush1.xpose.msra.mxu0 0.0
    %368 = vmatprep.subr.mxu0 0.0
    %369 = vmatpush1.xpose.msra.mxu0 0.0
    %370 = vmatprep.subr.mxu0 0.0
    %371 = vmatpush1.xpose.msra.mxu0 0.0
    %372 = vmatprep.subr.mxu0 0.0
    %373 = vmatpush1.xpose.msra.mxu0 0.0
    %374 = vmatprep.subr.mxu0 0.0
    %375 = vmatpush1.xpose.msra.mxu0 0.0
    %376 = vmatprep.subr.mxu0 0.0
    %377 = vmatpush1.xpose.msra.mxu0 0.0
    %378 = vmatprep.subr.mxu0 0.0
    %379 = vmatpush1.xpose.msra.mxu0 0.0
    %380 = vmatprep.mubr.f32.mxu0 0.0
    %381 = vmatmul.mubr.f32.gmra.mrb[0].mxu0 %v284
    %v382 = vpop.f32.mrb[0].mxu0
    %v383 = vadd.f32 0.0, %v382
    %v384 = vpop.f32.mrb[0].mxu0
    %385 = vmatprep.mubr.f32.mxu0 0.0
    %386 = vmatmul.mubr.f32.gmra.mrb[0].mxu0 %v286
    %v387 = vpop.f32.mrb[0].mxu0
    %v388 = vadd.f32 0.0, %v387
    %v389 = vpop.f32.mrb[0].mxu0
    %390 = vmatprep.mubr.f32.mxu0 0.0
    %391 = vmatmul.mubr.f32.gmra.mrb[0].mxu0 %v288
    %v392 = vpop.f32.mrb[0].mxu0
    %v393 = vadd.f32 0.0, %v392
    %v394 = vpop.f32.mrb[0].mxu0
    %395 = vmatprep.mubr.f32.mxu0 0.0
    %396 = vmatmul.mubr.f32.gmra.mrb[0].mxu0 %v290
    %v397 = vpop.f32.mrb[0].mxu0
    %v398 = vadd.f32 0.0, %v397
    %v399 = vpop.f32.mrb[0].mxu0
    %400 = vmatprep.mubr.f32.mxu0 0.0
    %401 = vmatmul.mubr.f32.gmra.mrb[0].mxu0 %v292
    %v402 = vpop.f32.mrb[0].mxu0
    %v403 = vadd.f32 0.0, %v402
    %v404 = vpop.f32.mrb[0].mxu0
    %405 = vmatprep.mubr.f32.mxu0 0.0
    %406 = vmatmul.mubr.f32.gmra.mrb[0].mxu0 %v294
    %v407 = vpop.f32.mrb[0].mxu0
    %v408 = vadd.f32 0.0, %v407
    %v409 = vpop.f32.mrb[0].mxu0
    %410 = vmatprep.mubr.f32.mxu0 0.0
    %411 = vmatmul.mubr.f32.gmra.mrb[0].mxu0 %v296
    %v412 = vpop.f32.mrb[0].mxu0
    %v413 = vadd.f32 0.0, %v412
    %v414 = vpop.f32.mrb[0].mxu0
    %415 = vmatprep.mubr.f32.mxu0 0.0
    %416 = vmatmul.mubr.f32.gmra.mrb[0].mxu0 %v298
    %v417 = vpop.f32.mrb[0].mxu0
    %v418 = vadd.f32 0.0, %v417
    %v419 = vpop.f32.mrb[0].mxu0
    %420 = vdwg.mxu0
    %v421 = vmul.f32 %v383, 0.35355338
    %v422 = vmul.f32 %v388, 0.35355338
    %v423 = vmul.f32 %v393, 0.35355338
    %v424 = vmul.f32 %v398, 0.35355338
    %v425 = vmul.f32 %v403, 0.35355338
    %v426 = vmul.f32 %v408, 0.35355338
    %v427 = vmul.f32 %v413, 0.35355338
    %v428 = vmul.f32 %v418, 0.35355338
    %v429 = vadd.f32 %v421, %v138
    %v430 = vadd.f32 %v422, %v139
    %v431 = vadd.f32 %v423, %v140
    %v432 = vadd.f32 %v424, %v141
    %v433 = vadd.f32 %v425, %v142
    %v434 = vadd.f32 %v426, %v143
    %v435 = vadd.f32 %v427, %v144
    %v436 = vadd.f32 %v428, %v145
    %vm437 = vcmask 523264
    %v438 = vsel %vm437, %v429, -inf
    %439 = vmax.xlane.f32.xlu0 %v438
    %v440 = vpop.xlane.xlu0 %439
    %v441 = vsel %vm437, %v430, -inf
    %442 = vmax.xlane.f32.xlu0 %v441
    %v443 = vpop.xlane.xlu0 %442
    %v444 = vsel %vm437, %v431, -inf
    %445 = vmax.xlane.f32.xlu0 %v444
    %v446 = vpop.xlane.xlu0 %445
    %v447 = vsel %vm437, %v432, -inf
    %448 = vmax.xlane.f32.xlu0 %v447
    %v449 = vpop.xlane.xlu0 %448
    %v450 = vsel %vm437, %v433, -inf
    %451 = vmax.xlane.f32.xlu0 %v450
    %v452 = vpop.xlane.xlu0 %451
    %v453 = vsel %vm437, %v434, -inf
    %454 = vmax.xlane.f32.xlu0 %v453
    %v455 = vpop.xlane.xlu0 %454
    %v456 = vsel %vm437, %v435, -inf
    %457 = vmax.xlane.f32.xlu0 %v456
    %v458 = vpop.xlane.xlu0 %457
    %v459 = vsel %vm437, %v436, -inf
    %460 = vmax.xlane.f32.xlu0 %v459
    %v461 = vpop.xlane.xlu0 %460
    %v462 = vsub.f32 %v429, %v440
    %v463 = vsub.f32 %v430, %v443
    %v464 = vsub.f32 %v431, %v446
    %v465 = vsub.f32 %v432, %v449
    %v466 = vsub.f32 %v433, %v452
    %v467 = vsub.f32 %v434, %v455
    %v468 = vsub.f32 %v435, %v458
    %v469 = vsub.f32 %v436, %v461
    %v470 = vmul.f32 %v462, 1.442695
    %v471 = vpow.pop %v470
    %v472 = vmul.f32 %v463, 1.442695
    %v473 = vpow.pop %v472
    %v474 = vmul.f32 %v464, 1.442695
    %v475 = vpow.pop %v474
    %v476 = vmul.f32 %v465, 1.442695
    %v477 = vpow.pop %v476
    %v478 = vmul.f32 %v466, 1.442695
    %v479 = vpow.pop %v478
    %v480 = vmul.f32 %v467, 1.442695
    %v481 = vpow.pop %v480
    %v482 = vmul.f32 %v468, 1.442695
    %v483 = vpow.pop %v482
    %v484 = vmul.f32 %v469, 1.442695
    %v485 = vpow.pop %v484
    %v486 = vsel %vm437, %v471, 0.0
    %487 = vadd.xlane.f32.xlu0 %v486
    %v488 = vpop.xlane.xlu0 %487
    %v489 = vsel %vm437, %v473, 0.0
    %490 = vadd.xlane.f32.xlu0 %v489
    %v491 = vpop.xlane.xlu0 %490
    %v492 = vsel %vm437, %v475, 0.0
    %493 = vadd.xlane.f32.xlu0 %v492
    %v494 = vpop.xlane.xlu0 %493
    %v495 = vsel %vm437, %v477, 0.0
    %496 = vadd.xlane.f32.xlu0 %v495
    %v497 = vpop.xlane.xlu0 %496
    %v498 = vsel %vm437, %v479, 0.0
    %499 = vadd.xlane.f32.xlu0 %v498
    %v500 = vpop.xlane.xlu0 %499
    %v501 = vsel %vm437, %v481, 0.0
    %502 = vadd.xlane.f32.xlu0 %v501
    %v503 = vpop.xlane.xlu0 %502
    %v504 = vsel %vm437, %v483, 0.0
    %505 = vadd.xlane.f32.xlu0 %v504
    %v506 = vpop.xlane.xlu0 %505
    %v507 = vsel %vm437, %v485, 0.0
    %508 = vadd.xlane.f32.xlu0 %v507
    %v509 = vpop.xlane.xlu0 %508
    %v510 = vrcp.pop %v488
    %v511 = vmul.f32 %v471, %v510
    %v512 = vrcp.pop %v491
    %v513 = vmul.f32 %v473, %v512
    %v514 = vrcp.pop %v494
    %v515 = vmul.f32 %v475, %v514
    %v516 = vrcp.pop %v497
    %v517 = vmul.f32 %v477, %v516
    %v518 = vrcp.pop %v500
    %v519 = vmul.f32 %v479, %v518
    %v520 = vrcp.pop %v503
    %v521 = vmul.f32 %v481, %v520
    %v522 = vrcp.pop %v506
    %v523 = vmul.f32 %v483, %v522
    %v524 = vrcp.pop %v509
    %v525 = vmul.f32 %v485, %v524
    %526 = vrot.lane.b32.xlu0 %v245, 64
    %v527 = vpop.permute.xlu0 %526
    %528 = vrot.lane.b32.xlu0 %v250, 64
    %v529 = vpop.permute.xlu0 %528
    %530 = vrot.lane.b32.xlu0 %v256, 64
    %v531 = vpop.permute.xlu0 %530
    %532 = vrot.lane.b32.xlu0 %v258, 64
    %v533 = vpop.permute.xlu0 %532
    %534 = vrot.lane.b32.xlu0 %v260, 64
    %v535 = vpop.permute.xlu0 %534
    %536 = vrot.lane.b32.xlu0 %v262, 64
    %v537 = vpop.permute.xlu0 %536
    %538 = vrot.lane.b32.xlu0 %v264, 64
    %v539 = vpop.permute.xlu0 %538
    %540 = vrot.lane.b32.xlu0 %v266, 64
    %v541 = vpop.permute.xlu0 %540
    %v551 = vsel %vm437, %v511, 0
    %v554 = vsel %vm437, %v513, 0
    %v557 = vsel %vm437, %v515, 0
    %v560 = vsel %vm437, %v517, 0
    %v563 = vsel %vm437, %v519, 0
    %v566 = vsel %vm437, %v521, 0
    %v569 = vsel %vm437, %v523, 0
    %v572 = vsel %vm437, %v525, 0
    %574 = vmatprep.subr.mxu0 0.0
    %575 = vmatpush1.msra.mxu0 %v527
    %576 = vmatprep.subr.mxu0 0.0
    %577 = vmatpush1.msra.mxu0 %v529
    %578 = vmatprep.subr.mxu0 0.0
    %579 = vmatpush1.msra.mxu0 %v531
    %580 = vmatprep.subr.mxu0 0.0
    %581 = vmatpush1.msra.mxu0 %v533
    %582 = vmatprep.subr.mxu0 0.0
    %583 = vmatpush1.msra.mxu0 %v535
    %584 = vmatprep.subr.mxu0 0.0
    %585 = vmatpush1.msra.mxu0 %v537
    %586 = vmatprep.subr.mxu0 0.0
    %587 = vmatpush1.msra.mxu0 %v539
    %588 = vmatprep.subr.mxu0 0.0
    %589 = vmatpush1.msra.mxu0 %v541
    %590 = vmatprep.subr.mxu0 0.0
    %591 = vmatpush1.msra.mxu0 0.0
    %592 = vmatprep.subr.mxu0 0.0
    %593 = vmatpush1.msra.mxu0 0.0
    %594 = vmatprep.subr.mxu0 0.0
    %595 = vmatpush1.msra.mxu0 0.0
    %596 = vmatprep.subr.mxu0 0.0
    %597 = vmatpush1.msra.mxu0 0.0
    %598 = vmatprep.subr.mxu0 0.0
    %599 = vmatpush1.msra.mxu0 0.0
    %600 = vmatprep.subr.mxu0 0.0
    %601 = vmatpush1.msra.mxu0 0.0
    %602 = vmatprep.subr.mxu0 0.0
    %603 = vmatpush1.msra.mxu0 0.0
    %604 = vmatprep.subr.mxu0 0.0
    %605 = vmatpush1.msra.mxu0 0.0
    %606 = vmatprep.subr.mxu0 0.0
    %607 = vmatpush1.msra.mxu0 0.0
    %608 = vmatprep.subr.mxu0 0.0
    %609 = vmatpush1.msra.mxu0 0.0
    %610 = vmatprep.subr.mxu0 0.0
    %611 = vmatpush1.msra.mxu0 0.0
    %612 = vmatprep.subr.mxu0 0.0
    %613 = vmatpush1.msra.mxu0 0.0
    %614 = vmatprep.subr.mxu0 0.0
    %615 = vmatpush1.msra.mxu0 0.0
    %616 = vmatprep.subr.mxu0 0.0
    %617 = vmatpush1.msra.mxu0 0.0
    %618 = vmatprep.subr.mxu0 0.0
    %619 = vmatpush1.msra.mxu0 0.0
    %620 = vmatprep.subr.mxu0 0.0
    %621 = vmatpush1.msra.mxu0 0.0
    %622 = vmatprep.subr.mxu0 0.0
    %623 = vmatpush1.msra.mxu0 0.0
    %624 = vmatprep.subr.mxu0 0.0
    %625 = vmatpush1.msra.mxu0 0.0
    %626 = vmatprep.subr.mxu0 0.0
    %627 = vmatpush1.msra.mxu0 0.0
    %628 = vmatprep.subr.mxu0 0.0
    %629 = vmatpush1.msra.mxu0 0.0
    %630 = vmatprep.subr.mxu0 0.0
    %631 = vmatpush1.msra.mxu0 0.0
    %632 = vmatprep.subr.mxu0 0.0
    %633 = vmatpush1.msra.mxu0 0.0
    %634 = vmatprep.subr.mxu0 0.0
    %635 = vmatpush1.msra.mxu0 0.0
    %636 = vmatprep.subr.mxu0 0.0
    %637 = vmatpush1.msra.mxu0 0.0
    %638 = vmatprep.mubr.f32.mxu0 0.0
    %639 = vmatmul.mubr.f32.gmra.mrb[0].mxu0 %v551
    %v640 = vpop.f32.mrb[0].mxu0
    %v641 = vadd.f32 0.0, %v640
    %v642 = vpop.f32.mrb[0].mxu0
    %643 = vmatprep.mubr.f32.mxu0 0.0
    %644 = vmatmul.mubr.f32.gmra.mrb[0].mxu0 %v554
    %v645 = vpop.f32.mrb[0].mxu0
    %v646 = vadd.f32 0.0, %v645
    %v647 = vpop.f32.mrb[0].mxu0
    %648 = vmatprep.mubr.f32.mxu0 0.0
    %649 = vmatmul.mubr.f32.gmra.mrb[0].mxu0 %v557
    %v650 = vpop.f32.mrb[0].mxu0
    %v651 = vadd.f32 0.0, %v650
    %v652 = vpop.f32.mrb[0].mxu0
    %653 = vmatprep.mubr.f32.mxu0 0.0
    %654 = vmatmul.mubr.f32.gmra.mrb[0].mxu0 %v560
    %v655 = vpop.f32.mrb[0].mxu0
    %v656 = vadd.f32 0.0, %v655
    %v657 = vpop.f32.mrb[0].mxu0
    %658 = vmatprep.mubr.f32.mxu0 0.0
    %659 = vmatmul.mubr.f32.gmra.mrb[0].mxu0 %v563
    %v660 = vpop.f32.mrb[0].mxu0
    %v661 = vadd.f32 0.0, %v660
    %v662 = vpop.f32.mrb[0].mxu0
    %663 = vmatprep.mubr.f32.mxu0 0.0
    %664 = vmatmul.mubr.f32.gmra.mrb[0].mxu0 %v566
    %v665 = vpop.f32.mrb[0].mxu0
    %v666 = vadd.f32 0.0, %v665
    %v667 = vpop.f32.mrb[0].mxu0
    %668 = vmatprep.mubr.f32.mxu0 0.0
    %669 = vmatmul.mubr.f32.gmra.mrb[0].mxu0 %v569
    %v670 = vpop.f32.mrb[0].mxu0
    %v671 = vadd.f32 0.0, %v670
    %v672 = vpop.f32.mrb[0].mxu0
    %673 = vmatprep.mubr.f32.mxu0 0.0
    %674 = vmatmul.mubr.f32.gmra.mrb[0].mxu0 %v572
    %v675 = vpop.f32.mrb[0].mxu0
    %v676 = vadd.f32 0.0, %v675
    %v677 = vpop.f32.mrb[0].mxu0
    %678 = vdwg.mxu0
    %681 = vrot.lane.b32.xlu0 %v651, 8
    %v682 = vpop.permute.xlu0 %681
    %683 = vrot.lane.b32.xlu0 %v656, 8
    %v684 = vpop.permute.xlu0 %683
    %689 = vrot.lane.b32.xlu0 %v661, 16
    %v690 = vpop.permute.xlu0 %689
    %691 = vrot.lane.b32.xlu0 %v666, 16
    %v692 = vpop.permute.xlu0 %691
    %697 = vrot.lane.b32.xlu0 %v671, 24
    %v698 = vpop.permute.xlu0 %697
    %699 = vrot.lane.b32.xlu0 %v676, 24
    %v700 = vpop.permute.xlu0 %699
    %v703 = vsel %vm283, %v641, %v682
    %v704 = vsel %vm283, %v646, %v684
    %vm705 = vcmask 130048
    %v706 = vsel %vm705, %v703, %v690
    %v707 = vsel %vm705, %v704, %v692
    %vm708 = vcmask 195584
    %v709 = vsel %vm708, %v706, %v698
    %v710 = vsel %vm708, %v707, %v700
    %v711 = vlaneseq
    %v712 = vshrl.u32 %v711, 7
    %v713 = vsub.s32 1, %v712
    %v714 = vrot.slane %v166, %v713
    %v716 = vsel %vm171, %v709, 0
    %v719 = vsel %vm171, %v710, 0
    %721 = vmatprep.subr.mxu0 0.0
    %722 = vmatpush1.msra.mxu0 %v154
    %723 = vmatprep.subr.mxu0 0.0
    %724 = vmatpush1.msra.mxu0 %v155
    %725 = vmatprep.subr.mxu0 0.0
    %726 = vmatpush1.msra.mxu0 %v156
    %727 = vmatprep.subr.mxu0 0.0
    %728 = vmatpush1.msra.mxu0 %v157
    %729 = vmatprep.subr.mxu0 0.0
    %730 = vmatpush1.msra.mxu0 0.0
    %731 = vmatprep.subr.mxu0 0.0
    %732 = vmatpush1.msra.mxu0 0.0
    %733 = vmatprep.subr.mxu0 0.0
    %734 = vmatpush1.msra.mxu0 0.0
    %735 = vmatprep.subr.mxu0 0.0
    %736 = vmatpush1.msra.mxu0 0.0
    %737 = vmatprep.subr.mxu0 0.0
    %738 = vmatpush1.msra.mxu0 0.0
    %739 = vmatprep.subr.mxu0 0.0
    %740 = vmatpush1.msra.mxu0 0.0
    %741 = vmatprep.subr.mxu0 0.0
    %742 = vmatpush1.msra.mxu0 0.0
    %743 = vmatprep.subr.mxu0 0.0
    %744 = vmatpush1.msra.mxu0 0.0
    %745 = vmatprep.subr.mxu0 0.0
    %746 = vmatpush1.msra.mxu0 0.0
    %747 = vmatprep.subr.mxu0 0.0
    %748 = vmatpush1.msra.mxu0 0.0
    %749 = vmatprep.subr.mxu0 0.0
    %750 = vmatpush1.msra.mxu0 0.0
    %751 = vmatprep.subr.mxu0 0.0
    %752 = vmatpush1.msra.mxu0 0.0
    %753 = vmatprep.subr.mxu0 0.0
    %754 = vmatpush1.msra.mxu0 0.0
    %755 = vmatprep.subr.mxu0 0.0
    %756 = vmatpush1.msra.mxu0 0.0
    %757 = vmatprep.subr.mxu0 0.0
    %758 = vmatpush1.msra.mxu0 0.0
    %759 = vmatprep.subr.mxu0 0.0
    %760 = vmatpush1.msra.mxu0 0.0
    %761 = vmatprep.subr.mxu0 0.0
    %762 = vmatpush1.msra.mxu0 0.0
    %763 = vmatprep.subr.mxu0 0.0
    %764 = vmatpush1.msra.mxu0 0.0
    %765 = vmatprep.subr.mxu0 0.0
    %766 = vmatpush1.msra.mxu0 0.0
    %767 = vmatprep.subr.mxu0 0.0
    %768 = vmatpush1.msra.mxu0 0.0
    %769 = vmatprep.subr.mxu0 0.0
    %770 = vmatpush1.msra.mxu0 0.0
    %771 = vmatprep.subr.mxu0 0.0
    %772 = vmatpush1.msra.mxu0 0.0
    %773 = vmatprep.subr.mxu0 0.0
    %774 = vmatpush1.msra.mxu0 0.0
    %775 = vmatprep.subr.mxu0 0.0
    %776 = vmatpush1.msra.mxu0 0.0
    %777 = vmatprep.subr.mxu0 0.0
    %778 = vmatpush1.msra.mxu0 0.0
    %779 = vmatprep.subr.mxu0 0.0
    %780 = vmatpush1.msra.mxu0 0.0
    %781 = vmatprep.subr.mxu0 0.0
    %782 = vmatpush1.msra.mxu0 0.0
    %783 = vmatprep.subr.mxu0 0.0
    %784 = vmatpush1.msra.mxu0 0.0
    %785 = vmatprep.mubr.f32.mxu0 0.0
    %786 = vmatmul.mubr.f32.gmra.mrb[0].mxu0 %v716
    %v787 = vpop.f32.mrb[0].mxu0
    %v788 = vadd.f32 %v714, %v787
    %v789 = vpop.f32.mrb[0].mxu0
    %790 = vmatprep.mubr.f32.mxu0 0.0
    %791 = vmatmul.mubr.f32.gmra.mrb[0].mxu0 %v719
    %v792 = vpop.f32.mrb[0].mxu0
    %v793 = vadd.f32 %v714, %v792
    %v794 = vpop.f32.mrb[0].mxu0
    %795 = vdwg.mxu0
    %v796 = vadd.f32 %v136, %v788
    %v797 = vadd.f32 %v137, %v793
    %v798 = vsel %vm171, %v796, 0.0
    %799 = vadd.xlane.f32.xlu0 %v798
    %v800 = vpop.xlane.xlu0 %799
    %v801 = vsel %vm171, %v797, 0.0
    %802 = vadd.xlane.f32.xlu0 %v801
    %v803 = vpop.xlane.xlu0 %802
    %v804 = vrcp.pop 32.0
    %v805 = vmul.f32 %v800, %v804
    %v806 = vmul.f32 %v803, %v804
    %v807 = vsub.f32 %v796, %v805
    %v808 = vsub.f32 %v797, %v806
    %v809 = vmul.f32 %v807, %v807
    %v810 = vmul.f32 %v808, %v808
    %v811 = vsel %vm171, %v809, 0.0
    %812 = vadd.xlane.f32.xlu0 %v811
    %v813 = vpop.xlane.xlu0 %812
    %v814 = vsel %vm171, %v810, 0.0
    %815 = vadd.xlane.f32.xlu0 %v814
    %v816 = vpop.xlane.xlu0 %815
    %v817 = vmul.f32 %v813, %v804
    %v818 = vmul.f32 %v816, %v804
    %v819 = vadd.f32 %v817, 1e-05
    %v820 = vadd.f32 %v818, 1e-05
    %v821 = vrsqrt.pop %v819
    %v822 = vrsqrt.pop %v820
    %v823 = vmul.f32 %v807, %v821
    %v824 = vmul.f32 %v808, %v822
    %v825 = vlaneseq
    %v826 = vshrl.u32 %v825, 7
    %v827 = vsub.s32 4, %v826
    %v828 = vrot.slane %v166, %v827
    %v829 = vmul.f32 %v823, %v828
    %v830 = vmul.f32 %v824, %v828
    %v831 = vlaneseq
    %v832 = vshrl.u32 %v831, 7
    %v833 = vsub.s32 5, %v832
    %v834 = vrot.slane %v166, %v833
    %v835 = vadd.f32 %v829, %v834
    %v836 = vadd.f32 %v830, %v834
    %v837 = vlaneseq
    %v838 = vshrl.u32 %v837, 7
    %v839 = vsub.s32 2, %v838
    %v840 = vrot.slane %v166, %v839
    %849 = vrot.lane.b32.xlu0 %v146, 32
    %v850 = vpop.permute.xlu0 %849
    %851 = vrot.lane.b32.xlu0 %v147, 32
    %v852 = vpop.permute.xlu0 %851
    %853 = vrot.lane.b32.xlu0 %v148, 32
    %v854 = vpop.permute.xlu0 %853
    %855 = vrot.lane.b32.xlu0 %v149, 32
    %v856 = vpop.permute.xlu0 %855
    %857 = vrot.lane.b32.xlu0 %v150, 32
    %v858 = vpop.permute.xlu0 %857
    %859 = vrot.lane.b32.xlu0 %v151, 32
    %v860 = vpop.permute.xlu0 %859
    %861 = vrot.lane.b32.xlu0 %v152, 32
    %v862 = vpop.permute.xlu0 %861
    %863 = vrot.lane.b32.xlu0 %v153, 32
    %v864 = vpop.permute.xlu0 %863
    %v865 = vsel %vm171, %v850, %v852
    %v866 = vsel %vm171, %v854, %v856
    %v867 = vsel %vm171, %v858, %v860
    %v868 = vsel %vm171, %v862, %v864
    %v874 = vsel %vm171, %v835, 0
    %v877 = vsel %vm171, %v836, 0
    %879 = vmatprep.subr.mxu0 0.0
    %880 = vmatpush1.msra.mxu0 %v865
    %881 = vmatprep.subr.mxu0 0.0
    %882 = vmatpush1.msra.mxu0 %v866
    %883 = vmatprep.subr.mxu0 0.0
    %884 = vmatpush1.msra.mxu0 %v867
    %885 = vmatprep.subr.mxu0 0.0
    %886 = vmatpush1.msra.mxu0 %v868
    %887 = vmatprep.subr.mxu0 0.0
    %888 = vmatpush1.msra.mxu0 0.0
    %889 = vmatprep.subr.mxu0 0.0
    %890 = vmatpush1.msra.mxu0 0.0
    %891 = vmatprep.subr.mxu0 0.0
    %892 = vmatpush1.msra.mxu0 0.0
    %893 = vmatprep.subr.mxu0 0.0
    %894 = vmatpush1.msra.mxu0 0.0
    %895 = vmatprep.subr.mxu0 0.0
    %896 = vmatpush1.msra.mxu0 0.0
    %897 = vmatprep.subr.mxu0 0.0
    %898 = vmatpush1.msra.mxu0 0.0
    %899 = vmatprep.subr.mxu0 0.0
    %900 = vmatpush1.msra.mxu0 0.0
    %901 = vmatprep.subr.mxu0 0.0
    %902 = vmatpush1.msra.mxu0 0.0
    %903 = vmatprep.subr.mxu0 0.0
    %904 = vmatpush1.msra.mxu0 0.0
    %905 = vmatprep.subr.mxu0 0.0
    %906 = vmatpush1.msra.mxu0 0.0
    %907 = vmatprep.subr.mxu0 0.0
    %908 = vmatpush1.msra.mxu0 0.0
    %909 = vmatprep.subr.mxu0 0.0
    %910 = vmatpush1.msra.mxu0 0.0
    %911 = vmatprep.subr.mxu0 0.0
    %912 = vmatpush1.msra.mxu0 0.0
    %913 = vmatprep.subr.mxu0 0.0
    %914 = vmatpush1.msra.mxu0 0.0
    %915 = vmatprep.subr.mxu0 0.0
    %916 = vmatpush1.msra.mxu0 0.0
    %917 = vmatprep.subr.mxu0 0.0
    %918 = vmatpush1.msra.mxu0 0.0
    %919 = vmatprep.subr.mxu0 0.0
    %920 = vmatpush1.msra.mxu0 0.0
    %921 = vmatprep.subr.mxu0 0.0
    %922 = vmatpush1.msra.mxu0 0.0
    %923 = vmatprep.subr.mxu0 0.0
    %924 = vmatpush1.msra.mxu0 0.0
    %925 = vmatprep.subr.mxu0 0.0
    %926 = vmatpush1.msra.mxu0 0.0
    %927 = vmatprep.subr.mxu0 0.0
    %928 = vmatpush1.msra.mxu0 0.0
    %929 = vmatprep.subr.mxu0 0.0
    %930 = vmatpush1.msra.mxu0 0.0
    %931 = vmatprep.subr.mxu0 0.0
    %932 = vmatpush1.msra.mxu0 0.0
    %933 = vmatprep.subr.mxu0 0.0
    %934 = vmatpush1.msra.mxu0 0.0
    %935 = vmatprep.subr.mxu0 0.0
    %936 = vmatpush1.msra.mxu0 0.0
    %937 = vmatprep.subr.mxu0 0.0
    %938 = vmatpush1.msra.mxu0 0.0
    %939 = vmatprep.subr.mxu0 0.0
    %940 = vmatpush1.msra.mxu0 0.0
    %941 = vmatprep.subr.mxu0 0.0
    %942 = vmatpush1.msra.mxu0 0.0
    %943 = vmatprep.mubr.f32.mxu0 0.0
    %944 = vmatmul.mubr.f32.gmra.mrb[0].mxu0 %v874
    %v945 = vpop.f32.mrb[0].mxu0
    %v946 = vadd.f32 %v840, %v945
    %v947 = vpop.f32.mrb[0].mxu0
    %948 = vmatprep.mubr.f32.mxu0 0.0
    %949 = vmatmul.mubr.f32.gmra.mrb[0].mxu0 %v877
    %v950 = vpop.f32.mrb[0].mxu0
    %v951 = vadd.f32 %v840, %v950
    %v952 = vpop.f32.mrb[0].mxu0
    %953 = vdwg.mxu0
    %v954 = vmax.f32 %v946, 0.0
    %v955 = vmax.f32 %v951, 0.0
    %v956 = vlaneseq
    %v957 = vshrl.u32 %v956, 7
    %v958 = vsub.s32 3, %v957
    %v959 = vrot.slane %v166, %v958
    %v961 = vsel %vm437, %v954, 0
    %v964 = vsel %vm437, %v955, 0
    %966 = vmatprep.subr.mxu0 0.0
    %967 = vmatpush1.msra.mxu0 %v158
    %968 = vmatprep.subr.mxu0 0.0
    %969 = vmatpush1.msra.mxu0 %v159
    %970 = vmatprep.subr.mxu0 0.0
    %971 = vmatpush1.msra.mxu0 %v160
    %972 = vmatprep.subr.mxu0 0.0
    %973 = vmatpush1.msra.mxu0 %v161
    %974 = vmatprep.subr.mxu0 0.0
    %975 = vmatpush1.msra.mxu0 %v162
    %976 = vmatprep.subr.mxu0 0.0
    %977 = vmatpush1.msra.mxu0 %v163
    %978 = vmatprep.subr.mxu0 0.0
    %979 = vmatpush1.msra.mxu0 %v164
    %980 = vmatprep.subr.mxu0 0.0
    %981 = vmatpush1.msra.mxu0 %v165
    %982 = vmatprep.subr.mxu0 0.0
    %983 = vmatpush1.msra.mxu0 0.0
    %984 = vmatprep.subr.mxu0 0.0
    %985 = vmatpush1.msra.mxu0 0.0
    %986 = vmatprep.subr.mxu0 0.0
    %987 = vmatpush1.msra.mxu0 0.0
    %988 = vmatprep.subr.mxu0 0.0
    %989 = vmatpush1.msra.mxu0 0.0
    %990 = vmatprep.subr.mxu0 0.0
    %991 = vmatpush1.msra.mxu0 0.0
    %992 = vmatprep.subr.mxu0 0.0
    %993 = vmatpush1.msra.mxu0 0.0
    %994 = vmatprep.subr.mxu0 0.0
    %995 = vmatpush1.msra.mxu0 0.0
    %996 = vmatprep.subr.mxu0 0.0
    %997 = vmatpush1.msra.mxu0 0.0
    %998 = vmatprep.subr.mxu0 0.0
    %999 = vmatpush1.msra.mxu0 0.0
    %1000 = vmatprep.subr.mxu0 0.0
    %1001 = vmatpush1.msra.mxu0 0.0
    %1002 = vmatprep.subr.mxu0 0.0
    %1003 = vmatpush1.msra.mxu0 0.0
    %1004 = vmatprep.subr.mxu0 0.0
    %1005 = vmatpush1.msra.mxu0 0.0
    %1006 = vmatprep.subr.mxu0 0.0
    %1007 = vmatpush1.msra.mxu0 0.0
    %1008 = vmatprep.subr.mxu0 0.0
    %1009 = vmatpush1.msra.mxu0 0.0
    %1010 = vmatprep.subr.mxu0 0.0
    %1011 = vmatpush1.msra.mxu0 0.0
    %1012 = vmatprep.subr.mxu0 0.0
    %1013 = vmatpush1.msra.mxu0 0.0
    %1014 = vmatprep.subr.mxu0 0.0
    %1015 = vmatpush1.msra.mxu0 0.0
    %1016 = vmatprep.subr.mxu0 0.0
    %1017 = vmatpush1.msra.mxu0 0.0
    %1018 = vmatprep.subr.mxu0 0.0
    %1019 = vmatpush1.msra.mxu0 0.0
    %1020 = vmatprep.subr.mxu0 0.0
    %1021 = vmatpush1.msra.mxu0 0.0
    %1022 = vmatprep.subr.mxu0 0.0
    %1023 = vmatpush1.msra.mxu0 0.0
    %1024 = vmatprep.subr.mxu0 0.0
    %1025 = vmatpush1.msra.mxu0 0.0
    %1026 = vmatprep.subr.mxu0 0.0
    %1027 = vmatpush1.msra.mxu0 0.0
    %1028 = vmatprep.subr.mxu0 0.0
    %1029 = vmatpush1.msra.mxu0 0.0
    %1030 = vmatprep.mubr.f32.mxu0 0.0
    %1031 = vmatmul.mubr.f32.gmra.mrb[0].mxu0 %v961
    %v1032 = vpop.f32.mrb[0].mxu0
    %v1033 = vadd.f32 %v959, %v1032
    %v1034 = vpop.f32.mrb[0].mxu0
    %1035 = vmatprep.mubr.f32.mxu0 0.0
    %1036 = vmatmul.mubr.f32.gmra.mrb[0].mxu0 %v964
    %v1037 = vpop.f32.mrb[0].mxu0
    %v1038 = vadd.f32 %v959, %v1037
    %v1039 = vpop.f32.mrb[0].mxu0
    %1040 = vdwg.mxu0
    %v1041 = vadd.f32 %v835, %v1033
    %v1042 = vadd.f32 %v836, %v1038
    %v1043 = vsel %vm171, %v1041, 0.0
    %1044 = vadd.xlane.f32.xlu0 %v1043
    %v1045 = vpop.xlane.xlu0 %1044
    %v1046 = vsel %vm171, %v1042, 0.0
    %1047 = vadd.xlane.f32.xlu0 %v1046
    %v1048 = vpop.xlane.xlu0 %1047
    %v1049 = vmul.f32 %v1045, %v804
    %v1050 = vmul.f32 %v1048, %v804
    %v1051 = vsub.f32 %v1041, %v1049
    %v1052 = vsub.f32 %v1042, %v1050
    %v1053 = vmul.f32 %v1051, %v1051
    %v1054 = vmul.f32 %v1052, %v1052
    %v1055 = vsel %vm171, %v1053, 0.0
    %1056 = vadd.xlane.f32.xlu0 %v1055
    %v1057 = vpop.xlane.xlu0 %1056
    %v1058 = vsel %vm171, %v1054, 0.0
    %1059 = vadd.xlane.f32.xlu0 %v1058
    %v1060 = vpop.xlane.xlu0 %1059
    %v1061 = vmul.f32 %v1057, %v804
    %v1062 = vmul.f32 %v1060, %v804
    %v1063 = vadd.f32 %v1061, 1e-05
    %v1064 = vadd.f32 %v1062, 1e-05
    %v1065 = vrsqrt.pop %v1063
    %v1066 = vrsqrt.pop %v1064
    %v1067 = vmul.f32 %v1051, %v1065
    %v1068 = vmul.f32 %v1052, %v1066
    %v1069 = vlaneseq
    %v1070 = vshrl.u32 %v1069, 7
    %v1071 = vsub.s32 6, %v1070
    %v1072 = vrot.slane %v166, %v1071
    %v1073 = vmul.f32 %v1067, %v1072
    %v1074 = vmul.f32 %v1068, %v1072
    %v1075 = vlaneseq
    %v1076 = vshrl.u32 %v1075, 7
    %v1077 = vsub.s32 7, %v1076
    %v1078 = vrot.slane %v166, %v1077
    %v1079 = vadd.f32 %v1073, %v1078
    %v1080 = vadd.f32 %v1074, %v1078
    %s1081 = scalar_lea.vmem %s4, 64
    %v1082 = vld [vmem:[%s1081] sm:$0xff]
    %v1083 = vld [vmem:[%s1081 + $0x8] sm:$0xff]
    %v1084 = vld [vmem:[%s1081 + $0x10] sm:$0xff]
    %v1085 = vld [vmem:[%s1081 + $0x18] sm:$0xff]
    %v1086 = vld [vmem:[%s1081 + $0x20] sm:$0xff]
    %v1087 = vld [vmem:[%s1081 + $0x28] sm:$0xff]
    %v1088 = vld [vmem:[%s1081 + $0x30] sm:$0xff]
    %v1089 = vld [vmem:[%s1081 + $0x38] sm:$0xff]
    %s1090 = scalar_lea.vmem %s5, 96
    %v1091 = vld [vmem:[%s1090] sm:$0xff]
    %v1092 = vld [vmem:[%s1090 + $0x8] sm:$0xff]
    %v1093 = vld [vmem:[%s1090 + $0x10] sm:$0xff]
    %v1094 = vld [vmem:[%s1090 + $0x18] sm:$0xff]
    %v1095 = vld [vmem:[%s1090 + $0x20] sm:$0xff]
    %v1096 = vld [vmem:[%s1090 + $0x28] sm:$0xff]
    %v1097 = vld [vmem:[%s1090 + $0x30] sm:$0xff]
    %v1098 = vld [vmem:[%s1090 + $0x38] sm:$0xff]
    %v1099 = vld [vmem:[%s1090 + $0x40] sm:$0xff]
    %v1100 = vld [vmem:[%s1090 + $0x48] sm:$0xff]
    %v1101 = vld [vmem:[%s1090 + $0x50] sm:$0xff]
    %v1102 = vld [vmem:[%s1090 + $0x58] sm:$0xff]
    %s1103 = scalar_lea.vmem %s6, 8
    %v1104 = vld [vmem:[%s1103] sm:$0xff]
    %v1105 = vlaneseq
    %v1106 = vshrl.u32 %v1105, 7
    %v1107 = vsub.s32 0, %v1106
    %v1108 = vrot.slane %v1104, %v1107
    %v1110 = vsel %vm171, %v1079, 0
    %v1113 = vsel %vm171, %v1080, 0
    %1115 = vmatprep.subr.mxu0 0.0
    %1116 = vmatpush1.msra.mxu0 %v1082
    %1117 = vmatprep.subr.mxu0 0.0
    %1118 = vmatpush1.msra.mxu0 %v1084
    %1119 = vmatprep.subr.mxu0 0.0
    %1120 = vmatpush1.msra.mxu0 %v1086
    %1121 = vmatprep.subr.mxu0 0.0
    %1122 = vmatpush1.msra.mxu0 %v1088
    %1123 = vmatprep.subr.mxu0 0.0
    %1124 = vmatpush1.msra.mxu0 0.0
    %1125 = vmatprep.subr.mxu0 0.0
    %1126 = vmatpush1.msra.mxu0 0.0
    %1127 = vmatprep.subr.mxu0 0.0
    %1128 = vmatpush1.msra.mxu0 0.0
    %1129 = vmatprep.subr.mxu0 0.0
    %1130 = vmatpush1.msra.mxu0 0.0
    %1131 = vmatprep.subr.mxu0 0.0
    %1132 = vmatpush1.msra.mxu0 0.0
    %1133 = vmatprep.subr.mxu0 0.0
    %1134 = vmatpush1.msra.mxu0 0.0
    %1135 = vmatprep.subr.mxu0 0.0
    %1136 = vmatpush1.msra.mxu0 0.0
    %1137 = vmatprep.subr.mxu0 0.0
    %1138 = vmatpush1.msra.mxu0 0.0
    %1139 = vmatprep.subr.mxu0 0.0
    %1140 = vmatpush1.msra.mxu0 0.0
    %1141 = vmatprep.subr.mxu0 0.0
    %1142 = vmatpush1.msra.mxu0 0.0
    %1143 = vmatprep.subr.mxu0 0.0
    %1144 = vmatpush1.msra.mxu0 0.0
    %1145 = vmatprep.subr.mxu0 0.0
    %1146 = vmatpush1.msra.mxu0 0.0
    %1147 = vmatprep.subr.mxu0 0.0
    %1148 = vmatpush1.msra.mxu0 0.0
    %1149 = vmatprep.subr.mxu0 0.0
    %1150 = vmatpush1.msra.mxu0 0.0
    %1151 = vmatprep.subr.mxu0 0.0
    %1152 = vmatpush1.msra.mxu0 0.0
    %1153 = vmatprep.subr.mxu0 0.0
    %1154 = vmatpush1.msra.mxu0 0.0
    %1155 = vmatprep.subr.mxu0 0.0
    %1156 = vmatpush1.msra.mxu0 0.0
    %1157 = vmatprep.subr.mxu0 0.0
    %1158 = vmatpush1.msra.mxu0 0.0
    %1159 = vmatprep.subr.mxu0 0.0
    %1160 = vmatpush1.msra.mxu0 0.0
    %1161 = vmatprep.subr.mxu0 0.0
    %1162 = vmatpush1.msra.mxu0 0.0
    %1163 = vmatprep.subr.mxu0 0.0
    %1164 = vmatpush1.msra.mxu0 0.0
    %1165 = vmatprep.subr.mxu0 0.0
    %1166 = vmatpush1.msra.mxu0 0.0
    %1167 = vmatprep.subr.mxu0 0.0
    %1168 = vmatpush1.msra.mxu0 0.0
    %1169 = vmatprep.subr.mxu0 0.0
    %1170 = vmatpush1.msra.mxu0 0.0
    %1171 = vmatprep.subr.mxu0 0.0
    %1172 = vmatpush1.msra.mxu0 0.0
    %1173 = vmatprep.subr.mxu0 0.0
    %1174 = vmatpush1.msra.mxu0 0.0
    %1175 = vmatprep.subr.mxu0 0.0
    %1176 = vmatpush1.msra.mxu0 0.0
    %1177 = vmatprep.subr.mxu0 0.0
    %1178 = vmatpush1.msra.mxu0 0.0
    %1179 = vmatprep.mubr.f32.mxu0 0.0
    %1180 = vmatmul.mubr.f32.gmra.mrb[0].mxu0 %v1110
    %v1181 = vpop.f32.mrb[0].mxu0
    %v1182 = vadd.f32 %v1108, %v1181
    %v1183 = vpop.f32.mrb[0].mxu0
    %1184 = vmatprep.mubr.f32.mxu0 0.0
    %1185 = vmatmul.mubr.f32.gmra.mrb[0].mxu0 %v1113
    %v1186 = vpop.f32.mrb[0].mxu0
    %v1187 = vadd.f32 %v1108, %v1186
    %v1188 = vpop.f32.mrb[0].mxu0
    %1189 = vdwg.mxu0
    %1192 = vrot.lane.b32.xlu0 %v1182, 120
    %v1193 = vpop.permute.xlu0 %1192
    %1194 = vrot.lane.b32.xlu0 %v1187, 120
    %v1195 = vpop.permute.xlu0 %1194
    %1196 = vrot.lane.b32.xlu0 %v1182, 112
    %v1197 = vpop.permute.xlu0 %1196
    %1198 = vrot.lane.b32.xlu0 %v1187, 112
    %v1199 = vpop.permute.xlu0 %1198
    %1200 = vrot.lane.b32.xlu0 %v1182, 104
    %v1201 = vpop.permute.xlu0 %1200
    %1202 = vrot.lane.b32.xlu0 %v1187, 104
    %v1203 = vpop.permute.xlu0 %1202
    %1204 = vrot.lane.b32.xlu0 %v1182, 96
    %v1205 = vpop.permute.xlu0 %1204
    %1206 = vrot.lane.b32.xlu0 %v1187, 96
    %v1207 = vpop.permute.xlu0 %1206
    %1208 = vrot.lane.b32.xlu0 %v1193, 96
    %v1209 = vpop.permute.xlu0 %1208
    %1210 = vrot.lane.b32.xlu0 %v1195, 96
    %v1211 = vpop.permute.xlu0 %1210
    %1212 = vrot.lane.b32.xlu0 %v1197, 96
    %v1213 = vpop.permute.xlu0 %1212
    %1214 = vrot.lane.b32.xlu0 %v1199, 96
    %v1215 = vpop.permute.xlu0 %1214
    %1216 = vrot.lane.b32.xlu0 %v1201, 96
    %v1217 = vpop.permute.xlu0 %1216
    %1218 = vrot.lane.b32.xlu0 %v1203, 96
    %v1219 = vpop.permute.xlu0 %1218
    %v1220 = vsel %vm283, %v1182, 0
    %v1222 = vsel %vm283, %v1187, 0
    %v1224 = vsel %vm283, %v1193, 0
    %v1226 = vsel %vm283, %v1195, 0
    %v1228 = vsel %vm283, %v1197, 0
    %v1230 = vsel %vm283, %v1199, 0
    %v1232 = vsel %vm283, %v1201, 0
    %v1234 = vsel %vm283, %v1203, 0
    %v1236 = vsel %vm283, %v1205, 0
    %v1238 = vsel %vm283, %v1207, 0
    %v1240 = vsel %vm283, %v1209, 0
    %v1242 = vsel %vm283, %v1211, 0
    %v1244 = vsel %vm283, %v1213, 0
    %v1246 = vsel %vm283, %v1215, 0
    %v1248 = vsel %vm283, %v1217, 0
    %v1250 = vsel %vm283, %v1219, 0
    %1252 = vmatprep.subr.mxu0 0.0
    %1253 = vmatpush1.xpose.msra.mxu0 %v1236
    %1254 = vmatprep.subr.mxu0 0.0
    %1255 = vmatpush1.xpose.msra.mxu0 %v1238
    %1256 = vmatprep.subr.mxu0 0.0
    %1257 = vmatpush1.xpose.msra.mxu0 %v1240
    %1258 = vmatprep.subr.mxu0 0.0
    %1259 = vmatpush1.xpose.msra.mxu0 %v1242
    %1260 = vmatprep.subr.mxu0 0.0
    %1261 = vmatpush1.xpose.msra.mxu0 %v1244
    %1262 = vmatprep.subr.mxu0 0.0
    %1263 = vmatpush1.xpose.msra.mxu0 %v1246
    %1264 = vmatprep.subr.mxu0 0.0
    %1265 = vmatpush1.xpose.msra.mxu0 %v1248
    %1266 = vmatprep.subr.mxu0 0.0
    %1267 = vmatpush1.xpose.msra.mxu0 %v1250
    %1268 = vmatprep.subr.mxu0 0.0
    %1269 = vmatpush1.xpose.msra.mxu0 0.0
    %1270 = vmatprep.subr.mxu0 0.0
    %1271 = vmatpush1.xpose.msra.mxu0 0.0
    %1272 = vmatprep.subr.mxu0 0.0
    %1273 = vmatpush1.xpose.msra.mxu0 0.0
    %1274 = vmatprep.subr.mxu0 0.0
    %1275 = vmatpush1.xpose.msra.mxu0 0.0
    %1276 = vmatprep.subr.mxu0 0.0
    %1277 = vmatpush1.xpose.msra.mxu0 0.0
    %1278 = vmatprep.subr.mxu0 0.0
    %1279 = vmatpush1.xpose.msra.mxu0 0.0
    %1280 = vmatprep.subr.mxu0 0.0
    %1281 = vmatpush1.xpose.msra.mxu0 0.0
    %1282 = vmatprep.subr.mxu0 0.0
    %1283 = vmatpush1.xpose.msra.mxu0 0.0
    %1284 = vmatprep.subr.mxu0 0.0
    %1285 = vmatpush1.xpose.msra.mxu0 0.0
    %1286 = vmatprep.subr.mxu0 0.0
    %1287 = vmatpush1.xpose.msra.mxu0 0.0
    %1288 = vmatprep.subr.mxu0 0.0
    %1289 = vmatpush1.xpose.msra.mxu0 0.0
    %1290 = vmatprep.subr.mxu0 0.0
    %1291 = vmatpush1.xpose.msra.mxu0 0.0
    %1292 = vmatprep.subr.mxu0 0.0
    %1293 = vmatpush1.xpose.msra.mxu0 0.0
    %1294 = vmatprep.subr.mxu0 0.0
    %1295 = vmatpush1.xpose.msra.mxu0 0.0
    %1296 = vmatprep.subr.mxu0 0.0
    %1297 = vmatpush1.xpose.msra.mxu0 0.0
    %1298 = vmatprep.subr.mxu0 0.0
    %1299 = vmatpush1.xpose.msra.mxu0 0.0
    %1300 = vmatprep.subr.mxu0 0.0
    %1301 = vmatpush1.xpose.msra.mxu0 0.0
    %1302 = vmatprep.subr.mxu0 0.0
    %1303 = vmatpush1.xpose.msra.mxu0 0.0
    %1304 = vmatprep.subr.mxu0 0.0
    %1305 = vmatpush1.xpose.msra.mxu0 0.0
    %1306 = vmatprep.subr.mxu0 0.0
    %1307 = vmatpush1.xpose.msra.mxu0 0.0
    %1308 = vmatprep.subr.mxu0 0.0
    %1309 = vmatpush1.xpose.msra.mxu0 0.0
    %1310 = vmatprep.subr.mxu0 0.0
    %1311 = vmatpush1.xpose.msra.mxu0 0.0
    %1312 = vmatprep.subr.mxu0 0.0
    %1313 = vmatpush1.xpose.msra.mxu0 0.0
    %1314 = vmatprep.subr.mxu0 0.0
    %1315 = vmatpush1.xpose.msra.mxu0 0.0
    %1316 = vmatprep.mubr.f32.mxu0 0.0
    %1317 = vmatmul.mubr.f32.gmra.mrb[0].mxu0 %v1220
    %v1318 = vpop.f32.mrb[0].mxu0
    %v1319 = vadd.f32 0.0, %v1318
    %v1320 = vpop.f32.mrb[0].mxu0
    %1321 = vmatprep.mubr.f32.mxu0 0.0
    %1322 = vmatmul.mubr.f32.gmra.mrb[0].mxu0 %v1222
    %v1323 = vpop.f32.mrb[0].mxu0
    %v1324 = vadd.f32 0.0, %v1323
    %v1325 = vpop.f32.mrb[0].mxu0
    %1326 = vmatprep.mubr.f32.mxu0 0.0
    %1327 = vmatmul.mubr.f32.gmra.mrb[0].mxu0 %v1224
    %v1328 = vpop.f32.mrb[0].mxu0
    %v1329 = vadd.f32 0.0, %v1328
    %v1330 = vpop.f32.mrb[0].mxu0
    %1331 = vmatprep.mubr.f32.mxu0 0.0
    %1332 = vmatmul.mubr.f32.gmra.mrb[0].mxu0 %v1226
    %v1333 = vpop.f32.mrb[0].mxu0
    %v1334 = vadd.f32 0.0, %v1333
    %v1335 = vpop.f32.mrb[0].mxu0
    %1336 = vmatprep.mubr.f32.mxu0 0.0
    %1337 = vmatmul.mubr.f32.gmra.mrb[0].mxu0 %v1228
    %v1338 = vpop.f32.mrb[0].mxu0
    %v1339 = vadd.f32 0.0, %v1338
    %v1340 = vpop.f32.mrb[0].mxu0
    %1341 = vmatprep.mubr.f32.mxu0 0.0
    %1342 = vmatmul.mubr.f32.gmra.mrb[0].mxu0 %v1230
    %v1343 = vpop.f32.mrb[0].mxu0
    %v1344 = vadd.f32 0.0, %v1343
    %v1345 = vpop.f32.mrb[0].mxu0
    %1346 = vmatprep.mubr.f32.mxu0 0.0
    %1347 = vmatmul.mubr.f32.gmra.mrb[0].mxu0 %v1232
    %v1348 = vpop.f32.mrb[0].mxu0
    %v1349 = vadd.f32 0.0, %v1348
    %v1350 = vpop.f32.mrb[0].mxu0
    %1351 = vmatprep.mubr.f32.mxu0 0.0
    %1352 = vmatmul.mubr.f32.gmra.mrb[0].mxu0 %v1234
    %v1353 = vpop.f32.mrb[0].mxu0
    %v1354 = vadd.f32 0.0, %v1353
    %v1355 = vpop.f32.mrb[0].mxu0
    %1356 = vdwg.mxu0
    %v1357 = vmul.f32 %v1319, 0.35355338
    %v1358 = vmul.f32 %v1324, 0.35355338
    %v1359 = vmul.f32 %v1329, 0.35355338
    %v1360 = vmul.f32 %v1334, 0.35355338
    %v1361 = vmul.f32 %v1339, 0.35355338
    %v1362 = vmul.f32 %v1344, 0.35355338
    %v1363 = vmul.f32 %v1349, 0.35355338
    %v1364 = vmul.f32 %v1354, 0.35355338
    %v1365 = vadd.f32 %v1357, %v138
    %v1366 = vadd.f32 %v1358, %v139
    %v1367 = vadd.f32 %v1359, %v140
    %v1368 = vadd.f32 %v1360, %v141
    %v1369 = vadd.f32 %v1361, %v142
    %v1370 = vadd.f32 %v1362, %v143
    %v1371 = vadd.f32 %v1363, %v144
    %v1372 = vadd.f32 %v1364, %v145
    %v1373 = vsel %vm437, %v1365, -inf
    %1374 = vmax.xlane.f32.xlu0 %v1373
    %v1375 = vpop.xlane.xlu0 %1374
    %v1376 = vsel %vm437, %v1366, -inf
    %1377 = vmax.xlane.f32.xlu0 %v1376
    %v1378 = vpop.xlane.xlu0 %1377
    %v1379 = vsel %vm437, %v1367, -inf
    %1380 = vmax.xlane.f32.xlu0 %v1379
    %v1381 = vpop.xlane.xlu0 %1380
    %v1382 = vsel %vm437, %v1368, -inf
    %1383 = vmax.xlane.f32.xlu0 %v1382
    %v1384 = vpop.xlane.xlu0 %1383
    %v1385 = vsel %vm437, %v1369, -inf
    %1386 = vmax.xlane.f32.xlu0 %v1385
    %v1387 = vpop.xlane.xlu0 %1386
    %v1388 = vsel %vm437, %v1370, -inf
    %1389 = vmax.xlane.f32.xlu0 %v1388
    %v1390 = vpop.xlane.xlu0 %1389
    %v1391 = vsel %vm437, %v1371, -inf
    %1392 = vmax.xlane.f32.xlu0 %v1391
    %v1393 = vpop.xlane.xlu0 %1392
    %v1394 = vsel %vm437, %v1372, -inf
    %1395 = vmax.xlane.f32.xlu0 %v1394
    %v1396 = vpop.xlane.xlu0 %1395
    %v1397 = vsub.f32 %v1365, %v1375
    %v1398 = vsub.f32 %v1366, %v1378
    %v1399 = vsub.f32 %v1367, %v1381
    %v1400 = vsub.f32 %v1368, %v1384
    %v1401 = vsub.f32 %v1369, %v1387
    %v1402 = vsub.f32 %v1370, %v1390
    %v1403 = vsub.f32 %v1371, %v1393
    %v1404 = vsub.f32 %v1372, %v1396
    %v1405 = vmul.f32 %v1397, 1.442695
    %v1406 = vpow.pop %v1405
    %v1407 = vmul.f32 %v1398, 1.442695
    %v1408 = vpow.pop %v1407
    %v1409 = vmul.f32 %v1399, 1.442695
    %v1410 = vpow.pop %v1409
    %v1411 = vmul.f32 %v1400, 1.442695
    %v1412 = vpow.pop %v1411
    %v1413 = vmul.f32 %v1401, 1.442695
    %v1414 = vpow.pop %v1413
    %v1415 = vmul.f32 %v1402, 1.442695
    %v1416 = vpow.pop %v1415
    %v1417 = vmul.f32 %v1403, 1.442695
    %v1418 = vpow.pop %v1417
    %v1419 = vmul.f32 %v1404, 1.442695
    %v1420 = vpow.pop %v1419
    %v1421 = vsel %vm437, %v1406, 0.0
    %1422 = vadd.xlane.f32.xlu0 %v1421
    %v1423 = vpop.xlane.xlu0 %1422
    %v1424 = vsel %vm437, %v1408, 0.0
    %1425 = vadd.xlane.f32.xlu0 %v1424
    %v1426 = vpop.xlane.xlu0 %1425
    %v1427 = vsel %vm437, %v1410, 0.0
    %1428 = vadd.xlane.f32.xlu0 %v1427
    %v1429 = vpop.xlane.xlu0 %1428
    %v1430 = vsel %vm437, %v1412, 0.0
    %1431 = vadd.xlane.f32.xlu0 %v1430
    %v1432 = vpop.xlane.xlu0 %1431
    %v1433 = vsel %vm437, %v1414, 0.0
    %1434 = vadd.xlane.f32.xlu0 %v1433
    %v1435 = vpop.xlane.xlu0 %1434
    %v1436 = vsel %vm437, %v1416, 0.0
    %1437 = vadd.xlane.f32.xlu0 %v1436
    %v1438 = vpop.xlane.xlu0 %1437
    %v1439 = vsel %vm437, %v1418, 0.0
    %1440 = vadd.xlane.f32.xlu0 %v1439
    %v1441 = vpop.xlane.xlu0 %1440
    %v1442 = vsel %vm437, %v1420, 0.0
    %1443 = vadd.xlane.f32.xlu0 %v1442
    %v1444 = vpop.xlane.xlu0 %1443
    %v1445 = vrcp.pop %v1423
    %v1446 = vmul.f32 %v1406, %v1445
    %v1447 = vrcp.pop %v1426
    %v1448 = vmul.f32 %v1408, %v1447
    %v1449 = vrcp.pop %v1429
    %v1450 = vmul.f32 %v1410, %v1449
    %v1451 = vrcp.pop %v1432
    %v1452 = vmul.f32 %v1412, %v1451
    %v1453 = vrcp.pop %v1435
    %v1454 = vmul.f32 %v1414, %v1453
    %v1455 = vrcp.pop %v1438
    %v1456 = vmul.f32 %v1416, %v1455
    %v1457 = vrcp.pop %v1441
    %v1458 = vmul.f32 %v1418, %v1457
    %v1459 = vrcp.pop %v1444
    %v1460 = vmul.f32 %v1420, %v1459
    %1461 = vrot.lane.b32.xlu0 %v1182, 64
    %v1462 = vpop.permute.xlu0 %1461
    %1463 = vrot.lane.b32.xlu0 %v1187, 64
    %v1464 = vpop.permute.xlu0 %1463
    %1465 = vrot.lane.b32.xlu0 %v1193, 64
    %v1466 = vpop.permute.xlu0 %1465
    %1467 = vrot.lane.b32.xlu0 %v1195, 64
    %v1468 = vpop.permute.xlu0 %1467
    %1469 = vrot.lane.b32.xlu0 %v1197, 64
    %v1470 = vpop.permute.xlu0 %1469
    %1471 = vrot.lane.b32.xlu0 %v1199, 64
    %v1472 = vpop.permute.xlu0 %1471
    %1473 = vrot.lane.b32.xlu0 %v1201, 64
    %v1474 = vpop.permute.xlu0 %1473
    %1475 = vrot.lane.b32.xlu0 %v1203, 64
    %v1476 = vpop.permute.xlu0 %1475
    %v1486 = vsel %vm437, %v1446, 0
    %v1489 = vsel %vm437, %v1448, 0
    %v1492 = vsel %vm437, %v1450, 0
    %v1495 = vsel %vm437, %v1452, 0
    %v1498 = vsel %vm437, %v1454, 0
    %v1501 = vsel %vm437, %v1456, 0
    %v1504 = vsel %vm437, %v1458, 0
    %v1507 = vsel %vm437, %v1460, 0
    %1509 = vmatprep.subr.mxu0 0.0
    %1510 = vmatpush1.msra.mxu0 %v1462
    %1511 = vmatprep.subr.mxu0 0.0
    %1512 = vmatpush1.msra.mxu0 %v1464
    %1513 = vmatprep.subr.mxu0 0.0
    %1514 = vmatpush1.msra.mxu0 %v1466
    %1515 = vmatprep.subr.mxu0 0.0
    %1516 = vmatpush1.msra.mxu0 %v1468
    %1517 = vmatprep.subr.mxu0 0.0
    %1518 = vmatpush1.msra.mxu0 %v1470
    %1519 = vmatprep.subr.mxu0 0.0
    %1520 = vmatpush1.msra.mxu0 %v1472
    %1521 = vmatprep.subr.mxu0 0.0
    %1522 = vmatpush1.msra.mxu0 %v1474
    %1523 = vmatprep.subr.mxu0 0.0
    %1524 = vmatpush1.msra.mxu0 %v1476
    %1525 = vmatprep.subr.mxu0 0.0
    %1526 = vmatpush1.msra.mxu0 0.0
    %1527 = vmatprep.subr.mxu0 0.0
    %1528 = vmatpush1.msra.mxu0 0.0
    %1529 = vmatprep.subr.mxu0 0.0
    %1530 = vmatpush1.msra.mxu0 0.0
    %1531 = vmatprep.subr.mxu0 0.0
    %1532 = vmatpush1.msra.mxu0 0.0
    %1533 = vmatprep.subr.mxu0 0.0
    %1534 = vmatpush1.msra.mxu0 0.0
    %1535 = vmatprep.subr.mxu0 0.0
    %1536 = vmatpush1.msra.mxu0 0.0
    %1537 = vmatprep.subr.mxu0 0.0
    %1538 = vmatpush1.msra.mxu0 0.0
    %1539 = vmatprep.subr.mxu0 0.0
    %1540 = vmatpush1.msra.mxu0 0.0
    %1541 = vmatprep.subr.mxu0 0.0
    %1542 = vmatpush1.msra.mxu0 0.0
    %1543 = vmatprep.subr.mxu0 0.0
    %1544 = vmatpush1.msra.mxu0 0.0
    %1545 = vmatprep.subr.mxu0 0.0
    %1546 = vmatpush1.msra.mxu0 0.0
    %1547 = vmatprep.subr.mxu0 0.0
    %1548 = vmatpush1.msra.mxu0 0.0
    %1549 = vmatprep.subr.mxu0 0.0
    %1550 = vmatpush1.msra.mxu0 0.0
    %1551 = vmatprep.subr.mxu0 0.0
    %1552 = vmatpush1.msra.mxu0 0.0
    %1553 = vmatprep.subr.mxu0 0.0
    %1554 = vmatpush1.msra.mxu0 0.0
    %1555 = vmatprep.subr.mxu0 0.0
    %1556 = vmatpush1.msra.mxu0 0.0
    %1557 = vmatprep.subr.mxu0 0.0
    %1558 = vmatpush1.msra.mxu0 0.0
    %1559 = vmatprep.subr.mxu0 0.0
    %1560 = vmatpush1.msra.mxu0 0.0
    %1561 = vmatprep.subr.mxu0 0.0
    %1562 = vmatpush1.msra.mxu0 0.0
    %1563 = vmatprep.subr.mxu0 0.0
    %1564 = vmatpush1.msra.mxu0 0.0
    %1565 = vmatprep.subr.mxu0 0.0
    %1566 = vmatpush1.msra.mxu0 0.0
    %1567 = vmatprep.subr.mxu0 0.0
    %1568 = vmatpush1.msra.mxu0 0.0
    %1569 = vmatprep.subr.mxu0 0.0
    %1570 = vmatpush1.msra.mxu0 0.0
    %1571 = vmatprep.subr.mxu0 0.0
    %1572 = vmatpush1.msra.mxu0 0.0
    %1573 = vmatprep.mubr.f32.mxu0 0.0
    %1574 = vmatmul.mubr.f32.gmra.mrb[0].mxu0 %v1486
    %v1575 = vpop.f32.mrb[0].mxu0
    %v1576 = vadd.f32 0.0, %v1575
    %v1577 = vpop.f32.mrb[0].mxu0
    %1578 = vmatprep.mubr.f32.mxu0 0.0
    %1579 = vmatmul.mubr.f32.gmra.mrb[0].mxu0 %v1489
    %v1580 = vpop.f32.mrb[0].mxu0
    %v1581 = vadd.f32 0.0, %v1580
    %v1582 = vpop.f32.mrb[0].mxu0
    %1583 = vmatprep.mubr.f32.mxu0 0.0
    %1584 = vmatmul.mubr.f32.gmra.mrb[0].mxu0 %v1492
    %v1585 = vpop.f32.mrb[0].mxu0
    %v1586 = vadd.f32 0.0, %v1585
    %v1587 = vpop.f32.mrb[0].mxu0
    %1588 = vmatprep.mubr.f32.mxu0 0.0
    %1589 = vmatmul.mubr.f32.gmra.mrb[0].mxu0 %v1495
    %v1590 = vpop.f32.mrb[0].mxu0
    %v1591 = vadd.f32 0.0, %v1590
    %v1592 = vpop.f32.mrb[0].mxu0
    %1593 = vmatprep.mubr.f32.mxu0 0.0
    %1594 = vmatmul.mubr.f32.gmra.mrb[0].mxu0 %v1498
    %v1595 = vpop.f32.mrb[0].mxu0
    %v1596 = vadd.f32 0.0, %v1595
    %v1597 = vpop.f32.mrb[0].mxu0
    %1598 = vmatprep.mubr.f32.mxu0 0.0
    %1599 = vmatmul.mubr.f32.gmra.mrb[0].mxu0 %v1501
    %v1600 = vpop.f32.mrb[0].mxu0
    %v1601 = vadd.f32 0.0, %v1600
    %v1602 = vpop.f32.mrb[0].mxu0
    %1603 = vmatprep.mubr.f32.mxu0 0.0
    %1604 = vmatmul.mubr.f32.gmra.mrb[0].mxu0 %v1504
    %v1605 = vpop.f32.mrb[0].mxu0
    %v1606 = vadd.f32 0.0, %v1605
    %v1607 = vpop.f32.mrb[0].mxu0
    %1608 = vmatprep.mubr.f32.mxu0 0.0
    %1609 = vmatmul.mubr.f32.gmra.mrb[0].mxu0 %v1507
    %v1610 = vpop.f32.mrb[0].mxu0
    %v1611 = vadd.f32 0.0, %v1610
    %v1612 = vpop.f32.mrb[0].mxu0
    %1613 = vdwg.mxu0
    %1616 = vrot.lane.b32.xlu0 %v1586, 8
    %v1617 = vpop.permute.xlu0 %1616
    %1618 = vrot.lane.b32.xlu0 %v1591, 8
    %v1619 = vpop.permute.xlu0 %1618
    %1624 = vrot.lane.b32.xlu0 %v1596, 16
    %v1625 = vpop.permute.xlu0 %1624
    %1626 = vrot.lane.b32.xlu0 %v1601, 16
    %v1627 = vpop.permute.xlu0 %1626
    %1632 = vrot.lane.b32.xlu0 %v1606, 24
    %v1633 = vpop.permute.xlu0 %1632
    %1634 = vrot.lane.b32.xlu0 %v1611, 24
    %v1635 = vpop.permute.xlu0 %1634
    %v1638 = vsel %vm283, %v1576, %v1617
    %v1639 = vsel %vm283, %v1581, %v1619
    %v1640 = vsel %vm705, %v1638, %v1625
    %v1641 = vsel %vm705, %v1639, %v1627
    %v1642 = vsel %vm708, %v1640, %v1633
    %v1643 = vsel %vm708, %v1641, %v1635
    %v1644 = vlaneseq
    %v1645 = vshrl.u32 %v1644, 7
    %v1646 = vsub.s32 1, %v1645
    %v1647 = vrot.slane %v1104, %v1646
    %v1649 = vsel %vm171, %v1642, 0
    %v1652 = vsel %vm171, %v1643, 0
    %1654 = vmatprep.subr.mxu0 0.0
    %1655 = vmatpush1.msra.mxu0 %v1091
    %1656 = vmatprep.subr.mxu0 0.0
    %1657 = vmatpush1.msra.mxu0 %v1092
    %1658 = vmatprep.subr.mxu0 0.0
    %1659 = vmatpush1.msra.mxu0 %v1093
    %1660 = vmatprep.subr.mxu0 0.0
    %1661 = vmatpush1.msra.mxu0 %v1094
    %1662 = vmatprep.subr.mxu0 0.0
    %1663 = vmatpush1.msra.mxu0 0.0
    %1664 = vmatprep.subr.mxu0 0.0
    %1665 = vmatpush1.msra.mxu0 0.0
    %1666 = vmatprep.subr.mxu0 0.0
    %1667 = vmatpush1.msra.mxu0 0.0
    %1668 = vmatprep.subr.mxu0 0.0
    %1669 = vmatpush1.msra.mxu0 0.0
    %1670 = vmatprep.subr.mxu0 0.0
    %1671 = vmatpush1.msra.mxu0 0.0
    %1672 = vmatprep.subr.mxu0 0.0
    %1673 = vmatpush1.msra.mxu0 0.0
    %1674 = vmatprep.subr.mxu0 0.0
    %1675 = vmatpush1.msra.mxu0 0.0
    %1676 = vmatprep.subr.mxu0 0.0
    %1677 = vmatpush1.msra.mxu0 0.0
    %1678 = vmatprep.subr.mxu0 0.0
    %1679 = vmatpush1.msra.mxu0 0.0
    %1680 = vmatprep.subr.mxu0 0.0
    %1681 = vmatpush1.msra.mxu0 0.0
    %1682 = vmatprep.subr.mxu0 0.0
    %1683 = vmatpush1.msra.mxu0 0.0
    %1684 = vmatprep.subr.mxu0 0.0
    %1685 = vmatpush1.msra.mxu0 0.0
    %1686 = vmatprep.subr.mxu0 0.0
    %1687 = vmatpush1.msra.mxu0 0.0
    %1688 = vmatprep.subr.mxu0 0.0
    %1689 = vmatpush1.msra.mxu0 0.0
    %1690 = vmatprep.subr.mxu0 0.0
    %1691 = vmatpush1.msra.mxu0 0.0
    %1692 = vmatprep.subr.mxu0 0.0
    %1693 = vmatpush1.msra.mxu0 0.0
    %1694 = vmatprep.subr.mxu0 0.0
    %1695 = vmatpush1.msra.mxu0 0.0
    %1696 = vmatprep.subr.mxu0 0.0
    %1697 = vmatpush1.msra.mxu0 0.0
    %1698 = vmatprep.subr.mxu0 0.0
    %1699 = vmatpush1.msra.mxu0 0.0
    %1700 = vmatprep.subr.mxu0 0.0
    %1701 = vmatpush1.msra.mxu0 0.0
    %1702 = vmatprep.subr.mxu0 0.0
    %1703 = vmatpush1.msra.mxu0 0.0
    %1704 = vmatprep.subr.mxu0 0.0
    %1705 = vmatpush1.msra.mxu0 0.0
    %1706 = vmatprep.subr.mxu0 0.0
    %1707 = vmatpush1.msra.mxu0 0.0
    %1708 = vmatprep.subr.mxu0 0.0
    %1709 = vmatpush1.msra.mxu0 0.0
    %1710 = vmatprep.subr.mxu0 0.0
    %1711 = vmatpush1.msra.mxu0 0.0
    %1712 = vmatprep.subr.mxu0 0.0
    %1713 = vmatpush1.msra.mxu0 0.0
    %1714 = vmatprep.subr.mxu0 0.0
    %1715 = vmatpush1.msra.mxu0 0.0
    %1716 = vmatprep.subr.mxu0 0.0
    %1717 = vmatpush1.msra.mxu0 0.0
    %1718 = vmatprep.mubr.f32.mxu0 0.0
    %1719 = vmatmul.mubr.f32.gmra.mrb[0].mxu0 %v1649
    %v1720 = vpop.f32.mrb[0].mxu0
    %v1721 = vadd.f32 %v1647, %v1720
    %v1722 = vpop.f32.mrb[0].mxu0
    %1723 = vmatprep.mubr.f32.mxu0 0.0
    %1724 = vmatmul.mubr.f32.gmra.mrb[0].mxu0 %v1652
    %v1725 = vpop.f32.mrb[0].mxu0
    %v1726 = vadd.f32 %v1647, %v1725
    %v1727 = vpop.f32.mrb[0].mxu0
    %1728 = vdwg.mxu0
    %v1729 = vadd.f32 %v1079, %v1721
    %v1730 = vadd.f32 %v1080, %v1726
    %v1731 = vsel %vm171, %v1729, 0.0
    %1732 = vadd.xlane.f32.xlu0 %v1731
    %v1733 = vpop.xlane.xlu0 %1732
    %v1734 = vsel %vm171, %v1730, 0.0
    %1735 = vadd.xlane.f32.xlu0 %v1734
    %v1736 = vpop.xlane.xlu0 %1735
    %v1737 = vmul.f32 %v1733, %v804
    %v1738 = vmul.f32 %v1736, %v804
    %v1739 = vsub.f32 %v1729, %v1737
    %v1740 = vsub.f32 %v1730, %v1738
    %v1741 = vmul.f32 %v1739, %v1739
    %v1742 = vmul.f32 %v1740, %v1740
    %v1743 = vsel %vm171, %v1741, 0.0
    %1744 = vadd.xlane.f32.xlu0 %v1743
    %v1745 = vpop.xlane.xlu0 %1744
    %v1746 = vsel %vm171, %v1742, 0.0
    %1747 = vadd.xlane.f32.xlu0 %v1746
    %v1748 = vpop.xlane.xlu0 %1747
    %v1749 = vmul.f32 %v1745, %v804
    %v1750 = vmul.f32 %v1748, %v804
    %v1751 = vadd.f32 %v1749, 1e-05
    %v1752 = vadd.f32 %v1750, 1e-05
    %v1753 = vrsqrt.pop %v1751
    %v1754 = vrsqrt.pop %v1752
    %v1755 = vmul.f32 %v1739, %v1753
    %v1756 = vmul.f32 %v1740, %v1754
    %v1757 = vlaneseq
    %v1758 = vshrl.u32 %v1757, 7
    %v1759 = vsub.s32 4, %v1758
    %v1760 = vrot.slane %v1104, %v1759
    %v1761 = vmul.f32 %v1755, %v1760
    %v1762 = vmul.f32 %v1756, %v1760
    %v1763 = vlaneseq
    %v1764 = vshrl.u32 %v1763, 7
    %v1765 = vsub.s32 5, %v1764
    %v1766 = vrot.slane %v1104, %v1765
    %v1767 = vadd.f32 %v1761, %v1766
    %v1768 = vadd.f32 %v1762, %v1766
    %v1769 = vlaneseq
    %v1770 = vshrl.u32 %v1769, 7
    %v1771 = vsub.s32 2, %v1770
    %v1772 = vrot.slane %v1104, %v1771
    %1781 = vrot.lane.b32.xlu0 %v1082, 32
    %v1782 = vpop.permute.xlu0 %1781
    %1783 = vrot.lane.b32.xlu0 %v1083, 32
    %v1784 = vpop.permute.xlu0 %1783
    %1785 = vrot.lane.b32.xlu0 %v1084, 32
    %v1786 = vpop.permute.xlu0 %1785
    %1787 = vrot.lane.b32.xlu0 %v1085, 32
    %v1788 = vpop.permute.xlu0 %1787
    %1789 = vrot.lane.b32.xlu0 %v1086, 32
    %v1790 = vpop.permute.xlu0 %1789
    %1791 = vrot.lane.b32.xlu0 %v1087, 32
    %v1792 = vpop.permute.xlu0 %1791
    %1793 = vrot.lane.b32.xlu0 %v1088, 32
    %v1794 = vpop.permute.xlu0 %1793
    %1795 = vrot.lane.b32.xlu0 %v1089, 32
    %v1796 = vpop.permute.xlu0 %1795
    %v1797 = vsel %vm171, %v1782, %v1784
    %v1798 = vsel %vm171, %v1786, %v1788
    %v1799 = vsel %vm171, %v1790, %v1792
    %v1800 = vsel %vm171, %v1794, %v1796
    %v1806 = vsel %vm171, %v1767, 0
    %v1809 = vsel %vm171, %v1768, 0
    %1811 = vmatprep.subr.mxu0 0.0
    %1812 = vmatpush1.msra.mxu0 %v1797
    %1813 = vmatprep.subr.mxu0 0.0
    %1814 = vmatpush1.msra.mxu0 %v1798
    %1815 = vmatprep.subr.mxu0 0.0
    %1816 = vmatpush1.msra.mxu0 %v1799
    %1817 = vmatprep.subr.mxu0 0.0
    %1818 = vmatpush1.msra.mxu0 %v1800
    %1819 = vmatprep.subr.mxu0 0.0
    %1820 = vmatpush1.msra.mxu0 0.0
    %1821 = vmatprep.subr.mxu0 0.0
    %1822 = vmatpush1.msra.mxu0 0.0
    %1823 = vmatprep.subr.mxu0 0.0
    %1824 = vmatpush1.msra.mxu0 0.0
    %1825 = vmatprep.subr.mxu0 0.0
    %1826 = vmatpush1.msra.mxu0 0.0
    %1827 = vmatprep.subr.mxu0 0.0
    %1828 = vmatpush1.msra.mxu0 0.0
    %1829 = vmatprep.subr.mxu0 0.0
    %1830 = vmatpush1.msra.mxu0 0.0
    %1831 = vmatprep.subr.mxu0 0.0
    %1832 = vmatpush1.msra.mxu0 0.0
    %1833 = vmatprep.subr.mxu0 0.0
    %1834 = vmatpush1.msra.mxu0 0.0
    %1835 = vmatprep.subr.mxu0 0.0
    %1836 = vmatpush1.msra.mxu0 0.0
    %1837 = vmatprep.subr.mxu0 0.0
    %1838 = vmatpush1.msra.mxu0 0.0
    %1839 = vmatprep.subr.mxu0 0.0
    %1840 = vmatpush1.msra.mxu0 0.0
    %1841 = vmatprep.subr.mxu0 0.0
    %1842 = vmatpush1.msra.mxu0 0.0
    %1843 = vmatprep.subr.mxu0 0.0
    %1844 = vmatpush1.msra.mxu0 0.0
    %1845 = vmatprep.subr.mxu0 0.0
    %1846 = vmatpush1.msra.mxu0 0.0
    %1847 = vmatprep.subr.mxu0 0.0
    %1848 = vmatpush1.msra.mxu0 0.0
    %1849 = vmatprep.subr.mxu0 0.0
    %1850 = vmatpush1.msra.mxu0 0.0
    %1851 = vmatprep.subr.mxu0 0.0
    %1852 = vmatpush1.msra.mxu0 0.0
    %1853 = vmatprep.subr.mxu0 0.0
    %1854 = vmatpush1.msra.mxu0 0.0
    %1855 = vmatprep.subr.mxu0 0.0
    %1856 = vmatpush1.msra.mxu0 0.0
    %1857 = vmatprep.subr.mxu0 0.0
    %1858 = vmatpush1.msra.mxu0 0.0
    %1859 = vmatprep.subr.mxu0 0.0
    %1860 = vmatpush1.msra.mxu0 0.0
    %1861 = vmatprep.subr.mxu0 0.0
    %1862 = vmatpush1.msra.mxu0 0.0
    %1863 = vmatprep.subr.mxu0 0.0
    %1864 = vmatpush1.msra.mxu0 0.0
    %1865 = vmatprep.subr.mxu0 0.0
    %1866 = vmatpush1.msra.mxu0 0.0
    %1867 = vmatprep.subr.mxu0 0.0
    %1868 = vmatpush1.msra.mxu0 0.0
    %1869 = vmatprep.subr.mxu0 0.0
    %1870 = vmatpush1.msra.mxu0 0.0
    %1871 = vmatprep.subr.mxu0 0.0
    %1872 = vmatpush1.msra.mxu0 0.0
    %1873 = vmatprep.subr.mxu0 0.0
    %1874 = vmatpush1.msra.mxu0 0.0
    %1875 = vmatprep.mubr.f32.mxu0 0.0
    %1876 = vmatmul.mubr.f32.gmra.mrb[0].mxu0 %v1806
    %v1877 = vpop.f32.mrb[0].mxu0
    %v1878 = vadd.f32 %v1772, %v1877
    %v1879 = vpop.f32.mrb[0].mxu0
    %1880 = vmatprep.mubr.f32.mxu0 0.0
    %1881 = vmatmul.mubr.f32.gmra.mrb[0].mxu0 %v1809
    %v1882 = vpop.f32.mrb[0].mxu0
    %v1883 = vadd.f32 %v1772, %v1882
    %v1884 = vpop.f32.mrb[0].mxu0
    %1885 = vdwg.mxu0
    %v1886 = vmax.f32 %v1878, 0.0
    %v1887 = vmax.f32 %v1883, 0.0
    %v1888 = vlaneseq
    %v1889 = vshrl.u32 %v1888, 7
    %v1890 = vsub.s32 3, %v1889
    %v1891 = vrot.slane %v1104, %v1890
    %v1893 = vsel %vm437, %v1886, 0
    %v1896 = vsel %vm437, %v1887, 0
    %1898 = vmatprep.subr.mxu0 0.0
    %1899 = vmatpush1.msra.mxu0 %v1095
    %1900 = vmatprep.subr.mxu0 0.0
    %1901 = vmatpush1.msra.mxu0 %v1096
    %1902 = vmatprep.subr.mxu0 0.0
    %1903 = vmatpush1.msra.mxu0 %v1097
    %1904 = vmatprep.subr.mxu0 0.0
    %1905 = vmatpush1.msra.mxu0 %v1098
    %1906 = vmatprep.subr.mxu0 0.0
    %1907 = vmatpush1.msra.mxu0 %v1099
    %1908 = vmatprep.subr.mxu0 0.0
    %1909 = vmatpush1.msra.mxu0 %v1100
    %1910 = vmatprep.subr.mxu0 0.0
    %1911 = vmatpush1.msra.mxu0 %v1101
    %1912 = vmatprep.subr.mxu0 0.0
    %1913 = vmatpush1.msra.mxu0 %v1102
    %1914 = vmatprep.subr.mxu0 0.0
    %1915 = vmatpush1.msra.mxu0 0.0
    %1916 = vmatprep.subr.mxu0 0.0
    %1917 = vmatpush1.msra.mxu0 0.0
    %1918 = vmatprep.subr.mxu0 0.0
    %1919 = vmatpush1.msra.mxu0 0.0
    %1920 = vmatprep.subr.mxu0 0.0
    %1921 = vmatpush1.msra.mxu0 0.0
    %1922 = vmatprep.subr.mxu0 0.0
    %1923 = vmatpush1.msra.mxu0 0.0
    %1924 = vmatprep.subr.mxu0 0.0
    %1925 = vmatpush1.msra.mxu0 0.0
    %1926 = vmatprep.subr.mxu0 0.0
    %1927 = vmatpush1.msra.mxu0 0.0
    %1928 = vmatprep.subr.mxu0 0.0
    %1929 = vmatpush1.msra.mxu0 0.0
    %1930 = vmatprep.subr.mxu0 0.0
    %1931 = vmatpush1.msra.mxu0 0.0
    %1932 = vmatprep.subr.mxu0 0.0
    %1933 = vmatpush1.msra.mxu0 0.0
    %1934 = vmatprep.subr.mxu0 0.0
    %1935 = vmatpush1.msra.mxu0 0.0
    %1936 = vmatprep.subr.mxu0 0.0
    %1937 = vmatpush1.msra.mxu0 0.0
    %1938 = vmatprep.subr.mxu0 0.0
    %1939 = vmatpush1.msra.mxu0 0.0
    %1940 = vmatprep.subr.mxu0 0.0
    %1941 = vmatpush1.msra.mxu0 0.0
    %1942 = vmatprep.subr.mxu0 0.0
    %1943 = vmatpush1.msra.mxu0 0.0
    %1944 = vmatprep.subr.mxu0 0.0
    %1945 = vmatpush1.msra.mxu0 0.0
    %1946 = vmatprep.subr.mxu0 0.0
    %1947 = vmatpush1.msra.mxu0 0.0
    %1948 = vmatprep.subr.mxu0 0.0
    %1949 = vmatpush1.msra.mxu0 0.0
    %1950 = vmatprep.subr.mxu0 0.0
    %1951 = vmatpush1.msra.mxu0 0.0
    %1952 = vmatprep.subr.mxu0 0.0
    %1953 = vmatpush1.msra.mxu0 0.0
    %1954 = vmatprep.subr.mxu0 0.0
    %1955 = vmatpush1.msra.mxu0 0.0
    %1956 = vmatprep.subr.mxu0 0.0
    %1957 = vmatpush1.msra.mxu0 0.0
    %1958 = vmatprep.subr.mxu0 0.0
    %1959 = vmatpush1.msra.mxu0 0.0
    %1960 = vmatprep.subr.mxu0 0.0
    %1961 = vmatpush1.msra.mxu0 0.0
    %1962 = vmatprep.mubr.f32.mxu0 0.0
    %1963 = vmatmul.mubr.f32.gmra.mrb[0].mxu0 %v1893
    %v1964 = vpop.f32.mrb[0].mxu0
    %v1965 = vadd.f32 %v1891, %v1964
    %v1966 = vpop.f32.mrb[0].mxu0
    %1967 = vmatprep.mubr.f32.mxu0 0.0
    %1968 = vmatmul.mubr.f32.gmra.mrb[0].mxu0 %v1896
    %v1969 = vpop.f32.mrb[0].mxu0
    %v1970 = vadd.f32 %v1891, %v1969
    %v1971 = vpop.f32.mrb[0].mxu0
    %1972 = vdwg.mxu0
    %v1973 = vadd.f32 %v1767, %v1965
    %v1974 = vadd.f32 %v1768, %v1970
    %v1975 = vsel %vm171, %v1973, 0.0
    %1976 = vadd.xlane.f32.xlu0 %v1975
    %v1977 = vpop.xlane.xlu0 %1976
    %v1978 = vsel %vm171, %v1974, 0.0
    %1979 = vadd.xlane.f32.xlu0 %v1978
    %v1980 = vpop.xlane.xlu0 %1979
    %v1981 = vmul.f32 %v1977, %v804
    %v1982 = vmul.f32 %v1980, %v804
    %v1983 = vsub.f32 %v1973, %v1981
    %v1984 = vsub.f32 %v1974, %v1982
    %v1985 = vmul.f32 %v1983, %v1983
    %v1986 = vmul.f32 %v1984, %v1984
    %v1987 = vsel %vm171, %v1985, 0.0
    %1988 = vadd.xlane.f32.xlu0 %v1987
    %v1989 = vpop.xlane.xlu0 %1988
    %v1990 = vsel %vm171, %v1986, 0.0
    %1991 = vadd.xlane.f32.xlu0 %v1990
    %v1992 = vpop.xlane.xlu0 %1991
    %v1993 = vmul.f32 %v1989, %v804
    %v1994 = vmul.f32 %v1992, %v804
    %v1995 = vadd.f32 %v1993, 1e-05
    %v1996 = vadd.f32 %v1994, 1e-05
    %v1997 = vrsqrt.pop %v1995
    %v1998 = vrsqrt.pop %v1996
    %v1999 = vmul.f32 %v1983, %v1997
    %v2000 = vmul.f32 %v1984, %v1998
    %v2001 = vlaneseq
    %v2002 = vshrl.u32 %v2001, 7
    %v2003 = vsub.s32 6, %v2002
    %v2004 = vrot.slane %v1104, %v2003
    %v2005 = vmul.f32 %v1999, %v2004
    %v2006 = vmul.f32 %v2000, %v2004
    %v2007 = vlaneseq
    %v2008 = vshrl.u32 %v2007, 7
    %v2009 = vsub.s32 7, %v2008
    %v2010 = vrot.slane %v1104, %v2009
    %v2011 = vadd.f32 %v2005, %v2010
    %v2012 = vadd.f32 %v2006, %v2010
    %s2013 = scalar_lea.vmem %s6, 16
    %v2014 = vld [vmem:[%s2013] sm:$0xff]
    %v2015 = vsel %vm171, %v2011, 0.0
    %2016 = vadd.xlane.f32.xlu0 %v2015
    %v2017 = vpop.xlane.xlu0 %2016
    %v2018 = vsel %vm171, %v2012, 0.0
    %2019 = vadd.xlane.f32.xlu0 %v2018
    %v2020 = vpop.xlane.xlu0 %2019
    %v2021 = vmul.f32 %v2017, %v804
    %v2022 = vmul.f32 %v2020, %v804
    %v2023 = vsub.f32 %v2011, %v2021
    %v2024 = vsub.f32 %v2012, %v2022
    %v2025 = vmul.f32 %v2023, %v2023
    %v2026 = vmul.f32 %v2024, %v2024
    %v2027 = vsel %vm171, %v2025, 0.0
    %2028 = vadd.xlane.f32.xlu0 %v2027
    %v2029 = vpop.xlane.xlu0 %2028
    %v2030 = vsel %vm171, %v2026, 0.0
    %2031 = vadd.xlane.f32.xlu0 %v2030
    %v2032 = vpop.xlane.xlu0 %2031
    %v2033 = vmul.f32 %v2029, %v804
    %v2034 = vmul.f32 %v2032, %v804
    %v2035 = vadd.f32 %v2033, 1e-05
    %v2036 = vadd.f32 %v2034, 1e-05
    %v2037 = vrsqrt.pop %v2035
    %v2038 = vrsqrt.pop %v2036
    %v2039 = vmul.f32 %v2023, %v2037
    %v2040 = vmul.f32 %v2024, %v2038
    %v2041 = vlaneseq
    %v2042 = vshrl.u32 %v2041, 7
    %v2043 = vsub.s32 0, %v2042
    %v2044 = vrot.slane %v2014, %v2043
    %v2045 = vmul.f32 %v2039, %v2044
    %v2046 = vmul.f32 %v2040, %v2044
    %v2047 = vlaneseq
    %v2048 = vshrl.u32 %v2047, 7
    %v2049 = vsub.s32 1, %v2048
    %v2050 = vrot.slane %v2014, %v2049
    %v2051 = vadd.f32 %v2045, %v2050
    %v2052 = vadd.f32 %v2046, %v2050
    %2053 = vst.msk [vmem:[#allocation2] sm:$0xff] %vm171, %v2051
    %2054 = vst.msk [vmem:[#allocation2 + $0x8] sm:$0xff] %vm171, %v2052
    // Predicated region
    $region30: #{encoder_forward.1} parent=1 // pred_check
      _
    $region31: #{encoder_forward.1} parent=1 // pred_check_branch
      %2056 = sbr.rel (0) target = $region33
    $region32: #{encoder_forward.1} parent=1 // pred_region
      %s2058 = ssub.s32 256, 256
      %2059 = vsyncadd [#allocation3], %s2058
      %s2060 = sshll.u32 [#allocation2], 4
      %s2061 = int_to_ptr.vmem [resolvable:$true] %s2060
      %2066 = dma.vmem_to_hbm [thread:$0]  %s2061, 256, %s7, [#allocation3], 128, 128, 8
    $region33: #{encoder_forward.1} parent=1 // pred_fallthru
      _
    // Predicated region
    $region34: #{encoder_forward.1} parent=1 // pred_check
      _
    $region35: #{encoder_forward.1} parent=1 // pred_check_branch
      %2068 = sbr.rel (0) target = $region37
    $region36: #{encoder_forward.1} parent=1 // pred_region
      %2069 = dma.done [#allocation3], 256
    $region37: #{encoder_forward.1} parent=1 // pred_fallthru
      _
    %2070 = vsyncpa [#allocation3], 1

</llo_original>
